<compile_context>
chip_gen: v7x
topology: tpu7x:2x2x1
jax: 0.10.0
libtpu: 0.0.40
codegen_flags: <defaults>
</compile_context>

<pallas_src>
import jax
import jax.numpy as jnp
from jax import lax
from jax.experimental import pallas as pl
from jax.experimental.pallas import tpu as pltpu

NOISE_DIM = 100
NUM_CLASSES = 10
EMB_DIM = 10
IN_DIM = NOISE_DIM + EMB_DIM          # 110
IN_PAD = 128                          # noise (100) + zero cols -> lane multiple
CLS_PAD = 128                         # one-hot class dim padded to a lane group
H1, H2, H3 = 256, 512, 1024
OUT_DIM = 784
OUT_PAD = 896                         # 7 * 128
TM_MAX = 512                          # batch-tile cap (VMEM-limited, not MXU)


def _round_up(n, m):
    return ((n + m - 1) // m) * m


def _leaky_relu(x, slope=0.2):
    # max(x, slope*x) == LeakyReLU(slope) for slope < 1.
    return jnp.maximum(x, slope * x)


def _pick_tiles(batch):
    """Minimize batch padding: split B into cdiv(B, TM_MAX) near-equal tiles."""
    batch = max(int(batch), 1)
    n_tiles = -(-batch // TM_MAX)                     # cdiv
    tm = _round_up(max(-(-batch // n_tiles), 16), 16)  # multiple of 16 (bf16 sublanes)
    return tm, n_tiles


def generator_kernel(x_ref, lab_ref, cls_ref, w1_ref,
                     w2_hbm, b2_ref, w3_hbm, b3_ref, w4_hbm, b4_ref,
                     o_ref,
                     w2_buf, w3_buf, w4_buf, sem):
    bf = jnp.bfloat16
    first = pl.program_id(0) == 0

    # Kick off the big-weight DMAs immediately (only once -- scratch persists
    # across grid steps) so they overlap layer-1..3 compute instead of
    # serializing ahead of it.
    @pl.when(first)
    def _start_weight_dma():
        pltpu.make_async_copy(w2_hbm, w2_buf, sem.at[0]).start()
        pltpu.make_async_copy(w3_hbm, w3_buf, sem.at[1]).start()
        pltpu.make_async_copy(w4_hbm, w4_buf, sem.at[2]).start()

    # --- Layer 1: x @ W1 (bf16 weights, f32 accumulate) + per-class bias row.
    # cls_ref[c] = emb[c] @ W1[100:110] + b1 (precomputed in f32); selected via
    # a one-hot matmul so no in-kernel gather is needed.
    lab = lab_ref[...]                                              # (TM, 1) i32
    cls_iota = lax.broadcasted_iota(jnp.int32, (lab.shape[0], CLS_PAD), 1)
    onehot = (lab == cls_iota).astype(jnp.float32)                  # (TM, 128)
    cbias = jnp.dot(onehot, cls_ref[...],
                    preferred_element_type=jnp.float32)             # (TM, 256)
    h = jnp.dot(x_ref[...].astype(bf), w1_ref[...],
                preferred_element_type=jnp.float32) + cbias
    h = _leaky_relu(h)                                              # (TM, 256)

    # --- Layer 2.
    @pl.when(first)
    def _wait_w2():
        pltpu.make_async_copy(w2_hbm, w2_buf, sem.at[0]).wait()
    h = jnp.dot(h.astype(bf), w2_buf[...],
                preferred_element_type=jnp.float32) + b2_ref[...]
    h = _leaky_relu(h)                                              # (TM, 512)

    # --- Layer 3.
    @pl.when(first)
    def _wait_w3():
        pltpu.make_async_copy(w3_hbm, w3_buf, sem.at[1]).wait()
    h = jnp.dot(h.astype(bf), w3_buf[...],
                preferred_element_type=jnp.float32) + b3_ref[...]
    h = _leaky_relu(h)                                              # (TM, 1024)

    # --- Layer 4 + tanh (EUP).
    @pl.when(first)
    def _wait_w4():
        pltpu.make_async_copy(w4_hbm, w4_buf, sem.at[2]).wait()
    h = jnp.dot(h.astype(bf), w4_buf[...],
                preferred_element_type=jnp.float32) + b4_ref[...]
    o_ref[...] = jnp.tanh(h)                                        # (TM, 896)


def init_params(key):
    """Deterministic parameter init matching the PyTorch module's shapes (f32)."""
    ks = jax.random.split(key, 9)

    def lin(kw, kb, fan_in, fan_out):
        bound = 1.0 / jnp.sqrt(fan_in)
        w = jax.random.uniform(kw, (fan_in, fan_out), jnp.float32, -bound, bound)
        b = jax.random.uniform(kb, (1, fan_out), jnp.float32, -bound, bound)
        return w, b

    emb = jax.random.normal(ks[0], (NUM_CLASSES, EMB_DIM), jnp.float32)
    w1, b1 = lin(ks[1], ks[2], IN_DIM, H1)
    w2, b2 = lin(ks[3], ks[4], H1, H2)
    w3, b3 = lin(ks[5], ks[6], H2, H3)
    w4, b4 = lin(ks[7], ks[8], H3, OUT_DIM)
    return dict(emb=emb, w1=w1, b1=b1, w2=w2, b2=b2,
                w3=w3, b3=b3, w4=w4, b4=b4)


def prepare_params(params):
    """One-time prep (after init/update, never per forward call):
      * fold embedding + b1 into a per-class bias table (f32),
      * pad W1 rows / W4+b4 cols to lane multiples,
      * cast weights to bf16 (halves weight HBM traffic; f32 accumulate in-kernel).
    """
    bf = jnp.bfloat16
    w1 = params["w1"]
    cls_tab = params["emb"] @ w1[NOISE_DIM:IN_DIM] + params["b1"]        # (10, 256) f32
    cls_tab = jnp.pad(cls_tab, ((0, CLS_PAD - NUM_CLASSES), (0, 0)))     # (128, 256)
    # Rows 100..127 of w1p are multiplied by zero-padded x columns -> inert;
    # the class contribution comes exclusively through cls_tab.
    w1p = jnp.pad(w1, ((0, IN_PAD - IN_DIM), (0, 0))).astype(bf)         # (128, 256)
    w4p = jnp.pad(params["w4"], ((0, 0), (0, OUT_PAD - OUT_DIM))).astype(bf)  # (1024, 896)
    b4p = jnp.pad(params["b4"], ((0, 0), (0, OUT_PAD - OUT_DIM)))        # (1, 896) f32
    return dict(cls_tab=cls_tab, w1=w1p,
                w2=params["w2"].astype(bf), b2=params["b2"],
                w3=params["w3"].astype(bf), b3=params["b3"],
                w4=w4p, b4=b4p)


@jax.jit
def generator_forward(prep, x, labels):
    """x: (B, 100) f32 noise, labels: (B,) int class ids -> (B, 784) f32."""
    B = x.shape[0]
    TM, n_tiles = _pick_tiles(B)
    B_pad = TM * n_tiles

    x_pad = jnp.pad(x.astype(jnp.float32),
                    ((0, B_pad - B), (0, IN_PAD - NOISE_DIM)))           # (B_pad, 128)
    lab_pad = jnp.pad(labels.astype(jnp.int32).reshape(-1, 1),
                      ((0, B_pad - B), (0, 0)))                          # (B_pad, 1)

    row = lambda i: (i, 0)      # per-batch-tile blocks
    const = lambda i: (0, 0)    # resident blocks (DMA'd once)

    in_specs = [
        pl.BlockSpec((TM, IN_PAD), row),          # x tile (streamed)
        pl.BlockSpec((TM, 1), row),               # labels tile (streamed)
        pl.BlockSpec((CLS_PAD, H1), const),       # class-bias table (resident)
        pl.BlockSpec((IN_PAD, H1), const),        # W1 (resident, tiny)
        pl.BlockSpec(memory_space=pl.ANY),        # W2 -> manual DMA
        pl.BlockSpec((1, H2), const),             # b2
        pl.BlockSpec(memory_space=pl.ANY),        # W3 -> manual DMA
        pl.BlockSpec((1, H3), const),             # b3
        pl.BlockSpec(memory_space=pl.ANY),        # W4 -> manual DMA
        pl.BlockSpec((1, OUT_PAD), const),        # b4
    ]

    out = pl.pallas_call(
        generator_kernel,
        out_shape=jax.ShapeDtypeStruct((B_pad, OUT_PAD), jnp.float32),
        grid=(n_tiles,),
        in_specs=in_specs,
        out_specs=pl.BlockSpec((TM, OUT_PAD), row),
        scratch_shapes=[
            pltpu.VMEM((H1, H2), jnp.bfloat16),          # W2 buffer
            pltpu.VMEM((H2, H3), jnp.bfloat16),          # W3 buffer
            pltpu.VMEM((H3, OUT_PAD), jnp.bfloat16),     # W4 buffer
            pltpu.SemaphoreType.DMA((3,)),
        ],
        compiler_params=pltpu.CompilerParams(
            # "arbitrary" (sequential) is required: the big weights are DMA'd
            # once at step 0 into scratch reused by later steps.  It also
            # avoids v7x's 2nd TensorCore duplicating ~3 MiB of weight HBM
            # traffic in the weight-bound small/medium-batch regime.
            dimension_semantics=("arbitrary",),
            vmem_limit_bytes=32 * 1024 * 1024,
        ),
    )(x_pad, lab_pad, prep["cls_tab"], prep["w1"],
      prep["w2"], prep["b2"], prep["w3"], prep["b3"],
      prep["w4"], prep["b4"])

    return out[:B, :OUT_DIM]                                             # (B, 784)


def generator_reference_f32(params, x, labels):
    """Pure-JAX f32 reference mirroring the PyTorch forward."""
    c = params["emb"][labels]
    h = jnp.concatenate([x, c], axis=1)
    h = _leaky_relu(h @ params["w1"] + params["b1"])
    h = _leaky_relu(h @ params["w2"] + params["b2"])
    h = _leaky_relu(h @ params["w3"] + params["b3"])
    return jnp.tanh(h @ params["w4"] + params["b4"])


def generator_reference_bf16(params, x, labels):
    """Pure-JAX reference mirroring the kernel's bf16-weight / f32-acc recipe."""
    bf = jnp.bfloat16
    cls_tab = params["emb"] @ params["w1"][NOISE_DIM:IN_DIM] + params["b1"]
    h = jnp.dot(x.astype(bf), params["w1"][:NOISE_DIM].astype(bf),
                preferred_element_type=jnp.float32) + cls_tab[labels]
    h = _leaky_relu(h)

    def layer(hh, w, b):
        return jnp.dot(hh.astype(bf), w.astype(bf),
                       preferred_element_type=jnp.float32) + b

    h = _leaky_relu(layer(h, params["w2"], params["b2"]))
    h = _leaky_relu(layer(h, params["w3"], params["b3"]))
    return jnp.tanh(layer(h, params["w4"], params["b4"]))


if __name__ == "__main__":
    key = jax.random.PRNGKey(0)
    k_param, k_x, k_lab = jax.random.split(key, 3)

    B = 8
    params = init_params(k_param)
    prep = prepare_params(params)          # one-time padding / folding / bf16 cast

    x = jax.random.normal(k_x, (B, NOISE_DIM), jnp.float32)
    labels = jax.random.randint(k_lab, (B,), 0, NUM_CLASSES, jnp.int32)

    out = jax.block_until_ready(generator_forward(prep, x, labels))
    assert out.shape == (B, OUT_DIM), out.shape

    ref16 = generator_reference_bf16(params, x, labels)
    ref32 = generator_reference_f32(params, x, labels)
    err16 = float(jnp.max(jnp.abs(out - ref16)))
    err32 = float(jnp.max(jnp.abs(out - ref32)))
    assert jnp.allclose(out, ref16, atol=2e-2, rtol=2e-2), f"bf16-ref mismatch {err16}"
    assert jnp.allclose(out, ref32, atol=7e-2, rtol=7e-2), f"f32-ref mismatch {err32}"

    print("KERNEL_OK")
</pallas_src>

<mosaic_0001>
module attributes {stable_mosaic.version = 11 : i64} {
  func.func @generator_kernel(%arg0: i32, %arg1: memref<16x128xf32, #tpu.memory_space<vmem>>, %arg2: memref<16x1xi32, #tpu.memory_space<vmem>>, %arg3: memref<128x256xf32, #tpu.memory_space<vmem>>, %arg4: memref<128x256xbf16, #tpu.memory_space<vmem>>, %arg5: memref<256x512xbf16, #tpu.memory_space<any>>, %arg6: memref<1x512xf32, #tpu.memory_space<vmem>>, %arg7: memref<512x1024xbf16, #tpu.memory_space<any>>, %arg8: memref<1x1024xf32, #tpu.memory_space<vmem>>, %arg9: memref<1024x896xbf16, #tpu.memory_space<any>>, %arg10: memref<1x896xf32, #tpu.memory_space<vmem>>, %arg11: memref<16x896xf32, #tpu.memory_space<vmem>>, %arg12: memref<256x512xbf16, #tpu.memory_space<vmem>>, %arg13: memref<512x1024xbf16, #tpu.memory_space<vmem>>, %arg14: memref<1024x896xbf16, #tpu.memory_space<vmem>>, %arg15: memref<3x!tpu.dma_semaphore, #tpu.memory_space<semaphore_mem>>) attributes {dimension_semantics = [#tpu.dimension_semantics<arbitrary>], iteration_bounds = array<i64: 1>, scalar_prefetch = 0 : i64, scratch_operands = 4 : i64, tpu.core_type = #tpu.core_type<tc>, window_params = [{transform_indices = @transform_0, window_bounds = array<i64: 16, 128>}, {transform_indices = @transform_1, window_bounds = array<i64: 16, 1>}, {pipeline_mode = #tpu.pipeline_mode<synchronous>, transform_indices = @transform_2, window_bounds = array<i64: 128, 256>}, {pipeline_mode = #tpu.pipeline_mode<synchronous>, transform_indices = @transform_3, window_bounds = array<i64: 128, 256>}, {}, {pipeline_mode = #tpu.pipeline_mode<synchronous>, transform_indices = @transform_5, window_bounds = array<i64: 1, 512>}, {}, {pipeline_mode = #tpu.pipeline_mode<synchronous>, transform_indices = @transform_7, window_bounds = array<i64: 1, 1024>}, {}, {pipeline_mode = #tpu.pipeline_mode<synchronous>, transform_indices = @transform_9, window_bounds = array<i64: 1, 896>}, {transform_indices = @transform_10, window_bounds = array<i64: 16, 896>}]} {
    %c0_i32 = arith.constant 0 : i32
    %0 = arith.cmpi eq, %arg0, %c0_i32 : i32
    %1 = arith.extui %0 : i1 to i32
    %c0_i32_0 = arith.constant 0 : i32
    %2 = arith.cmpi ne, %1, %c0_i32_0 : i32
    scf.if %2 {
      %c0_i32_32 = arith.constant 0 : i32
      %51 = tpu.memref_slice %arg15[%c0_i32_32] : memref<3x!tpu.dma_semaphore, #tpu.memory_space<semaphore_mem>> -> memref<1x!tpu.dma_semaphore, #tpu.memory_space<semaphore_mem>>
      %52 = tpu.memref_squeeze %51 : memref<1x!tpu.dma_semaphore, #tpu.memory_space<semaphore_mem>> -> memref<!tpu.dma_semaphore, #tpu.memory_space<semaphore_mem>>
      tpu.enqueue_dma source(%arg5 : memref<256x512xbf16, #tpu.memory_space<any>>) target(%arg12 : memref<256x512xbf16, #tpu.memory_space<vmem>>) target_semaphore(%52 : memref<!tpu.dma_semaphore, #tpu.memory_space<semaphore_mem>>)
      %c1_i32 = arith.constant 1 : i32
      %53 = tpu.memref_slice %arg15[%c1_i32] : memref<3x!tpu.dma_semaphore, #tpu.memory_space<semaphore_mem>> -> memref<1x!tpu.dma_semaphore, #tpu.memory_space<semaphore_mem>>
      %54 = tpu.memref_squeeze %53 : memref<1x!tpu.dma_semaphore, #tpu.memory_space<semaphore_mem>> -> memref<!tpu.dma_semaphore, #tpu.memory_space<semaphore_mem>>
      tpu.enqueue_dma source(%arg7 : memref<512x1024xbf16, #tpu.memory_space<any>>) target(%arg13 : memref<512x1024xbf16, #tpu.memory_space<vmem>>) target_semaphore(%54 : memref<!tpu.dma_semaphore, #tpu.memory_space<semaphore_mem>>)
      %c2_i32 = arith.constant 2 : i32
      %55 = tpu.memref_slice %arg15[%c2_i32] : memref<3x!tpu.dma_semaphore, #tpu.memory_space<semaphore_mem>> -> memref<1x!tpu.dma_semaphore, #tpu.memory_space<semaphore_mem>>
      %56 = tpu.memref_squeeze %55 : memref<1x!tpu.dma_semaphore, #tpu.memory_space<semaphore_mem>> -> memref<!tpu.dma_semaphore, #tpu.memory_space<semaphore_mem>>
      tpu.enqueue_dma source(%arg9 : memref<1024x896xbf16, #tpu.memory_space<any>>) target(%arg14 : memref<1024x896xbf16, #tpu.memory_space<vmem>>) target_semaphore(%56 : memref<!tpu.dma_semaphore, #tpu.memory_space<semaphore_mem>>)
    } else {
    }
    %c0 = arith.constant 0 : index
    %c0_1 = arith.constant 0 : index
    %3 = vector.load %arg2[%c0, %c0_1] : memref<16x1xi32, #tpu.memory_space<vmem>>, vector<16x1xi32>
    %4 = tpu.iota {dimensions = array<i32: 1>} : vector<16x128xi32>
    %5 = vector.broadcast %3 : vector<16x1xi32> to vector<16x128xi32>
    %6 = arith.cmpi eq, %5, %4 : vector<16x128xi32>
    %7 = arith.extui %6 : vector<16x128xi1> to vector<16x128xi32>
    %8 = arith.sitofp %7 : vector<16x128xi32> to vector<16x128xf32>
    %c0_2 = arith.constant 0 : index
    %c0_3 = arith.constant 0 : index
    %9 = vector.load %arg3[%c0_2, %c0_3] : memref<128x256xf32, #tpu.memory_space<vmem>>, vector<128x256xf32>
    %cst = arith.constant dense<0.000000e+00> : vector<16x256xf32>
    %10 = tpu.matmul %8, %9, %cst {dimension_numbers = #tpu.dot_dimension_numbers<[1], [0], [0], [1], [0, 0, 1, 1], [], []>} : vector<16x128xf32>, vector<128x256xf32>, vector<16x256xf32> -> vector<16x256xf32>
    %c0_4 = arith.constant 0 : index
    %c0_5 = arith.constant 0 : index
    %11 = vector.load %arg1[%c0_4, %c0_5] : memref<16x128xf32, #tpu.memory_space<vmem>>, vector<16x128xf32>
    %12 = arith.truncf %11 : vector<16x128xf32> to vector<16x128xbf16>
    %c0_6 = arith.constant 0 : index
    %c0_7 = arith.constant 0 : index
    %13 = vector.load %arg4[%c0_6, %c0_7] : memref<128x256xbf16, #tpu.memory_space<vmem>>, vector<128x256xbf16>
    %cst_8 = arith.constant dense<0.000000e+00> : vector<16x256xf32>
    %14 = tpu.matmul %12, %13, %cst_8 {dimension_numbers = #tpu.dot_dimension_numbers<[1], [0], [0], [1], [0, 0, 1, 1], [], []>} : vector<16x128xbf16>, vector<128x256xbf16>, vector<16x256xf32> -> vector<16x256xf32>
    %15 = arith.addf %14, %10 : vector<16x256xf32>
    %cst_9 = arith.constant 2.000000e-01 : f32
    %16 = vector.broadcast %cst_9 : f32 to vector<16x256xf32>
    %17 = arith.mulf %16, %15 : vector<16x256xf32>
    %18 = arith.maximumf %15, %17 : vector<16x256xf32>
    %19 = arith.extui %0 : i1 to i32
    %c0_i32_10 = arith.constant 0 : i32
    %20 = arith.cmpi ne, %19, %c0_i32_10 : i32
    scf.if %20 {
      %c0_i32_32 = arith.constant 0 : i32
      %51 = tpu.memref_slice %arg15[%c0_i32_32] : memref<3x!tpu.dma_semaphore, #tpu.memory_space<semaphore_mem>> -> memref<1x!tpu.dma_semaphore, #tpu.memory_space<semaphore_mem>>
      %52 = tpu.memref_squeeze %51 : memref<1x!tpu.dma_semaphore, #tpu.memory_space<semaphore_mem>> -> memref<!tpu.dma_semaphore, #tpu.memory_space<semaphore_mem>>
      tpu.wait_dma2 semaphore(%52 : memref<!tpu.dma_semaphore, #tpu.memory_space<semaphore_mem>>) src(%arg5 : memref<256x512xbf16, #tpu.memory_space<any>>) dst(%arg12 : memref<256x512xbf16, #tpu.memory_space<vmem>>)
    } else {
    }
    %21 = arith.truncf %18 : vector<16x256xf32> to vector<16x256xbf16>
    %c0_11 = arith.constant 0 : index
    %c0_12 = arith.constant 0 : index
    %22 = vector.load %arg12[%c0_11, %c0_12] : memref<256x512xbf16, #tpu.memory_space<vmem>>, vector<256x512xbf16>
    %cst_13 = arith.constant dense<0.000000e+00> : vector<16x512xf32>
    %23 = tpu.matmul %21, %22, %cst_13 {dimension_numbers = #tpu.dot_dimension_numbers<[1], [0], [0], [1], [0, 0, 1, 1], [], []>} : vector<16x256xbf16>, vector<256x512xbf16>, vector<16x512xf32> -> vector<16x512xf32>
    %c0_14 = arith.constant 0 : index
    %c0_15 = arith.constant 0 : index
    %24 = vector.load %arg6[%c0_14, %c0_15] : memref<1x512xf32, #tpu.memory_space<vmem>>, vector<1x512xf32>
    %25 = vector.broadcast %24 : vector<1x512xf32> to vector<16x512xf32>
    %26 = arith.addf %23, %25 : vector<16x512xf32>
    %cst_16 = arith.constant 2.000000e-01 : f32
    %27 = vector.broadcast %cst_16 : f32 to vector<16x512xf32>
    %28 = arith.mulf %27, %26 : vector<16x512xf32>
    %29 = arith.maximumf %26, %28 : vector<16x512xf32>
    %30 = arith.extui %0 : i1 to i32
    %c0_i32_17 = arith.constant 0 : i32
    %31 = arith.cmpi ne, %30, %c0_i32_17 : i32
    scf.if %31 {
      %c1_i32 = arith.constant 1 : i32
      %51 = tpu.memref_slice %arg15[%c1_i32] : memref<3x!tpu.dma_semaphore, #tpu.memory_space<semaphore_mem>> -> memref<1x!tpu.dma_semaphore, #tpu.memory_space<semaphore_mem>>
      %52 = tpu.memref_squeeze %51 : memref<1x!tpu.dma_semaphore, #tpu.memory_space<semaphore_mem>> -> memref<!tpu.dma_semaphore, #tpu.memory_space<semaphore_mem>>
      tpu.wait_dma2 semaphore(%52 : memref<!tpu.dma_semaphore, #tpu.memory_space<semaphore_mem>>) src(%arg7 : memref<512x1024xbf16, #tpu.memory_space<any>>) dst(%arg13 : memref<512x1024xbf16, #tpu.memory_space<vmem>>)
    } else {
    }
    %32 = arith.truncf %29 : vector<16x512xf32> to vector<16x512xbf16>
    %c0_18 = arith.constant 0 : index
    %c0_19 = arith.constant 0 : index
    %33 = vector.load %arg13[%c0_18, %c0_19] : memref<512x1024xbf16, #tpu.memory_space<vmem>>, vector<512x1024xbf16>
    %cst_20 = arith.constant dense<0.000000e+00> : vector<16x1024xf32>
    %34 = tpu.matmul %32, %33, %cst_20 {dimension_numbers = #tpu.dot_dimension_numbers<[1], [0], [0], [1], [0, 0, 1, 1], [], []>} : vector<16x512xbf16>, vector<512x1024xbf16>, vector<16x1024xf32> -> vector<16x1024xf32>
    %c0_21 = arith.constant 0 : index
    %c0_22 = arith.constant 0 : index
    %35 = vector.load %arg8[%c0_21, %c0_22] : memref<1x1024xf32, #tpu.memory_space<vmem>>, vector<1x1024xf32>
    %36 = vector.broadcast %35 : vector<1x1024xf32> to vector<16x1024xf32>
    %37 = arith.addf %34, %36 : vector<16x1024xf32>
    %cst_23 = arith.constant 2.000000e-01 : f32
    %38 = vector.broadcast %cst_23 : f32 to vector<16x1024xf32>
    %39 = arith.mulf %38, %37 : vector<16x1024xf32>
    %40 = arith.maximumf %37, %39 : vector<16x1024xf32>
    %41 = arith.extui %0 : i1 to i32
    %c0_i32_24 = arith.constant 0 : i32
    %42 = arith.cmpi ne, %41, %c0_i32_24 : i32
    scf.if %42 {
      %c2_i32 = arith.constant 2 : i32
      %51 = tpu.memref_slice %arg15[%c2_i32] : memref<3x!tpu.dma_semaphore, #tpu.memory_space<semaphore_mem>> -> memref<1x!tpu.dma_semaphore, #tpu.memory_space<semaphore_mem>>
      %52 = tpu.memref_squeeze %51 : memref<1x!tpu.dma_semaphore, #tpu.memory_space<semaphore_mem>> -> memref<!tpu.dma_semaphore, #tpu.memory_space<semaphore_mem>>
      tpu.wait_dma2 semaphore(%52 : memref<!tpu.dma_semaphore, #tpu.memory_space<semaphore_mem>>) src(%arg9 : memref<1024x896xbf16, #tpu.memory_space<any>>) dst(%arg14 : memref<1024x896xbf16, #tpu.memory_space<vmem>>)
    } else {
    }
    %43 = arith.truncf %40 : vector<16x1024xf32> to vector<16x1024xbf16>
    %c0_25 = arith.constant 0 : index
    %c0_26 = arith.constant 0 : index
    %44 = vector.load %arg14[%c0_25, %c0_26] : memref<1024x896xbf16, #tpu.memory_space<vmem>>, vector<1024x896xbf16>
    %cst_27 = arith.constant dense<0.000000e+00> : vector<16x896xf32>
    %45 = tpu.matmul %43, %44, %cst_27 {dimension_numbers = #tpu.dot_dimension_numbers<[1], [0], [0], [1], [0, 0, 1, 1], [], []>} : vector<16x1024xbf16>, vector<1024x896xbf16>, vector<16x896xf32> -> vector<16x896xf32>
    %c0_28 = arith.constant 0 : index
    %c0_29 = arith.constant 0 : index
    %46 = vector.load %arg10[%c0_28, %c0_29] : memref<1x896xf32, #tpu.memory_space<vmem>>, vector<1x896xf32>
    %47 = vector.broadcast %46 : vector<1x896xf32> to vector<16x896xf32>
    %48 = arith.addf %45, %47 : vector<16x896xf32>
    %49 = math.tanh %48 : vector<16x896xf32>
    %c0_30 = arith.constant 0 : index
    %c0_31 = arith.constant 0 : index
    %50 = vector.load %arg11[%c0_30, %c0_31] : memref<16x896xf32, #tpu.memory_space<vmem>>, vector<16x896xf32>
    tpu.vector_store %arg11[%c0_30, %c0_31], %49 {strides = array<i32>} : memref<16x896xf32, #tpu.memory_space<vmem>>, vector<16x896xf32>,
    return
  }
  func.func @transform_0(%arg0: i32) -> (i32, i32) {
    %c0_i32 = arith.constant 0 : i32
    %c0_i32_0 = arith.constant 0 : i32
    return %arg0, %c0_i32 : i32, i32
  }
  func.func @transform_1(%arg0: i32) -> (i32, i32) {
    %c0_i32 = arith.constant 0 : i32
    %c0_i32_0 = arith.constant 0 : i32
    return %arg0, %c0_i32 : i32, i32
  }
  func.func @transform_2(%arg0: i32) -> (i32, i32) {
    %c0_i32 = arith.constant 0 : i32
    %c0_i32_0 = arith.constant 0 : i32
    %c0_i32_1 = arith.constant 0 : i32
    return %c0_i32, %c0_i32_0 : i32, i32
  }
  func.func @transform_3(%arg0: i32) -> (i32, i32) {
    %c0_i32 = arith.constant 0 : i32
    %c0_i32_0 = arith.constant 0 : i32
    %c0_i32_1 = arith.constant 0 : i32
    return %c0_i32, %c0_i32_0 : i32, i32
  }
  func.func @transform_5(%arg0: i32) -> (i32, i32) {
    %c0_i32 = arith.constant 0 : i32
    %c0_i32_0 = arith.constant 0 : i32
    %c0_i32_1 = arith.constant 0 : i32
    return %c0_i32, %c0_i32_0 : i32, i32
  }
  func.func @transform_7(%arg0: i32) -> (i32, i32) {
    %c0_i32 = arith.constant 0 : i32
    %c0_i32_0 = arith.constant 0 : i32
    %c0_i32_1 = arith.constant 0 : i32
    return %c0_i32, %c0_i32_0 : i32, i32
  }
  func.func @transform_9(%arg0: i32) -> (i32, i32) {
    %c0_i32 = arith.constant 0 : i32
    %c0_i32_0 = arith.constant 0 : i32
    %c0_i32_1 = arith.constant 0 : i32
    return %c0_i32, %c0_i32_0 : i32, i32
  }
  func.func @transform_10(%arg0: i32) -> (i32, i32) {
    %c0_i32 = arith.constant 0 : i32
    %c0_i32_0 = arith.constant 0 : i32
    return %arg0, %c0_i32 : i32, i32
  }
}

</mosaic_0001>

<llo_original>
// kernel: generator_forward.1
$region0: #{generator_forward.1}
  #allocation0 [shape = 'u32[]', space=smem, size = 0x4, offset = 0x4, fixed_abs, tag = 'smem constant byte address 0x4 - core index']
  #allocation1 [shape = 'u32[144,128]{1,0:T(1,128)}', space=vmem, size = 0x12000, scoped, tag = 'internal scratch']
  #allocation2 [shape = 'bf16[256,512]{1,0:T(16,128)(2,1)}', space=vmem, size = 0x40000, scoped, tag = 'scratch operand']
  #allocation3 [shape = 'bf16[512,1024]{1,0:T(16,128)(2,1)}', space=vmem, size = 0x100000, scoped, tag = 'scratch operand']
  #allocation4 [shape = 'bf16[1024,896]{1,0:T(16,128)(2,1)}', space=vmem, size = 0x1c0000, scoped, tag = 'scratch operand']
  #allocation5 [shape = 's32[3]{0}', space=sflag, size = 0xc, scoped, tag = 'scratch operand']
  #allocation14 [shape = 's32[]', space=sflag, size = 0x4, offset = 0, fixed_abs, tag = 'sflag constant byte address 0x0 - dummy sync flag']
  #allocation16 [shape = 's32[]', space=sflag, size = 0x4, offset = 0, fixed_abs, tag = 'sflag constant byte address 0x0 - dummy sync flag']
  #allocation18 [shape = 's32[]', space=sflag, size = 0x4, offset = 0, fixed_abs, tag = 'sflag constant byte address 0x0 - dummy sync flag']
  %s0 = inlined_call_operand.vmem [shape: f32[16,128], index: 0, kind: input, shape index: {}]
  %s1 = inlined_call_operand.vmem [shape: s32[16,1], index: 1, kind: input, shape index: {}]
  %s2 = inlined_call_operand.hbm [shape: f32[128,256], index: 2, kind: input, shape index: {}]
  %s3 = inlined_call_operand.hbm [shape: bf16[128,256], index: 3, kind: input, shape index: {}]
  %s4 = inlined_call_operand.hbm [shape: bf16[256,512], index: 4, kind: input, shape index: {}]
  %s5 = inlined_call_operand.hbm [shape: f32[1,512], index: 5, kind: input, shape index: {}]
  %s6 = inlined_call_operand.hbm [shape: bf16[512,1024], index: 6, kind: input, shape index: {}]
  %s7 = inlined_call_operand.hbm [shape: f32[1,1024], index: 7, kind: input, shape index: {}]
  %s8 = inlined_call_operand.hbm [shape: bf16[1024,896], index: 8, kind: input, shape index: {}]
  %s9 = inlined_call_operand.hbm [shape: f32[1,896], index: 9, kind: input, shape index: {}]
  %s10 = inlined_call_operand.vmem [shape: f32[16,896], index: 10, kind: output, shape index: {}]
  %s11 = sld [smem:[#allocation0]]
  $region74: #{generator_forward.1} parent=0
    _
  %s13 = ssub.s32 1, %s11
  %s14 = scalar_select 0, %s13, %s11
  $region1: #{generator_forward.1} parent=0
    #allocation6 [shape = 'u8[131072]{0}', space=vmem, size = 0x20000, scoped, tag = 'input window, operand 2, single buffered']
    #allocation7 [shape = 's32[1]{0}', space=sflag, size = 0x4, scoped, tag = 'scoped memory for generator_forward.1']
    #allocation8 [shape = 'u8[65536]{0}', space=vmem, size = 0x10000, scoped, tag = 'input window, operand 3, single buffered']
    #allocation9 [shape = 's32[1]{0}', space=sflag, size = 0x4, scoped, tag = 'scoped memory for generator_forward.1']
    #allocation10 [shape = 'u8[2048]{0}', space=vmem, size = 0x800, scoped, tag = 'input window, operand 5, single buffered']
    #allocation11 [shape = 'u8[4096]{0}', space=vmem, size = 0x1000, scoped, tag = 'input window, operand 7, single buffered']
    #allocation12 [shape = 's32[1]{0}', space=sflag, size = 0x4, scoped, tag = 'scoped memory for generator_forward.1']
    #allocation13 [shape = 'u8[3584]{0}', space=vmem, size = 0x1000, scoped, tag = 'input window, operand 9, single buffered']
    %15 = vsyncpa [#allocation7], 0
    %16 = vsyncpa [#allocation9], 0
    %17 = vsyncpa [#allocation12], 0
    // Predicated region
    $region2: #{generator_forward.1} parent=1 // pred_check
      _
    $region3: #{generator_forward.1} parent=1 // pred_check_branch
      %19 = sbr.rel (0) target = $region5
    $region4: #{generator_forward.1} parent=1 // pred_region
      _
    $region5: #{generator_forward.1} parent=1 // pred_fallthru
      _
    // Predicated region
    $region6: #{generator_forward.1} parent=1 // pred_check
      _
    $region7: #{generator_forward.1} parent=1 // pred_check_branch
      %21 = sbr.rel (0) target = $region9
    $region8: #{generator_forward.1} parent=1 // pred_region
      _
    $region9: #{generator_forward.1} parent=1 // pred_fallthru
      _
    // Predicated region
    $region10: #{generator_forward.1} parent=1 // pred_check
      _
    $region11: #{generator_forward.1} parent=1 // pred_check_branch
      %23 = sbr.rel (0) target = $region13
    $region12: #{generator_forward.1} parent=1 // pred_region
      %s25 = ssub.s32 4096, 4096
      %26 = vsyncadd [#allocation7], %s25
      %s27 = sshll.u32 [#allocation6], 4
      %s28 = int_to_ptr.vmem [resolvable:$true] %s27
      %33 = dma.hbm_to_vmem [thread:$0]  %s2, 4096, %s28, [#allocation7], 256, 256, 16
    $region13: #{generator_forward.1} parent=1 // pred_fallthru
      _
    // Predicated region
    $region14: #{generator_forward.1} parent=1 // pred_check
      _
    $region15: #{generator_forward.1} parent=1 // pred_check_branch
      %35 = sbr.rel (0) target = $region17
    $region16: #{generator_forward.1} parent=1 // pred_region
      %s37 = ssub.s32 2048, 2048
      %38 = vsyncadd [#allocation9], %s37
      %s39 = sshll.u32 [#allocation8], 4
      %s40 = int_to_ptr.vmem [resolvable:$true] %s39
      %45 = dma.hbm_to_vmem [thread:$0]  %s3, 2048, %s40, [#allocation9], 128, 128, 8
    $region17: #{generator_forward.1} parent=1 // pred_fallthru
      _
    // Predicated region
    $region18: #{generator_forward.1} parent=1 // pred_check
      _
    $region19: #{generator_forward.1} parent=1 // pred_check_branch
      %47 = sbr.rel (0) target = $region21
    $region20: #{generator_forward.1} parent=1 // pred_region
      %s49 = ssub.s32 64, 64
      %50 = vsyncadd [#allocation9], %s49
      %s52 = sshll.u32 [#allocation10], 4
      %s53 = int_to_ptr.vmem [resolvable:$true] %s52
      %55 = dma.hbm_to_vmem [thread:$0]  %s5, 64, %s53, [#allocation9]
    $region21: #{generator_forward.1} parent=1 // pred_fallthru
      _
    // Predicated region
    $region22: #{generator_forward.1} parent=1 // pred_check
      _
    $region23: #{generator_forward.1} parent=1 // pred_check_branch
      %57 = sbr.rel (0) target = $region25
    $region24: #{generator_forward.1} parent=1 // pred_region
      %s59 = ssub.s32 128, 128
      %60 = vsyncadd [#allocation12], %s59
      %s62 = sshll.u32 [#allocation11], 4
      %s63 = int_to_ptr.vmem [resolvable:$true] %s62
      %65 = dma.hbm_to_vmem [thread:$0]  %s7, 128, %s63, [#allocation12]
    $region25: #{generator_forward.1} parent=1 // pred_fallthru
      _
    // Predicated region
    $region26: #{generator_forward.1} parent=1 // pred_check
      _
    $region27: #{generator_forward.1} parent=1 // pred_check_branch
      %67 = sbr.rel (0) target = $region29
    $region28: #{generator_forward.1} parent=1 // pred_region
      %s69 = ssub.s32 112, 112
      %70 = vsyncadd [#allocation12], %s69
      %s72 = sshll.u32 [#allocation13], 4
      %s73 = int_to_ptr.vmem [resolvable:$true] %s72
      %75 = dma.hbm_to_vmem [thread:$0]  %s9, 112, %s73, [#allocation12]
    $region29: #{generator_forward.1} parent=1 // pred_fallthru
      _
    // Predicated region
    $region30: #{generator_forward.1} parent=1 // pred_check
      _
    $region31: #{generator_forward.1} parent=1 // pred_check_branch
      %77 = sbr.rel (0) target = $region33
    $region32: #{generator_forward.1} parent=1 // pred_region
      %78 = dma.done [#allocation7], 4096
    $region33: #{generator_forward.1} parent=1 // pred_fallthru
      _
    // Predicated region
    $region34: #{generator_forward.1} parent=1 // pred_check
      _
    $region35: #{generator_forward.1} parent=1 // pred_check_branch
      %80 = sbr.rel (0) target = $region37
    $region36: #{generator_forward.1} parent=1 // pred_region
      %81 = dma.done [#allocation9], 2048
    $region37: #{generator_forward.1} parent=1 // pred_fallthru
      _
    // Predicated region
    $region38: #{generator_forward.1} parent=1 // pred_check
      _
    $region39: #{generator_forward.1} parent=1 // pred_check_branch
      %83 = sbr.rel (0) target = $region41
    $region40: #{generator_forward.1} parent=1 // pred_region
      %84 = dma.done [#allocation9], 64
    $region41: #{generator_forward.1} parent=1 // pred_fallthru
      _
    // Predicated region
    $region42: #{generator_forward.1} parent=1 // pred_check
      _
    $region43: #{generator_forward.1} parent=1 // pred_check_branch
      %86 = sbr.rel (0) target = $region45
    $region44: #{generator_forward.1} parent=1 // pred_region
      %87 = dma.done [#allocation12], 128
    $region45: #{generator_forward.1} parent=1 // pred_fallthru
      _
    // Predicated region
    $region46: #{generator_forward.1} parent=1 // pred_check
      _
    $region47: #{generator_forward.1} parent=1 // pred_check_branch
      %89 = sbr.rel (0) target = $region49
    $region48: #{generator_forward.1} parent=1 // pred_region
      %90 = dma.done [#allocation12], 112
    $region49: #{generator_forward.1} parent=1 // pred_fallthru
      _
    %p92 = scmp.eq.s32.totalorder 0, 0
    // Predicated region
    $region50: #{generator_forward.1} parent=1 // pred_check
      %p93 = pneg %p92
    $region51: #{generator_forward.1} parent=1 // pred_check_branch
      %95 = sbr.rel (%p93) target = $region53
    $region52: #{generator_forward.1} parent=1 // pred_region
      #allocation15 [shape = 'u32[9]{0}', space=smem, size = 0x24, scoped, tag = 'DMA stride descriptor']
      #allocation17 [shape = 'u32[9]{0}', space=smem, size = 0x24, scoped, tag = 'DMA stride descriptor']
      #allocation19 [shape = 'u32[9]{0}', space=smem, size = 0x24, scoped, tag = 'DMA stride descriptor']
      %s97 = sshll.u32 1, 14
      %s98 = sxor.u32 4294967295, %s97
      %s100 = sld [smem:[#allocation0]]
      %s101 = sadd.s32 2, %s100
      %s103 = sshll.u32 7, 26
      %s104 = sxor.u32 4294967295, %s103
      %s105 = sand.u32 0, %s104
      %s106 = sshll.u32 %s101, 26
      %s107 = sor.u32 %s105, %s106
      %s108 = sshll.u32 [#allocation2], 4
      %s109 = int_to_ptr.vmem [resolvable:$true] %s108
      %112 = sst [smem:[#allocation15]] 512
      %s113 = scalar_lea.smem [#allocation15], 1
      %114 = sst [smem:[%s113]] 512
      %s115 = scalar_lea.smem [#allocation15], 2
      %116 = sst [smem:[%s115]] 4
      %s117 = scalar_lea.smem [#allocation15], 3
      %118 = sst [smem:[%s117]] 64
      %s119 = scalar_lea.smem [#allocation15], 4
      %120 = sst [smem:[%s119]] 128
      %s121 = scalar_lea.smem [#allocation15], 5
      %122 = sst [smem:[%s121]] 2
      %s123 = scalar_lea.smem [#allocation15], 6
      %124 = sst [smem:[%s123]] 256
      %s125 = scalar_lea.smem [#allocation15], 7
      %126 = sst [smem:[%s125]] 64
      %s127 = scalar_lea.smem [#allocation15], 8
      %128 = sst [smem:[%s127]] 4
      %130 = dma.general %s4, 8192, %s109, [#allocation5], [#allocation14], [#allocation15], %s107, 0
      %s131 = scalar_lea.sflag [#allocation5], 1
      %s133 = sshll.u32 1, 14
      %s134 = sxor.u32 4294967295, %s133
      %s136 = sadd.s32 2, %s100
      %s138 = sshll.u32 7, 26
      %s139 = sxor.u32 4294967295, %s138
      %s140 = sand.u32 0, %s139
      %s141 = sshll.u32 %s136, 26
      %s142 = sor.u32 %s140, %s141
      %s143 = sshll.u32 [#allocation3], 4
      %s144 = int_to_ptr.vmem [resolvable:$true] %s143
      %147 = sst [smem:[#allocation17]] 1024
      %s148 = scalar_lea.smem [#allocation17], 1
      %149 = sst [smem:[%s148]] 1024
      %s150 = scalar_lea.smem [#allocation17], 2
      %151 = sst [smem:[%s150]] 8
      %s152 = scalar_lea.smem [#allocation17], 3
      %153 = sst [smem:[%s152]] 64
      %s154 = scalar_lea.smem [#allocation17], 4
      %155 = sst [smem:[%s154]] 128
      %s156 = scalar_lea.smem [#allocation17], 5
      %157 = sst [smem:[%s156]] 2
      %s158 = scalar_lea.smem [#allocation17], 6
      %159 = sst [smem:[%s158]] 512
      %s160 = scalar_lea.smem [#allocation17], 7
      %161 = sst [smem:[%s160]] 64
      %s162 = scalar_lea.smem [#allocation17], 8
      %163 = sst [smem:[%s162]] 4
      %165 = dma.general %s6, 32768, %s144, %s131, [#allocation16], [#allocation17], %s142, 0
      %s166 = scalar_lea.sflag [#allocation5], 2
      %s168 = sshll.u32 1, 14
      %s169 = sxor.u32 4294967295, %s168
      %s171 = sadd.s32 2, %s100
      %s173 = sshll.u32 7, 26
      %s174 = sxor.u32 4294967295, %s173
      %s175 = sand.u32 0, %s174
      %s176 = sshll.u32 %s171, 26
      %s177 = sor.u32 %s175, %s176
      %s178 = sshll.u32 [#allocation4], 4
      %s179 = int_to_ptr.vmem [resolvable:$true] %s178
      %182 = sst [smem:[#allocation19]] 896
      %s183 = scalar_lea.smem [#allocation19], 1
      %184 = sst [smem:[%s183]] 896
      %s185 = scalar_lea.smem [#allocation19], 2
      %186 = sst [smem:[%s185]] 7
      %s187 = scalar_lea.smem [#allocation19], 3
      %188 = sst [smem:[%s187]] 64
      %s189 = scalar_lea.smem [#allocation19], 4
      %190 = sst [smem:[%s189]] 128
      %s191 = scalar_lea.smem [#allocation19], 5
      %192 = sst [smem:[%s191]] 2
      %s193 = scalar_lea.smem [#allocation19], 6
      %194 = sst [smem:[%s193]] 448
      %s195 = scalar_lea.smem [#allocation19], 7
      %196 = sst [smem:[%s195]] 64
      %s197 = scalar_lea.smem [#allocation19], 8
      %198 = sst [smem:[%s197]] 4
      %200 = dma.general %s8, 57344, %s179, %s166, [#allocation18], [#allocation19], %s177, 0
    $region53: #{generator_forward.1} parent=1 // pred_fallthru
      _
    %v201 = vld [vmem:[%s1] sm:$0xff]
    %v202 = vld [vmem:[%s1 + $0x8] sm:$0xff]
    %v203 = vlaneseq
    %v204 = vand.u32 %v203, 127
    %205 = vset.pattern.permute.xlu0 0
    %206 = vperm.xlu0 %205, %v201
    %v207 = vpop.permute.xlu0 %206
    %208 = vset.pattern.permute.xlu0 0
    %209 = vperm.xlu0 %208, %v202
    %v210 = vpop.permute.xlu0 %209
    %vm211 = vcmp.eq.s32.totalorder %v207, %v204
    %vm212 = vcmp.eq.s32.totalorder %v210, %v204
    %v213 = vsel %vm211, 1, 0
    %v214 = vsel %vm212, 1, 0
    %v215 = vcvt.s32.f32 %v213
    %v216 = vcvt.s32.f32 %v214
    %v217 = vld [vmem:[#allocation6] sm:$0xff]
    %v218 = vld [vmem:[#allocation6 + $0x8] sm:$0xff]
    %v219 = vld [vmem:[#allocation6 + $0x10] sm:$0xff]
    %v220 = vld [vmem:[#allocation6 + $0x18] sm:$0xff]
    %v221 = vld [vmem:[#allocation6 + $0x20] sm:$0xff]
    %v222 = vld [vmem:[#allocation6 + $0x28] sm:$0xff]
    %v223 = vld [vmem:[#allocation6 + $0x30] sm:$0xff]
    %v224 = vld [vmem:[#allocation6 + $0x38] sm:$0xff]
    %v225 = vld [vmem:[#allocation6 + $0x40] sm:$0xff]
    %v226 = vld [vmem:[#allocation6 + $0x48] sm:$0xff]
    %v227 = vld [vmem:[#allocation6 + $0x50] sm:$0xff]
    %v228 = vld [vmem:[#allocation6 + $0x58] sm:$0xff]
    %v229 = vld [vmem:[#allocation6 + $0x60] sm:$0xff]
    %v230 = vld [vmem:[#allocation6 + $0x68] sm:$0xff]
    %v231 = vld [vmem:[#allocation6 + $0x70] sm:$0xff]
    %v232 = vld [vmem:[#allocation6 + $0x78] sm:$0xff]
    %v233 = vld [vmem:[#allocation6 + $0x80] sm:$0xff]
    %v234 = vld [vmem:[#allocation6 + $0x88] sm:$0xff]
    %v235 = vld [vmem:[#allocation6 + $0x90] sm:$0xff]
    %v236 = vld [vmem:[#allocation6 + $0x98] sm:$0xff]
    %v237 = vld [vmem:[#allocation6 + $0xa0] sm:$0xff]
    %v238 = vld [vmem:[#allocation6 + $0xa8] sm:$0xff]
    %v239 = vld [vmem:[#allocation6 + $0xb0] sm:$0xff]
    %v240 = vld [vmem:[#allocation6 + $0xb8] sm:$0xff]
    %v241 = vld [vmem:[#allocation6 + $0xc0] sm:$0xff]
    %v242 = vld [vmem:[#allocation6 + $0xc8] sm:$0xff]
    %v243 = vld [vmem:[#allocation6 + $0xd0] sm:$0xff]
    %v244 = vld [vmem:[#allocation6 + $0xd8] sm:$0xff]
    %v245 = vld [vmem:[#allocation6 + $0xe0] sm:$0xff]
    %v246 = vld [vmem:[#allocation6 + $0xe8] sm:$0xff]
    %v247 = vld [vmem:[#allocation6 + $0xf0] sm:$0xff]
    %v248 = vld [vmem:[#allocation6 + $0xf8] sm:$0xff]
    %249 = vmatprep.subr.mxu0 %v218
    %250 = vmatpush1.msra.mxu0 %v217
    %251 = vmatprep.subr.mxu0 %v220
    %252 = vmatpush1.msra.mxu0 %v219
    %253 = vmatprep.subr.mxu0 %v222
    %254 = vmatpush1.msra.mxu0 %v221
    %255 = vmatprep.subr.mxu0 %v224
    %256 = vmatpush1.msra.mxu0 %v223
    %257 = vmatprep.subr.mxu0 %v226
    %258 = vmatpush1.msra.mxu0 %v225
    %259 = vmatprep.subr.mxu0 %v228
    %260 = vmatpush1.msra.mxu0 %v227
    %261 = vmatprep.subr.mxu0 %v230
    %262 = vmatpush1.msra.mxu0 %v229
    %263 = vmatprep.subr.mxu0 %v232
    %264 = vmatpush1.msra.mxu0 %v231
    %265 = vmatprep.subr.mxu0 %v234
    %266 = vmatpush1.msra.mxu0 %v233
    %267 = vmatprep.subr.mxu0 %v236
    %268 = vmatpush1.msra.mxu0 %v235
    %269 = vmatprep.subr.mxu0 %v238
    %270 = vmatpush1.msra.mxu0 %v237
    %271 = vmatprep.subr.mxu0 %v240
    %272 = vmatpush1.msra.mxu0 %v239
    %273 = vmatprep.subr.mxu0 %v242
    %274 = vmatpush1.msra.mxu0 %v241
    %275 = vmatprep.subr.mxu0 %v244
    %276 = vmatpush1.msra.mxu0 %v243
    %277 = vmatprep.subr.mxu0 %v246
    %278 = vmatpush1.msra.mxu0 %v245
    %279 = vmatprep.subr.mxu0 %v248
    %280 = vmatpush1.msra.mxu0 %v247
    %281 = vmatprep.subr.mxu0 0.0
    %282 = vmatpush1.msra.mxu0 0.0
    %283 = vmatprep.subr.mxu0 0.0
    %284 = vmatpush1.msra.mxu0 0.0
    %285 = vmatprep.subr.mxu0 0.0
    %286 = vmatpush1.msra.mxu0 0.0
    %287 = vmatprep.subr.mxu0 0.0
    %288 = vmatpush1.msra.mxu0 0.0
    %289 = vmatprep.subr.mxu0 0.0
    %290 = vmatpush1.msra.mxu0 0.0
    %291 = vmatprep.subr.mxu0 0.0
    %292 = vmatpush1.msra.mxu0 0.0
    %293 = vmatprep.subr.mxu0 0.0
    %294 = vmatpush1.msra.mxu0 0.0
    %295 = vmatprep.subr.mxu0 0.0
    %296 = vmatpush1.msra.mxu0 0.0
    %297 = vmatprep.subr.mxu0 0.0
    %298 = vmatpush1.msra.mxu0 0.0
    %299 = vmatprep.subr.mxu0 0.0
    %300 = vmatpush1.msra.mxu0 0.0
    %301 = vmatprep.subr.mxu0 0.0
    %302 = vmatpush1.msra.mxu0 0.0
    %303 = vmatprep.subr.mxu0 0.0
    %304 = vmatpush1.msra.mxu0 0.0
    %305 = vmatprep.subr.mxu0 0.0
    %306 = vmatpush1.msra.mxu0 0.0
    %307 = vmatprep.subr.mxu0 0.0
    %308 = vmatpush1.msra.mxu0 0.0
    %309 = vmatprep.subr.mxu0 0.0
    %310 = vmatpush1.msra.mxu0 0.0
    %311 = vmatprep.subr.mxu0 0.0
    %312 = vmatpush1.msra.mxu0 0.0
    %313 = vmatprep.mubr.f32.mxu0 0.0
    %314 = vmatmul.mubr.f32.gmra.mrb[0].mxu0 %v215
    %v315 = vpop.f32.mrb[0].mxu0
    %v316 = vadd.f32 0.0, %v315
    %v317 = vpop.f32.mrb[0].mxu0
    %v318 = vadd.f32 0.0, %v317
    %319 = vmatprep.mubr.f32.mxu0 0.0
    %320 = vmatmul.mubr.f32.gmra.mrb[0].mxu0 %v216
    %v321 = vpop.f32.mrb[0].mxu0
    %v322 = vadd.f32 0.0, %v321
    %v323 = vpop.f32.mrb[0].mxu0
    %v324 = vadd.f32 0.0, %v323
    %325 = vdwg.mxu0
    %v326 = vld [vmem:[%s0] sm:$0xff]
    %v327 = vld [vmem:[%s0 + $0x8] sm:$0xff]
    %v328 = vpack.c.bf16 %v327, %v326
    %v329 = vld [vmem:[#allocation8] sm:$0xff]
    %v330 = vld [vmem:[#allocation8 + $0x8] sm:$0xff]
    %v331 = vld [vmem:[#allocation8 + $0x10] sm:$0xff]
    %v332 = vld [vmem:[#allocation8 + $0x18] sm:$0xff]
    %v333 = vld [vmem:[#allocation8 + $0x20] sm:$0xff]
    %v334 = vld [vmem:[#allocation8 + $0x28] sm:$0xff]
    %v335 = vld [vmem:[#allocation8 + $0x30] sm:$0xff]
    %v336 = vld [vmem:[#allocation8 + $0x38] sm:$0xff]
    %v337 = vld [vmem:[#allocation8 + $0x40] sm:$0xff]
    %v338 = vld [vmem:[#allocation8 + $0x48] sm:$0xff]
    %v339 = vld [vmem:[#allocation8 + $0x50] sm:$0xff]
    %v340 = vld [vmem:[#allocation8 + $0x58] sm:$0xff]
    %v341 = vld [vmem:[#allocation8 + $0x60] sm:$0xff]
    %v342 = vld [vmem:[#allocation8 + $0x68] sm:$0xff]
    %v343 = vld [vmem:[#allocation8 + $0x70] sm:$0xff]
    %v344 = vld [vmem:[#allocation8 + $0x78] sm:$0xff]
    %v361 = vunpack.c.l.b16 %v329
    %v362 = vunpack.c.h.b16 %v329
    %v363 = vunpack.c.l.b16 %v330
    %v364 = vunpack.c.h.b16 %v330
    %v365 = vunpack.c.l.b16 %v331
    %v366 = vunpack.c.h.b16 %v331
    %v367 = vunpack.c.l.b16 %v332
    %v368 = vunpack.c.h.b16 %v332
    %v369 = vunpack.c.l.b16 %v333
    %v370 = vunpack.c.h.b16 %v333
    %v371 = vunpack.c.l.b16 %v334
    %v372 = vunpack.c.h.b16 %v334
    %v373 = vunpack.c.l.b16 %v335
    %v374 = vunpack.c.h.b16 %v335
    %v375 = vunpack.c.l.b16 %v336
    %v376 = vunpack.c.h.b16 %v336
    %v377 = vunpack.c.l.b16 %v337
    %v378 = vunpack.c.h.b16 %v337
    %v379 = vunpack.c.l.b16 %v338
    %v380 = vunpack.c.h.b16 %v338
    %v381 = vunpack.c.l.b16 %v339
    %v382 = vunpack.c.h.b16 %v339
    %v383 = vunpack.c.l.b16 %v340
    %v384 = vunpack.c.h.b16 %v340
    %v385 = vunpack.c.l.b16 %v341
    %v386 = vunpack.c.h.b16 %v341
    %v387 = vunpack.c.l.b16 %v342
    %v388 = vunpack.c.h.b16 %v342
    %v389 = vunpack.c.l.b16 %v343
    %v390 = vunpack.c.h.b16 %v343
    %v391 = vunpack.c.l.b16 %v344
    %v392 = vunpack.c.h.b16 %v344
    %v393 = vpack.c.b16 %v363, %v361
    %v394 = vpack.c.b16 %v364, %v362
    %v395 = vpack.c.b16 %v367, %v365
    %v396 = vpack.c.b16 %v368, %v366
    %v397 = vpack.c.b16 %v371, %v369
    %v398 = vpack.c.b16 %v372, %v370
    %v399 = vpack.c.b16 %v375, %v373
    %v400 = vpack.c.b16 %v376, %v374
    %v401 = vpack.c.b16 %v379, %v377
    %v402 = vpack.c.b16 %v380, %v378
    %v403 = vpack.c.b16 %v383, %v381
    %v404 = vpack.c.b16 %v384, %v382
    %v405 = vpack.c.b16 %v387, %v385
    %v406 = vpack.c.b16 %v388, %v386
    %v407 = vpack.c.b16 %v391, %v389
    %v408 = vpack.c.b16 %v392, %v390
    %425 = vmatprep.subr.bf16.mxu0 %v394
    %426 = vmatpush1.bf16.msra.mxu0 %v393
    %427 = vmatprep.subr.bf16.mxu0 %v396
    %428 = vmatpush1.bf16.msra.mxu0 %v395
    %429 = vmatprep.subr.bf16.mxu0 %v398
    %430 = vmatpush1.bf16.msra.mxu0 %v397
    %431 = vmatprep.subr.bf16.mxu0 %v400
    %432 = vmatpush1.bf16.msra.mxu0 %v399
    %433 = vmatprep.subr.bf16.mxu0 %v402
    %434 = vmatpush1.bf16.msra.mxu0 %v401
    %435 = vmatprep.subr.bf16.mxu0 %v404
    %436 = vmatpush1.bf16.msra.mxu0 %v403
    %437 = vmatprep.subr.bf16.mxu0 %v406
    %438 = vmatpush1.bf16.msra.mxu0 %v405
    %439 = vmatprep.subr.bf16.mxu0 %v408
    %440 = vmatpush1.bf16.msra.mxu0 %v407
    %441 = vmatprep.subr.bf16.mxu0 0
    %442 = vmatpush1.bf16.msra.mxu0 0
    %443 = vmatprep.subr.bf16.mxu0 0
    %444 = vmatpush1.bf16.msra.mxu0 0
    %445 = vmatprep.subr.bf16.mxu0 0
    %446 = vmatpush1.bf16.msra.mxu0 0
    %447 = vmatprep.subr.bf16.mxu0 0
    %448 = vmatpush1.bf16.msra.mxu0 0
    %449 = vmatprep.subr.bf16.mxu0 0
    %450 = vmatpush1.bf16.msra.mxu0 0
    %451 = vmatprep.subr.bf16.mxu0 0
    %452 = vmatpush1.bf16.msra.mxu0 0
    %453 = vmatprep.subr.bf16.mxu0 0
    %454 = vmatpush1.bf16.msra.mxu0 0
    %455 = vmatprep.subr.bf16.mxu0 0
    %456 = vmatpush1.bf16.msra.mxu0 0
    %457 = vmatprep.mubr.bf16.mxu0 0
    %458 = vmatmul.mubr.bf16.gmra.mrb[0].mxu0 %v328
    %v459 = vpop.f32.mrb[0].mxu0
    %v460 = vadd.f32 %v316, %v459
    %v461 = vpop.f32.mrb[0].mxu0
    %v462 = vadd.f32 %v318, %v461
    %v463 = vpop.f32.mrb[0].mxu0
    %v464 = vadd.f32 %v322, %v463
    %v465 = vpop.f32.mrb[0].mxu0
    %v466 = vadd.f32 %v324, %v465
    %467 = vdwg.mxu0
    %v468 = vmul.f32 %v460, 0.2
    %v469 = vmul.f32 %v462, 0.2
    %v470 = vmul.f32 %v464, 0.2
    %v471 = vmul.f32 %v466, 0.2
    %v472 = vmax.f32 %v460, %v468
    %v473 = vmax.f32 %v462, %v469
    %v474 = vmax.f32 %v464, %v470
    %v475 = vmax.f32 %v466, %v471
    // Predicated region
    $region54: #{generator_forward.1} parent=1 // pred_check
      %p476 = pneg %p92
    $region55: #{generator_forward.1} parent=1 // pred_check_branch
      %478 = sbr.rel (%p476) target = $region57
    $region56: #{generator_forward.1} parent=1 // pred_region
      %s479 = smul.u32 4, 32
      %s480 = smul.u32 %s479, 4
      %s481 = sshll.u32 %s480, 4
      %482 = dma.done [#allocation5], %s481
    $region57: #{generator_forward.1} parent=1 // pred_fallthru
      _
    %v483 = vpack.c.bf16 %v474, %v472
    %v484 = vpack.c.bf16 %v475, %v473
    %v485 = vld [vmem:[#allocation2] sm:$0xff]
    %v486 = vld [vmem:[#allocation2 + $0x8] sm:$0xff]
    %v487 = vld [vmem:[#allocation2 + $0x10] sm:$0xff]
    %v488 = vld [vmem:[#allocation2 + $0x18] sm:$0xff]
    %v489 = vld [vmem:[#allocation2 + $0x20] sm:$0xff]
    %v490 = vld [vmem:[#allocation2 + $0x28] sm:$0xff]
    %v491 = vld [vmem:[#allocation2 + $0x30] sm:$0xff]
    %v492 = vld [vmem:[#allocation2 + $0x38] sm:$0xff]
    %v493 = vld [vmem:[#allocation2 + $0x40] sm:$0xff]
    %v494 = vld [vmem:[#allocation2 + $0x48] sm:$0xff]
    %v495 = vld [vmem:[#allocation2 + $0x50] sm:$0xff]
    %v496 = vld [vmem:[#allocation2 + $0x58] sm:$0xff]
    %v497 = vld [vmem:[#allocation2 + $0x60] sm:$0xff]
    %v498 = vld [vmem:[#allocation2 + $0x68] sm:$0xff]
    %v499 = vld [vmem:[#allocation2 + $0x70] sm:$0xff]
    %v500 = vld [vmem:[#allocation2 + $0x78] sm:$0xff]
    %v501 = vld [vmem:[#allocation2 + $0x80] sm:$0xff]
    %v502 = vld [vmem:[#allocation2 + $0x88] sm:$0xff]
    %v503 = vld [vmem:[#allocation2 + $0x90] sm:$0xff]
    %v504 = vld [vmem:[#allocation2 + $0x98] sm:$0xff]
    %v505 = vld [vmem:[#allocation2 + $0xa0] sm:$0xff]
    %v506 = vld [vmem:[#allocation2 + $0xa8] sm:$0xff]
    %v507 = vld [vmem:[#allocation2 + $0xb0] sm:$0xff]
    %v508 = vld [vmem:[#allocation2 + $0xb8] sm:$0xff]
    %v509 = vld [vmem:[#allocation2 + $0xc0] sm:$0xff]
    %v510 = vld [vmem:[#allocation2 + $0xc8] sm:$0xff]
    %v511 = vld [vmem:[#allocation2 + $0xd0] sm:$0xff]
    %v512 = vld [vmem:[#allocation2 + $0xd8] sm:$0xff]
    %v513 = vld [vmem:[#allocation2 + $0xe0] sm:$0xff]
    %v514 = vld [vmem:[#allocation2 + $0xe8] sm:$0xff]
    %v515 = vld [vmem:[#allocation2 + $0xf0] sm:$0xff]
    %v516 = vld [vmem:[#allocation2 + $0xf8] sm:$0xff]
    %v517 = vld [vmem:[#allocation2 + $0x100] sm:$0xff]
    %v518 = vld [vmem:[#allocation2 + $0x108] sm:$0xff]
    %v519 = vld [vmem:[#allocation2 + $0x110] sm:$0xff]
    %v520 = vld [vmem:[#allocation2 + $0x118] sm:$0xff]
    %v521 = vld [vmem:[#allocation2 + $0x120] sm:$0xff]
    %v522 = vld [vmem:[#allocation2 + $0x128] sm:$0xff]
    %v523 = vld [vmem:[#allocation2 + $0x130] sm:$0xff]
    %v524 = vld [vmem:[#allocation2 + $0x138] sm:$0xff]
    %v525 = vld [vmem:[#allocation2 + $0x140] sm:$0xff]
    %v526 = vld [vmem:[#allocation2 + $0x148] sm:$0xff]
    %v527 = vld [vmem:[#allocation2 + $0x150] sm:$0xff]
    %v528 = vld [vmem:[#allocation2 + $0x158] sm:$0xff]
    %v529 = vld [vmem:[#allocation2 + $0x160] sm:$0xff]
    %v530 = vld [vmem:[#allocation2 + $0x168] sm:$0xff]
    %v531 = vld [vmem:[#allocation2 + $0x170] sm:$0xff]
    %v532 = vld [vmem:[#allocation2 + $0x178] sm:$0xff]
    %v533 = vld [vmem:[#allocation2 + $0x180] sm:$0xff]
    %v534 = vld [vmem:[#allocation2 + $0x188] sm:$0xff]
    %v535 = vld [vmem:[#allocation2 + $0x190] sm:$0xff]
    %v536 = vld [vmem:[#allocation2 + $0x198] sm:$0xff]
    %v537 = vld [vmem:[#allocation2 + $0x1a0] sm:$0xff]
    %v538 = vld [vmem:[#allocation2 + $0x1a8] sm:$0xff]
    %v539 = vld [vmem:[#allocation2 + $0x1b0] sm:$0xff]
    %v540 = vld [vmem:[#allocation2 + $0x1b8] sm:$0xff]
    %v541 = vld [vmem:[#allocation2 + $0x1c0] sm:$0xff]
    %v542 = vld [vmem:[#allocation2 + $0x1c8] sm:$0xff]
    %v543 = vld [vmem:[#allocation2 + $0x1d0] sm:$0xff]
    %v544 = vld [vmem:[#allocation2 + $0x1d8] sm:$0xff]
    %v545 = vld [vmem:[#allocation2 + $0x1e0] sm:$0xff]
    %v546 = vld [vmem:[#allocation2 + $0x1e8] sm:$0xff]
    %v547 = vld [vmem:[#allocation2 + $0x1f0] sm:$0xff]
    %v548 = vld [vmem:[#allocation2 + $0x1f8] sm:$0xff]
    %v549 = vld [vmem:[#allocation10] sm:$0xf]
    %v551 = vlaneseq
    %v552 = vshrl.u32 %v551, 7
    %v553 = vsub.s32 0, %v552
    %v554 = vrot.slane %v549, %v553
    %v555 = vlaneseq
    %v556 = vshrl.u32 %v555, 7
    %v557 = vsub.s32 1, %v556
    %v558 = vrot.slane %v549, %v557
    %v559 = vlaneseq
    %v560 = vshrl.u32 %v559, 7
    %v561 = vsub.s32 2, %v560
    %v562 = vrot.slane %v549, %v561
    %v563 = vlaneseq
    %v564 = vshrl.u32 %v563, 7
    %v565 = vsub.s32 3, %v564
    %v566 = vrot.slane %v549, %v565
    %571 = vmatprep.subr.bf16.mxu0 %v486
    %572 = vmatpush1.bf16.msra.mxu0 %v485
    %573 = vmatprep.subr.bf16.mxu0 %v490
    %574 = vmatpush1.bf16.msra.mxu0 %v489
    %575 = vmatprep.subr.bf16.mxu0 %v494
    %576 = vmatpush1.bf16.msra.mxu0 %v493
    %577 = vmatprep.subr.bf16.mxu0 %v498
    %578 = vmatpush1.bf16.msra.mxu0 %v497
    %579 = vmatprep.subr.bf16.mxu0 %v502
    %580 = vmatpush1.bf16.msra.mxu0 %v501
    %581 = vmatprep.subr.bf16.mxu0 %v506
    %582 = vmatpush1.bf16.msra.mxu0 %v505
    %583 = vmatprep.subr.bf16.mxu0 %v510
    %584 = vmatpush1.bf16.msra.mxu0 %v509
    %585 = vmatprep.subr.bf16.mxu0 %v514
    %586 = vmatpush1.bf16.msra.mxu0 %v513
    %587 = vmatprep.subr.bf16.mxu0 %v518
    %588 = vmatpush1.bf16.msra.mxu0 %v517
    %589 = vmatprep.subr.bf16.mxu0 %v522
    %590 = vmatpush1.bf16.msra.mxu0 %v521
    %591 = vmatprep.subr.bf16.mxu0 %v526
    %592 = vmatpush1.bf16.msra.mxu0 %v525
    %593 = vmatprep.subr.bf16.mxu0 %v530
    %594 = vmatpush1.bf16.msra.mxu0 %v529
    %595 = vmatprep.subr.bf16.mxu0 %v534
    %596 = vmatpush1.bf16.msra.mxu0 %v533
    %597 = vmatprep.subr.bf16.mxu0 %v538
    %598 = vmatpush1.bf16.msra.mxu0 %v537
    %599 = vmatprep.subr.bf16.mxu0 %v542
    %600 = vmatpush1.bf16.msra.mxu0 %v541
    %601 = vmatprep.subr.bf16.mxu0 %v546
    %602 = vmatpush1.bf16.msra.mxu0 %v545
    %603 = vmatprep.mubr.bf16.mxu0 %v484
    %604 = vmatmul.mubr.bf16.gmra.mrb[0].mxu0 %v483
    %v605 = vpop.f32.mrb[0].mxu0
    %v606 = vadd.f32 %v554, %v605
    %v607 = vpop.f32.mrb[0].mxu0
    %v608 = vadd.f32 %v558, %v607
    %v609 = vpop.f32.mrb[0].mxu0
    %v610 = vadd.f32 %v554, %v609
    %v611 = vpop.f32.mrb[0].mxu0
    %v612 = vadd.f32 %v558, %v611
    %613 = vdwg.mxu0
    %614 = vmatprep.subr.bf16.mxu0 %v488
    %615 = vmatpush1.bf16.msra.mxu0 %v487
    %616 = vmatprep.subr.bf16.mxu0 %v492
    %617 = vmatpush1.bf16.msra.mxu0 %v491
    %618 = vmatprep.subr.bf16.mxu0 %v496
    %619 = vmatpush1.bf16.msra.mxu0 %v495
    %620 = vmatprep.subr.bf16.mxu0 %v500
    %621 = vmatpush1.bf16.msra.mxu0 %v499
    %622 = vmatprep.subr.bf16.mxu0 %v504
    %623 = vmatpush1.bf16.msra.mxu0 %v503
    %624 = vmatprep.subr.bf16.mxu0 %v508
    %625 = vmatpush1.bf16.msra.mxu0 %v507
    %626 = vmatprep.subr.bf16.mxu0 %v512
    %627 = vmatpush1.bf16.msra.mxu0 %v511
    %628 = vmatprep.subr.bf16.mxu0 %v516
    %629 = vmatpush1.bf16.msra.mxu0 %v515
    %630 = vmatprep.subr.bf16.mxu0 %v520
    %631 = vmatpush1.bf16.msra.mxu0 %v519
    %632 = vmatprep.subr.bf16.mxu0 %v524
    %633 = vmatpush1.bf16.msra.mxu0 %v523
    %634 = vmatprep.subr.bf16.mxu0 %v528
    %635 = vmatpush1.bf16.msra.mxu0 %v527
    %636 = vmatprep.subr.bf16.mxu0 %v532
    %637 = vmatpush1.bf16.msra.mxu0 %v531
    %638 = vmatprep.subr.bf16.mxu0 %v536
    %639 = vmatpush1.bf16.msra.mxu0 %v535
    %640 = vmatprep.subr.bf16.mxu0 %v540
    %641 = vmatpush1.bf16.msra.mxu0 %v539
    %642 = vmatprep.subr.bf16.mxu0 %v544
    %643 = vmatpush1.bf16.msra.mxu0 %v543
    %644 = vmatprep.subr.bf16.mxu0 %v548
    %645 = vmatpush1.bf16.msra.mxu0 %v547
    %646 = vmatprep.mubr.bf16.mxu0 %v484
    %647 = vmatmul.mubr.bf16.gmra.mrb[0].mxu0 %v483
    %v648 = vpop.f32.mrb[0].mxu0
    %v649 = vadd.f32 %v562, %v648
    %v650 = vpop.f32.mrb[0].mxu0
    %v651 = vadd.f32 %v566, %v650
    %v652 = vpop.f32.mrb[0].mxu0
    %v653 = vadd.f32 %v562, %v652
    %v654 = vpop.f32.mrb[0].mxu0
    %v655 = vadd.f32 %v566, %v654
    %656 = vdwg.mxu0
    %v657 = vmul.f32 %v606, 0.2
    %v658 = vmul.f32 %v608, 0.2
    %v659 = vmul.f32 %v649, 0.2
    %v660 = vmul.f32 %v651, 0.2
    %v661 = vmul.f32 %v610, 0.2
    %v662 = vmul.f32 %v612, 0.2
    %v663 = vmul.f32 %v653, 0.2
    %v664 = vmul.f32 %v655, 0.2
    %v665 = vmax.f32 %v606, %v657
    %v666 = vmax.f32 %v608, %v658
    %v667 = vmax.f32 %v649, %v659
    %v668 = vmax.f32 %v651, %v660
    %v669 = vmax.f32 %v610, %v661
    %v670 = vmax.f32 %v612, %v662
    %v671 = vmax.f32 %v653, %v663
    %v672 = vmax.f32 %v655, %v664
    // Predicated region
    $region58: #{generator_forward.1} parent=1 // pred_check
      %p673 = pneg %p92
    $region59: #{generator_forward.1} parent=1 // pred_check_branch
      %675 = sbr.rel (%p673) target = $region61
    $region60: #{generator_forward.1} parent=1 // pred_region
      %s676 = scalar_lea.sflag [#allocation5], 1
      %s677 = smul.u32 4, 64
      %s678 = smul.u32 %s677, 8
      %s679 = sshll.u32 %s678, 4
      %680 = dma.done %s676, %s679
    $region61: #{generator_forward.1} parent=1 // pred_fallthru
      _
    %v681 = vpack.c.bf16 %v669, %v665
    %v682 = vpack.c.bf16 %v670, %v666
    %v683 = vpack.c.bf16 %v671, %v667
    %v684 = vpack.c.bf16 %v672, %v668
    %v685 = vld [vmem:[#allocation3] sm:$0xff]
    %v686 = vld [vmem:[#allocation3 + $0x8] sm:$0xff]
    %v687 = vld [vmem:[#allocation3 + $0x10] sm:$0xff]
    %v688 = vld [vmem:[#allocation3 + $0x18] sm:$0xff]
    %v689 = vld [vmem:[#allocation3 + $0x20] sm:$0xff]
    %v690 = vld [vmem:[#allocation3 + $0x28] sm:$0xff]
    %v691 = vld [vmem:[#allocation3 + $0x30] sm:$0xff]
    %v692 = vld [vmem:[#allocation3 + $0x38] sm:$0xff]
    %v693 = vld [vmem:[#allocation3 + $0x40] sm:$0xff]
    %v694 = vld [vmem:[#allocation3 + $0x48] sm:$0xff]
    %v695 = vld [vmem:[#allocation3 + $0x50] sm:$0xff]
    %v696 = vld [vmem:[#allocation3 + $0x58] sm:$0xff]
    %v697 = vld [vmem:[#allocation3 + $0x60] sm:$0xff]
    %v698 = vld [vmem:[#allocation3 + $0x68] sm:$0xff]
    %v699 = vld [vmem:[#allocation3 + $0x70] sm:$0xff]
    %v700 = vld [vmem:[#allocation3 + $0x78] sm:$0xff]
    %v701 = vld [vmem:[#allocation3 + $0x80] sm:$0xff]
    %v702 = vld [vmem:[#allocation3 + $0x88] sm:$0xff]
    %v703 = vld [vmem:[#allocation3 + $0x90] sm:$0xff]
    %v704 = vld [vmem:[#allocation3 + $0x98] sm:$0xff]
    %v705 = vld [vmem:[#allocation3 + $0xa0] sm:$0xff]
    %v706 = vld [vmem:[#allocation3 + $0xa8] sm:$0xff]
    %v707 = vld [vmem:[#allocation3 + $0xb0] sm:$0xff]
    %v708 = vld [vmem:[#allocation3 + $0xb8] sm:$0xff]
    %v709 = vld [vmem:[#allocation3 + $0xc0] sm:$0xff]
    %v710 = vld [vmem:[#allocation3 + $0xc8] sm:$0xff]
    %v711 = vld [vmem:[#allocation3 + $0xd0] sm:$0xff]
    %v712 = vld [vmem:[#allocation3 + $0xd8] sm:$0xff]
    %v713 = vld [vmem:[#allocation3 + $0xe0] sm:$0xff]
    %v714 = vld [vmem:[#allocation3 + $0xe8] sm:$0xff]
    %v715 = vld [vmem:[#allocation3 + $0xf0] sm:$0xff]
    %v716 = vld [vmem:[#allocation3 + $0xf8] sm:$0xff]
    %v717 = vld [vmem:[#allocation3 + $0x100] sm:$0xff]
    %v718 = vld [vmem:[#allocation3 + $0x108] sm:$0xff]
    %v719 = vld [vmem:[#allocation3 + $0x110] sm:$0xff]
    %v720 = vld [vmem:[#allocation3 + $0x118] sm:$0xff]
    %v721 = vld [vmem:[#allocation3 + $0x120] sm:$0xff]
    %v722 = vld [vmem:[#allocation3 + $0x128] sm:$0xff]
    %v723 = vld [vmem:[#allocation3 + $0x130] sm:$0xff]
    %v724 = vld [vmem:[#allocation3 + $0x138] sm:$0xff]
    %v725 = vld [vmem:[#allocation3 + $0x140] sm:$0xff]
    %v726 = vld [vmem:[#allocation3 + $0x148] sm:$0xff]
    %v727 = vld [vmem:[#allocation3 + $0x150] sm:$0xff]
    %v728 = vld [vmem:[#allocation3 + $0x158] sm:$0xff]
    %v729 = vld [vmem:[#allocation3 + $0x160] sm:$0xff]
    %v730 = vld [vmem:[#allocation3 + $0x168] sm:$0xff]
    %v731 = vld [vmem:[#allocation3 + $0x170] sm:$0xff]
    %v732 = vld [vmem:[#allocation3 + $0x178] sm:$0xff]
    %v733 = vld [vmem:[#allocation3 + $0x180] sm:$0xff]
    %v734 = vld [vmem:[#allocation3 + $0x188] sm:$0xff]
    %v735 = vld [vmem:[#allocation3 + $0x190] sm:$0xff]
    %v736 = vld [vmem:[#allocation3 + $0x198] sm:$0xff]
    %v737 = vld [vmem:[#allocation3 + $0x1a0] sm:$0xff]
    %v738 = vld [vmem:[#allocation3 + $0x1a8] sm:$0xff]
    %v739 = vld [vmem:[#allocation3 + $0x1b0] sm:$0xff]
    %v740 = vld [vmem:[#allocation3 + $0x1b8] sm:$0xff]
    %v741 = vld [vmem:[#allocation3 + $0x1c0] sm:$0xff]
    %v742 = vld [vmem:[#allocation3 + $0x1c8] sm:$0xff]
    %v743 = vld [vmem:[#allocation3 + $0x1d0] sm:$0xff]
    %v744 = vld [vmem:[#allocation3 + $0x1d8] sm:$0xff]
    %v745 = vld [vmem:[#allocation3 + $0x1e0] sm:$0xff]
    %v746 = vld [vmem:[#allocation3 + $0x1e8] sm:$0xff]
    %v747 = vld [vmem:[#allocation3 + $0x1f0] sm:$0xff]
    %v748 = vld [vmem:[#allocation3 + $0x1f8] sm:$0xff]
    %v749 = vld [vmem:[#allocation3 + $0x200] sm:$0xff]
    %v750 = vld [vmem:[#allocation3 + $0x208] sm:$0xff]
    %v751 = vld [vmem:[#allocation3 + $0x210] sm:$0xff]
    %v752 = vld [vmem:[#allocation3 + $0x218] sm:$0xff]
    %v753 = vld [vmem:[#allocation3 + $0x220] sm:$0xff]
    %v754 = vld [vmem:[#allocation3 + $0x228] sm:$0xff]
    %v755 = vld [vmem:[#allocation3 + $0x230] sm:$0xff]
    %v756 = vld [vmem:[#allocation3 + $0x238] sm:$0xff]
    %v757 = vld [vmem:[#allocation3 + $0x240] sm:$0xff]
    %v758 = vld [vmem:[#allocation3 + $0x248] sm:$0xff]
    %v759 = vld [vmem:[#allocation3 + $0x250] sm:$0xff]
    %v760 = vld [vmem:[#allocation3 + $0x258] sm:$0xff]
    %v761 = vld [vmem:[#allocation3 + $0x260] sm:$0xff]
    %v762 = vld [vmem:[#allocation3 + $0x268] sm:$0xff]
    %v763 = vld [vmem:[#allocation3 + $0x270] sm:$0xff]
    %v764 = vld [vmem:[#allocation3 + $0x278] sm:$0xff]
    %v765 = vld [vmem:[#allocation3 + $0x280] sm:$0xff]
    %v766 = vld [vmem:[#allocation3 + $0x288] sm:$0xff]
    %v767 = vld [vmem:[#allocation3 + $0x290] sm:$0xff]
    %v768 = vld [vmem:[#allocation3 + $0x298] sm:$0xff]
    %v769 = vld [vmem:[#allocation3 + $0x2a0] sm:$0xff]
    %v770 = vld [vmem:[#allocation3 + $0x2a8] sm:$0xff]
    %v771 = vld [vmem:[#allocation3 + $0x2b0] sm:$0xff]
    %v772 = vld [vmem:[#allocation3 + $0x2b8] sm:$0xff]
    %v773 = vld [vmem:[#allocation3 + $0x2c0] sm:$0xff]
    %v774 = vld [vmem:[#allocation3 + $0x2c8] sm:$0xff]
    %v775 = vld [vmem:[#allocation3 + $0x2d0] sm:$0xff]
    %v776 = vld [vmem:[#allocation3 + $0x2d8] sm:$0xff]
    %v777 = vld [vmem:[#allocation3 + $0x2e0] sm:$0xff]
    %v778 = vld [vmem:[#allocation3 + $0x2e8] sm:$0xff]
    %v779 = vld [vmem:[#allocation3 + $0x2f0] sm:$0xff]
    %v780 = vld [vmem:[#allocation3 + $0x2f8] sm:$0xff]
    %v781 = vld [vmem:[#allocation3 + $0x300] sm:$0xff]
    %v782 = vld [vmem:[#allocation3 + $0x308] sm:$0xff]
    %v783 = vld [vmem:[#allocation3 + $0x310] sm:$0xff]
    %v784 = vld [vmem:[#allocation3 + $0x318] sm:$0xff]
    %v785 = vld [vmem:[#allocation3 + $0x320] sm:$0xff]
    %v786 = vld [vmem:[#allocation3 + $0x328] sm:$0xff]
    %v787 = vld [vmem:[#allocation3 + $0x330] sm:$0xff]
    %v788 = vld [vmem:[#allocation3 + $0x338] sm:$0xff]
    %v789 = vld [vmem:[#allocation3 + $0x340] sm:$0xff]
    %v790 = vld [vmem:[#allocation3 + $0x348] sm:$0xff]
    %v791 = vld [vmem:[#allocation3 + $0x350] sm:$0xff]
    %v792 = vld [vmem:[#allocation3 + $0x358] sm:$0xff]
    %v793 = vld [vmem:[#allocation3 + $0x360] sm:$0xff]
    %v794 = vld [vmem:[#allocation3 + $0x368] sm:$0xff]
    %v795 = vld [vmem:[#allocation3 + $0x370] sm:$0xff]
    %v796 = vld [vmem:[#allocation3 + $0x378] sm:$0xff]
    %v797 = vld [vmem:[#allocation3 + $0x380] sm:$0xff]
    %v798 = vld [vmem:[#allocation3 + $0x388] sm:$0xff]
    %v799 = vld [vmem:[#allocation3 + $0x390] sm:$0xff]
    %v800 = vld [vmem:[#allocation3 + $0x398] sm:$0xff]
    %v801 = vld [vmem:[#allocation3 + $0x3a0] sm:$0xff]
    %v802 = vld [vmem:[#allocation3 + $0x3a8] sm:$0xff]
    %v803 = vld [vmem:[#allocation3 + $0x3b0] sm:$0xff]
    %v804 = vld [vmem:[#allocation3 + $0x3b8] sm:$0xff]
    %v805 = vld [vmem:[#allocation3 + $0x3c0] sm:$0xff]
    %v806 = vld [vmem:[#allocation3 + $0x3c8] sm:$0xff]
    %v807 = vld [vmem:[#allocation3 + $0x3d0] sm:$0xff]
    %v808 = vld [vmem:[#allocation3 + $0x3d8] sm:$0xff]
    %v809 = vld [vmem:[#allocation3 + $0x3e0] sm:$0xff]
    %v810 = vld [vmem:[#allocation3 + $0x3e8] sm:$0xff]
    %v811 = vld [vmem:[#allocation3 + $0x3f0] sm:$0xff]
    %v812 = vld [vmem:[#allocation3 + $0x3f8] sm:$0xff]
    %v813 = vld [vmem:[#allocation3 + $0x400] sm:$0xff]
    %v814 = vld [vmem:[#allocation3 + $0x408] sm:$0xff]
    %v815 = vld [vmem:[#allocation3 + $0x410] sm:$0xff]
    %v816 = vld [vmem:[#allocation3 + $0x418] sm:$0xff]
    %v817 = vld [vmem:[#allocation3 + $0x420] sm:$0xff]
    %v818 = vld [vmem:[#allocation3 + $0x428] sm:$0xff]
    %v819 = vld [vmem:[#allocation3 + $0x430] sm:$0xff]
    %v820 = vld [vmem:[#allocation3 + $0x438] sm:$0xff]
    %v821 = vld [vmem:[#allocation3 + $0x440] sm:$0xff]
    %v822 = vld [vmem:[#allocation3 + $0x448] sm:$0xff]
    %v823 = vld [vmem:[#allocation3 + $0x450] sm:$0xff]
    %v824 = vld [vmem:[#allocation3 + $0x458] sm:$0xff]
    %v825 = vld [vmem:[#allocation3 + $0x460] sm:$0xff]
    %v826 = vld [vmem:[#allocation3 + $0x468] sm:$0xff]
    %v827 = vld [vmem:[#allocation3 + $0x470] sm:$0xff]
    %v828 = vld [vmem:[#allocation3 + $0x478] sm:$0xff]
    %v829 = vld [vmem:[#allocation3 + $0x480] sm:$0xff]
    %v830 = vld [vmem:[#allocation3 + $0x488] sm:$0xff]
    %v831 = vld [vmem:[#allocation3 + $0x490] sm:$0xff]
    %v832 = vld [vmem:[#allocation3 + $0x498] sm:$0xff]
    %v833 = vld [vmem:[#allocation3 + $0x4a0] sm:$0xff]
    %v834 = vld [vmem:[#allocation3 + $0x4a8] sm:$0xff]
    %v835 = vld [vmem:[#allocation3 + $0x4b0] sm:$0xff]
    %v836 = vld [vmem:[#allocation3 + $0x4b8] sm:$0xff]
    %v837 = vld [vmem:[#allocation3 + $0x4c0] sm:$0xff]
    %v838 = vld [vmem:[#allocation3 + $0x4c8] sm:$0xff]
    %v839 = vld [vmem:[#allocation3 + $0x4d0] sm:$0xff]
    %v840 = vld [vmem:[#allocation3 + $0x4d8] sm:$0xff]
    %v841 = vld [vmem:[#allocation3 + $0x4e0] sm:$0xff]
    %v842 = vld [vmem:[#allocation3 + $0x4e8] sm:$0xff]
    %v843 = vld [vmem:[#allocation3 + $0x4f0] sm:$0xff]
    %v844 = vld [vmem:[#allocation3 + $0x4f8] sm:$0xff]
    %v845 = vld [vmem:[#allocation3 + $0x500] sm:$0xff]
    %v846 = vld [vmem:[#allocation3 + $0x508] sm:$0xff]
    %v847 = vld [vmem:[#allocation3 + $0x510] sm:$0xff]
    %v848 = vld [vmem:[#allocation3 + $0x518] sm:$0xff]
    %v849 = vld [vmem:[#allocation3 + $0x520] sm:$0xff]
    %v850 = vld [vmem:[#allocation3 + $0x528] sm:$0xff]
    %v851 = vld [vmem:[#allocation3 + $0x530] sm:$0xff]
    %v852 = vld [vmem:[#allocation3 + $0x538] sm:$0xff]
    %v853 = vld [vmem:[#allocation3 + $0x540] sm:$0xff]
    %v854 = vld [vmem:[#allocation3 + $0x548] sm:$0xff]
    %v855 = vld [vmem:[#allocation3 + $0x550] sm:$0xff]
    %v856 = vld [vmem:[#allocation3 + $0x558] sm:$0xff]
    %v857 = vld [vmem:[#allocation3 + $0x560] sm:$0xff]
    %v858 = vld [vmem:[#allocation3 + $0x568] sm:$0xff]
    %v859 = vld [vmem:[#allocation3 + $0x570] sm:$0xff]
    %v860 = vld [vmem:[#allocation3 + $0x578] sm:$0xff]
    %v861 = vld [vmem:[#allocation3 + $0x580] sm:$0xff]
    %v862 = vld [vmem:[#allocation3 + $0x588] sm:$0xff]
    %v863 = vld [vmem:[#allocation3 + $0x590] sm:$0xff]
    %v864 = vld [vmem:[#allocation3 + $0x598] sm:$0xff]
    %v865 = vld [vmem:[#allocation3 + $0x5a0] sm:$0xff]
    %v866 = vld [vmem:[#allocation3 + $0x5a8] sm:$0xff]
    %v867 = vld [vmem:[#allocation3 + $0x5b0] sm:$0xff]
    %v868 = vld [vmem:[#allocation3 + $0x5b8] sm:$0xff]
    %v869 = vld [vmem:[#allocation3 + $0x5c0] sm:$0xff]
    %v870 = vld [vmem:[#allocation3 + $0x5c8] sm:$0xff]
    %v871 = vld [vmem:[#allocation3 + $0x5d0] sm:$0xff]
    %v872 = vld [vmem:[#allocation3 + $0x5d8] sm:$0xff]
    %v873 = vld [vmem:[#allocation3 + $0x5e0] sm:$0xff]
    %v874 = vld [vmem:[#allocation3 + $0x5e8] sm:$0xff]
    %v875 = vld [vmem:[#allocation3 + $0x5f0] sm:$0xff]
    %v876 = vld [vmem:[#allocation3 + $0x5f8] sm:$0xff]
    %v877 = vld [vmem:[#allocation3 + $0x600] sm:$0xff]
    %v878 = vld [vmem:[#allocation3 + $0x608] sm:$0xff]
    %v879 = vld [vmem:[#allocation3 + $0x610] sm:$0xff]
    %v880 = vld [vmem:[#allocation3 + $0x618] sm:$0xff]
    %v881 = vld [vmem:[#allocation3 + $0x620] sm:$0xff]
    %v882 = vld [vmem:[#allocation3 + $0x628] sm:$0xff]
    %v883 = vld [vmem:[#allocation3 + $0x630] sm:$0xff]
    %v884 = vld [vmem:[#allocation3 + $0x638] sm:$0xff]
    %v885 = vld [vmem:[#allocation3 + $0x640] sm:$0xff]
    %v886 = vld [vmem:[#allocation3 + $0x648] sm:$0xff]
    %v887 = vld [vmem:[#allocation3 + $0x650] sm:$0xff]
    %v888 = vld [vmem:[#allocation3 + $0x658] sm:$0xff]
    %v889 = vld [vmem:[#allocation3 + $0x660] sm:$0xff]
    %v890 = vld [vmem:[#allocation3 + $0x668] sm:$0xff]
    %v891 = vld [vmem:[#allocation3 + $0x670] sm:$0xff]
    %v892 = vld [vmem:[#allocation3 + $0x678] sm:$0xff]
    %v893 = vld [vmem:[#allocation3 + $0x680] sm:$0xff]
    %v894 = vld [vmem:[#allocation3 + $0x688] sm:$0xff]
    %v895 = vld [vmem:[#allocation3 + $0x690] sm:$0xff]
    %v896 = vld [vmem:[#allocation3 + $0x698] sm:$0xff]
    %v897 = vld [vmem:[#allocation3 + $0x6a0] sm:$0xff]
    %v898 = vld [vmem:[#allocation3 + $0x6a8] sm:$0xff]
    %v899 = vld [vmem:[#allocation3 + $0x6b0] sm:$0xff]
    %v900 = vld [vmem:[#allocation3 + $0x6b8] sm:$0xff]
    %v901 = vld [vmem:[#allocation3 + $0x6c0] sm:$0xff]
    %v902 = vld [vmem:[#allocation3 + $0x6c8] sm:$0xff]
    %v903 = vld [vmem:[#allocation3 + $0x6d0] sm:$0xff]
    %v904 = vld [vmem:[#allocation3 + $0x6d8] sm:$0xff]
    %v905 = vld [vmem:[#allocation3 + $0x6e0] sm:$0xff]
    %v906 = vld [vmem:[#allocation3 + $0x6e8] sm:$0xff]
    %v907 = vld [vmem:[#allocation3 + $0x6f0] sm:$0xff]
    %v908 = vld [vmem:[#allocation3 + $0x6f8] sm:$0xff]
    %v909 = vld [vmem:[#allocation3 + $0x700] sm:$0xff]
    %v910 = vld [vmem:[#allocation3 + $0x708] sm:$0xff]
    %v911 = vld [vmem:[#allocation3 + $0x710] sm:$0xff]
    %v912 = vld [vmem:[#allocation3 + $0x718] sm:$0xff]
    %v913 = vld [vmem:[#allocation3 + $0x720] sm:$0xff]
    %v914 = vld [vmem:[#allocation3 + $0x728] sm:$0xff]
    %v915 = vld [vmem:[#allocation3 + $0x730] sm:$0xff]
    %v916 = vld [vmem:[#allocation3 + $0x738] sm:$0xff]
    %v917 = vld [vmem:[#allocation3 + $0x740] sm:$0xff]
    %v918 = vld [vmem:[#allocation3 + $0x748] sm:$0xff]
    %v919 = vld [vmem:[#allocation3 + $0x750] sm:$0xff]
    %v920 = vld [vmem:[#allocation3 + $0x758] sm:$0xff]
    %v921 = vld [vmem:[#allocation3 + $0x760] sm:$0xff]
    %v922 = vld [vmem:[#allocation3 + $0x768] sm:$0xff]
    %v923 = vld [vmem:[#allocation3 + $0x770] sm:$0xff]
    %v924 = vld [vmem:[#allocation3 + $0x778] sm:$0xff]
    %v925 = vld [vmem:[#allocation3 + $0x780] sm:$0xff]
    %v926 = vld [vmem:[#allocation3 + $0x788] sm:$0xff]
    %v927 = vld [vmem:[#allocation3 + $0x790] sm:$0xff]
    %v928 = vld [vmem:[#allocation3 + $0x798] sm:$0xff]
    %v929 = vld [vmem:[#allocation3 + $0x7a0] sm:$0xff]
    %v930 = vld [vmem:[#allocation3 + $0x7a8] sm:$0xff]
    %v931 = vld [vmem:[#allocation3 + $0x7b0] sm:$0xff]
    %v932 = vld [vmem:[#allocation3 + $0x7b8] sm:$0xff]
    %v933 = vld [vmem:[#allocation3 + $0x7c0] sm:$0xff]
    %v934 = vld [vmem:[#allocation3 + $0x7c8] sm:$0xff]
    %v935 = vld [vmem:[#allocation3 + $0x7d0] sm:$0xff]
    %v936 = vld [vmem:[#allocation3 + $0x7d8] sm:$0xff]
    %v937 = vld [vmem:[#allocation3 + $0x7e0] sm:$0xff]
    %v938 = vld [vmem:[#allocation3 + $0x7e8] sm:$0xff]
    %v939 = vld [vmem:[#allocation3 + $0x7f0] sm:$0xff]
    %v940 = vld [vmem:[#allocation3 + $0x7f8] sm:$0xff]
    %v941 = vld [vmem:[#allocation11] sm:$0xff]
    %v943 = vlaneseq
    %v944 = vshrl.u32 %v943, 7
    %v945 = vsub.s32 0, %v944
    %v946 = vrot.slane %v941, %v945
    %v947 = vlaneseq
    %v948 = vshrl.u32 %v947, 7
    %v949 = vsub.s32 1, %v948
    %v950 = vrot.slane %v941, %v949
    %v951 = vlaneseq
    %v952 = vshrl.u32 %v951, 7
    %v953 = vsub.s32 2, %v952
    %v954 = vrot.slane %v941, %v953
    %v955 = vlaneseq
    %v956 = vshrl.u32 %v955, 7
    %v957 = vsub.s32 3, %v956
    %v958 = vrot.slane %v941, %v957
    %v959 = vlaneseq
    %v960 = vshrl.u32 %v959, 7
    %v961 = vsub.s32 4, %v960
    %v962 = vrot.slane %v941, %v961
    %v963 = vlaneseq
    %v964 = vshrl.u32 %v963, 7
    %v965 = vsub.s32 5, %v964
    %v966 = vrot.slane %v941, %v965
    %v967 = vlaneseq
    %v968 = vshrl.u32 %v967, 7
    %v969 = vsub.s32 6, %v968
    %v970 = vrot.slane %v941, %v969
    %v971 = vlaneseq
    %v972 = vshrl.u32 %v971, 7
    %v973 = vsub.s32 7, %v972
    %v974 = vrot.slane %v941, %v973
    %983 = vmatprep.subr.bf16.mxu0 %v686
    %984 = vmatpush1.bf16.msra.mxu0 %v685
    %985 = vmatprep.subr.bf16.mxu0 %v694
    %986 = vmatpush1.bf16.msra.mxu0 %v693
    %987 = vmatprep.subr.bf16.mxu0 %v702
    %988 = vmatpush1.bf16.msra.mxu0 %v701
    %989 = vmatprep.subr.bf16.mxu0 %v710
    %990 = vmatpush1.bf16.msra.mxu0 %v709
    %991 = vmatprep.subr.bf16.mxu0 %v718
    %992 = vmatpush1.bf16.msra.mxu0 %v717
    %993 = vmatprep.subr.bf16.mxu0 %v726
    %994 = vmatpush1.bf16.msra.mxu0 %v725
    %995 = vmatprep.subr.bf16.mxu0 %v734
    %996 = vmatpush1.bf16.msra.mxu0 %v733
    %997 = vmatprep.subr.bf16.mxu0 %v742
    %998 = vmatpush1.bf16.msra.mxu0 %v741
    %999 = vmatprep.subr.bf16.mxu0 %v750
    %1000 = vmatpush1.bf16.msra.mxu0 %v749
    %1001 = vmatprep.subr.bf16.mxu0 %v758
    %1002 = vmatpush1.bf16.msra.mxu0 %v757
    %1003 = vmatprep.subr.bf16.mxu0 %v766
    %1004 = vmatpush1.bf16.msra.mxu0 %v765
    %1005 = vmatprep.subr.bf16.mxu0 %v774
    %1006 = vmatpush1.bf16.msra.mxu0 %v773
    %1007 = vmatprep.subr.bf16.mxu0 %v782
    %1008 = vmatpush1.bf16.msra.mxu0 %v781
    %1009 = vmatprep.subr.bf16.mxu0 %v790
    %1010 = vmatpush1.bf16.msra.mxu0 %v789
    %1011 = vmatprep.subr.bf16.mxu0 %v798
    %1012 = vmatpush1.bf16.msra.mxu0 %v797
    %1013 = vmatprep.subr.bf16.mxu0 %v806
    %1014 = vmatpush1.bf16.msra.mxu0 %v805
    %1015 = vmatprep.mubr.bf16.mxu0 %v682
    %1016 = vmatmul.mubr.bf16.gmra.mrb[0].mxu0 %v681
    %v1017 = vpop.f32.mrb[0].mxu0
    %v1018 = vadd.f32 %v946, %v1017
    %v1019 = vpop.f32.mrb[0].mxu0
    %v1020 = vadd.f32 %v950, %v1019
    %v1021 = vpop.f32.mrb[0].mxu0
    %v1022 = vadd.f32 %v946, %v1021
    %v1023 = vpop.f32.mrb[0].mxu0
    %v1024 = vadd.f32 %v950, %v1023
    %1025 = vdwg.mxu0
    %1026 = vmatprep.subr.bf16.mxu0 %v814
    %1027 = vmatpush1.bf16.msra.mxu0 %v813
    %1028 = vmatprep.subr.bf16.mxu0 %v822
    %1029 = vmatpush1.bf16.msra.mxu0 %v821
    %1030 = vmatprep.subr.bf16.mxu0 %v830
    %1031 = vmatpush1.bf16.msra.mxu0 %v829
    %1032 = vmatprep.subr.bf16.mxu0 %v838
    %1033 = vmatpush1.bf16.msra.mxu0 %v837
    %1034 = vmatprep.subr.bf16.mxu0 %v846
    %1035 = vmatpush1.bf16.msra.mxu0 %v845
    %1036 = vmatprep.subr.bf16.mxu0 %v854
    %1037 = vmatpush1.bf16.msra.mxu0 %v853
    %1038 = vmatprep.subr.bf16.mxu0 %v862
    %1039 = vmatpush1.bf16.msra.mxu0 %v861
    %1040 = vmatprep.subr.bf16.mxu0 %v870
    %1041 = vmatpush1.bf16.msra.mxu0 %v869
    %1042 = vmatprep.subr.bf16.mxu0 %v878
    %1043 = vmatpush1.bf16.msra.mxu0 %v877
    %1044 = vmatprep.subr.bf16.mxu0 %v886
    %1045 = vmatpush1.bf16.msra.mxu0 %v885
    %1046 = vmatprep.subr.bf16.mxu0 %v894
    %1047 = vmatpush1.bf16.msra.mxu0 %v893
    %1048 = vmatprep.subr.bf16.mxu0 %v902
    %1049 = vmatpush1.bf16.msra.mxu0 %v901
    %1050 = vmatprep.subr.bf16.mxu0 %v910
    %1051 = vmatpush1.bf16.msra.mxu0 %v909
    %1052 = vmatprep.subr.bf16.mxu0 %v918
    %1053 = vmatpush1.bf16.msra.mxu0 %v917
    %1054 = vmatprep.subr.bf16.mxu0 %v926
    %1055 = vmatpush1.bf16.msra.mxu0 %v925
    %1056 = vmatprep.subr.bf16.mxu0 %v934
    %1057 = vmatpush1.bf16.msra.mxu0 %v933
    %1058 = vmatprep.mubr.bf16.mxu0 %v684
    %1059 = vmatmul.mubr.bf16.gmra.mrb[0].mxu0 %v683
    %v1060 = vpop.f32.mrb[0].mxu0
    %v1061 = vadd.f32 %v1018, %v1060
    %v1062 = vpop.f32.mrb[0].mxu0
    %v1063 = vadd.f32 %v1020, %v1062
    %v1064 = vpop.f32.mrb[0].mxu0
    %v1065 = vadd.f32 %v1022, %v1064
    %v1066 = vpop.f32.mrb[0].mxu0
    %v1067 = vadd.f32 %v1024, %v1066
    %1068 = vdwg.mxu0
    %1069 = vmatprep.subr.bf16.mxu0 %v688
    %1070 = vmatpush1.bf16.msra.mxu0 %v687
    %1071 = vmatprep.subr.bf16.mxu0 %v696
    %1072 = vmatpush1.bf16.msra.mxu0 %v695
    %1073 = vmatprep.subr.bf16.mxu0 %v704
    %1074 = vmatpush1.bf16.msra.mxu0 %v703
    %1075 = vmatprep.subr.bf16.mxu0 %v712
    %1076 = vmatpush1.bf16.msra.mxu0 %v711
    %1077 = vmatprep.subr.bf16.mxu0 %v720
    %1078 = vmatpush1.bf16.msra.mxu0 %v719
    %1079 = vmatprep.subr.bf16.mxu0 %v728
    %1080 = vmatpush1.bf16.msra.mxu0 %v727
    %1081 = vmatprep.subr.bf16.mxu0 %v736
    %1082 = vmatpush1.bf16.msra.mxu0 %v735
    %1083 = vmatprep.subr.bf16.mxu0 %v744
    %1084 = vmatpush1.bf16.msra.mxu0 %v743
    %1085 = vmatprep.subr.bf16.mxu0 %v752
    %1086 = vmatpush1.bf16.msra.mxu0 %v751
    %1087 = vmatprep.subr.bf16.mxu0 %v760
    %1088 = vmatpush1.bf16.msra.mxu0 %v759
    %1089 = vmatprep.subr.bf16.mxu0 %v768
    %1090 = vmatpush1.bf16.msra.mxu0 %v767
    %1091 = vmatprep.subr.bf16.mxu0 %v776
    %1092 = vmatpush1.bf16.msra.mxu0 %v775
    %1093 = vmatprep.subr.bf16.mxu0 %v784
    %1094 = vmatpush1.bf16.msra.mxu0 %v783
    %1095 = vmatprep.subr.bf16.mxu0 %v792
    %1096 = vmatpush1.bf16.msra.mxu0 %v791
    %1097 = vmatprep.subr.bf16.mxu0 %v800
    %1098 = vmatpush1.bf16.msra.mxu0 %v799
    %1099 = vmatprep.subr.bf16.mxu0 %v808
    %1100 = vmatpush1.bf16.msra.mxu0 %v807
    %1101 = vmatprep.mubr.bf16.mxu0 %v682
    %1102 = vmatmul.mubr.bf16.gmra.mrb[0].mxu0 %v681
    %v1103 = vpop.f32.mrb[0].mxu0
    %v1104 = vadd.f32 %v954, %v1103
    %v1105 = vpop.f32.mrb[0].mxu0
    %v1106 = vadd.f32 %v958, %v1105
    %v1107 = vpop.f32.mrb[0].mxu0
    %v1108 = vadd.f32 %v954, %v1107
    %v1109 = vpop.f32.mrb[0].mxu0
    %v1110 = vadd.f32 %v958, %v1109
    %1111 = vdwg.mxu0
    %1112 = vmatprep.subr.bf16.mxu0 %v816
    %1113 = vmatpush1.bf16.msra.mxu0 %v815
    %1114 = vmatprep.subr.bf16.mxu0 %v824
    %1115 = vmatpush1.bf16.msra.mxu0 %v823
    %1116 = vmatprep.subr.bf16.mxu0 %v832
    %1117 = vmatpush1.bf16.msra.mxu0 %v831
    %1118 = vmatprep.subr.bf16.mxu0 %v840
    %1119 = vmatpush1.bf16.msra.mxu0 %v839
    %1120 = vmatprep.subr.bf16.mxu0 %v848
    %1121 = vmatpush1.bf16.msra.mxu0 %v847
    %1122 = vmatprep.subr.bf16.mxu0 %v856
    %1123 = vmatpush1.bf16.msra.mxu0 %v855
    %1124 = vmatprep.subr.bf16.mxu0 %v864
    %1125 = vmatpush1.bf16.msra.mxu0 %v863
    %1126 = vmatprep.subr.bf16.mxu0 %v872
    %1127 = vmatpush1.bf16.msra.mxu0 %v871
    %1128 = vmatprep.subr.bf16.mxu0 %v880
    %1129 = vmatpush1.bf16.msra.mxu0 %v879
    %1130 = vmatprep.subr.bf16.mxu0 %v888
    %1131 = vmatpush1.bf16.msra.mxu0 %v887
    %1132 = vmatprep.subr.bf16.mxu0 %v896
    %1133 = vmatpush1.bf16.msra.mxu0 %v895
    %1134 = vmatprep.subr.bf16.mxu0 %v904
    %1135 = vmatpush1.bf16.msra.mxu0 %v903
    %1136 = vmatprep.subr.bf16.mxu0 %v912
    %1137 = vmatpush1.bf16.msra.mxu0 %v911
    %1138 = vmatprep.subr.bf16.mxu0 %v920
    %1139 = vmatpush1.bf16.msra.mxu0 %v919
    %1140 = vmatprep.subr.bf16.mxu0 %v928
    %1141 = vmatpush1.bf16.msra.mxu0 %v927
    %1142 = vmatprep.subr.bf16.mxu0 %v936
    %1143 = vmatpush1.bf16.msra.mxu0 %v935
    %1144 = vmatprep.mubr.bf16.mxu0 %v684
    %1145 = vmatmul.mubr.bf16.gmra.mrb[0].mxu0 %v683
    %v1146 = vpop.f32.mrb[0].mxu0
    %v1147 = vadd.f32 %v1104, %v1146
    %v1148 = vpop.f32.mrb[0].mxu0
    %v1149 = vadd.f32 %v1106, %v1148
    %v1150 = vpop.f32.mrb[0].mxu0
    %v1151 = vadd.f32 %v1108, %v1150
    %v1152 = vpop.f32.mrb[0].mxu0
    %v1153 = vadd.f32 %v1110, %v1152
    %1154 = vdwg.mxu0
    %1155 = vmatprep.subr.bf16.mxu0 %v690
    %1156 = vmatpush1.bf16.msra.mxu0 %v689
    %1157 = vmatprep.subr.bf16.mxu0 %v698
    %1158 = vmatpush1.bf16.msra.mxu0 %v697
    %1159 = vmatprep.subr.bf16.mxu0 %v706
    %1160 = vmatpush1.bf16.msra.mxu0 %v705
    %1161 = vmatprep.subr.bf16.mxu0 %v714
    %1162 = vmatpush1.bf16.msra.mxu0 %v713
    %1163 = vmatprep.subr.bf16.mxu0 %v722
    %1164 = vmatpush1.bf16.msra.mxu0 %v721
    %1165 = vmatprep.subr.bf16.mxu0 %v730
    %1166 = vmatpush1.bf16.msra.mxu0 %v729
    %1167 = vmatprep.subr.bf16.mxu0 %v738
    %1168 = vmatpush1.bf16.msra.mxu0 %v737
    %1169 = vmatprep.subr.bf16.mxu0 %v746
    %1170 = vmatpush1.bf16.msra.mxu0 %v745
    %1171 = vmatprep.subr.bf16.mxu0 %v754
    %1172 = vmatpush1.bf16.msra.mxu0 %v753
    %1173 = vmatprep.subr.bf16.mxu0 %v762
    %1174 = vmatpush1.bf16.msra.mxu0 %v761
    %1175 = vmatprep.subr.bf16.mxu0 %v770
    %1176 = vmatpush1.bf16.msra.mxu0 %v769
    %1177 = vmatprep.subr.bf16.mxu0 %v778
    %1178 = vmatpush1.bf16.msra.mxu0 %v777
    %1179 = vmatprep.subr.bf16.mxu0 %v786
    %1180 = vmatpush1.bf16.msra.mxu0 %v785
    %1181 = vmatprep.subr.bf16.mxu0 %v794
    %1182 = vmatpush1.bf16.msra.mxu0 %v793
    %1183 = vmatprep.subr.bf16.mxu0 %v802
    %1184 = vmatpush1.bf16.msra.mxu0 %v801
    %1185 = vmatprep.subr.bf16.mxu0 %v810
    %1186 = vmatpush1.bf16.msra.mxu0 %v809
    %1187 = vmatprep.mubr.bf16.mxu0 %v682
    %1188 = vmatmul.mubr.bf16.gmra.mrb[0].mxu0 %v681
    %v1189 = vpop.f32.mrb[0].mxu0
    %v1190 = vadd.f32 %v962, %v1189
    %v1191 = vpop.f32.mrb[0].mxu0
    %v1192 = vadd.f32 %v966, %v1191
    %v1193 = vpop.f32.mrb[0].mxu0
    %v1194 = vadd.f32 %v962, %v1193
    %v1195 = vpop.f32.mrb[0].mxu0
    %v1196 = vadd.f32 %v966, %v1195
    %1197 = vdwg.mxu0
    %1198 = vmatprep.subr.bf16.mxu0 %v818
    %1199 = vmatpush1.bf16.msra.mxu0 %v817
    %1200 = vmatprep.subr.bf16.mxu0 %v826
    %1201 = vmatpush1.bf16.msra.mxu0 %v825
    %1202 = vmatprep.subr.bf16.mxu0 %v834
    %1203 = vmatpush1.bf16.msra.mxu0 %v833
    %1204 = vmatprep.subr.bf16.mxu0 %v842
    %1205 = vmatpush1.bf16.msra.mxu0 %v841
    %1206 = vmatprep.subr.bf16.mxu0 %v850
    %1207 = vmatpush1.bf16.msra.mxu0 %v849
    %1208 = vmatprep.subr.bf16.mxu0 %v858
    %1209 = vmatpush1.bf16.msra.mxu0 %v857
    %1210 = vmatprep.subr.bf16.mxu0 %v866
    %1211 = vmatpush1.bf16.msra.mxu0 %v865
    %1212 = vmatprep.subr.bf16.mxu0 %v874
    %1213 = vmatpush1.bf16.msra.mxu0 %v873
    %1214 = vmatprep.subr.bf16.mxu0 %v882
    %1215 = vmatpush1.bf16.msra.mxu0 %v881
    %1216 = vmatprep.subr.bf16.mxu0 %v890
    %1217 = vmatpush1.bf16.msra.mxu0 %v889
    %1218 = vmatprep.subr.bf16.mxu0 %v898
    %1219 = vmatpush1.bf16.msra.mxu0 %v897
    %1220 = vmatprep.subr.bf16.mxu0 %v906
    %1221 = vmatpush1.bf16.msra.mxu0 %v905
    %1222 = vmatprep.subr.bf16.mxu0 %v914
    %1223 = vmatpush1.bf16.msra.mxu0 %v913
    %1224 = vmatprep.subr.bf16.mxu0 %v922
    %1225 = vmatpush1.bf16.msra.mxu0 %v921
    %1226 = vmatprep.subr.bf16.mxu0 %v930
    %1227 = vmatpush1.bf16.msra.mxu0 %v929
    %1228 = vmatprep.subr.bf16.mxu0 %v938
    %1229 = vmatpush1.bf16.msra.mxu0 %v937
    %1230 = vmatprep.mubr.bf16.mxu0 %v684
    %1231 = vmatmul.mubr.bf16.gmra.mrb[0].mxu0 %v683
    %v1232 = vpop.f32.mrb[0].mxu0
    %v1233 = vadd.f32 %v1190, %v1232
    %v1234 = vpop.f32.mrb[0].mxu0
    %v1235 = vadd.f32 %v1192, %v1234
    %v1236 = vpop.f32.mrb[0].mxu0
    %v1237 = vadd.f32 %v1194, %v1236
    %v1238 = vpop.f32.mrb[0].mxu0
    %v1239 = vadd.f32 %v1196, %v1238
    %1240 = vdwg.mxu0
    %1241 = vmatprep.subr.bf16.mxu0 %v692
    %1242 = vmatpush1.bf16.msra.mxu0 %v691
    %1243 = vmatprep.subr.bf16.mxu0 %v700
    %1244 = vmatpush1.bf16.msra.mxu0 %v699
    %1245 = vmatprep.subr.bf16.mxu0 %v708
    %1246 = vmatpush1.bf16.msra.mxu0 %v707
    %1247 = vmatprep.subr.bf16.mxu0 %v716
    %1248 = vmatpush1.bf16.msra.mxu0 %v715
    %1249 = vmatprep.subr.bf16.mxu0 %v724
    %1250 = vmatpush1.bf16.msra.mxu0 %v723
    %1251 = vmatprep.subr.bf16.mxu0 %v732
    %1252 = vmatpush1.bf16.msra.mxu0 %v731
    %1253 = vmatprep.subr.bf16.mxu0 %v740
    %1254 = vmatpush1.bf16.msra.mxu0 %v739
    %1255 = vmatprep.subr.bf16.mxu0 %v748
    %1256 = vmatpush1.bf16.msra.mxu0 %v747
    %1257 = vmatprep.subr.bf16.mxu0 %v756
    %1258 = vmatpush1.bf16.msra.mxu0 %v755
    %1259 = vmatprep.subr.bf16.mxu0 %v764
    %1260 = vmatpush1.bf16.msra.mxu0 %v763
    %1261 = vmatprep.subr.bf16.mxu0 %v772
    %1262 = vmatpush1.bf16.msra.mxu0 %v771
    %1263 = vmatprep.subr.bf16.mxu0 %v780
    %1264 = vmatpush1.bf16.msra.mxu0 %v779
    %1265 = vmatprep.subr.bf16.mxu0 %v788
    %1266 = vmatpush1.bf16.msra.mxu0 %v787
    %1267 = vmatprep.subr.bf16.mxu0 %v796
    %1268 = vmatpush1.bf16.msra.mxu0 %v795
    %1269 = vmatprep.subr.bf16.mxu0 %v804
    %1270 = vmatpush1.bf16.msra.mxu0 %v803
    %1271 = vmatprep.subr.bf16.mxu0 %v812
    %1272 = vmatpush1.bf16.msra.mxu0 %v811
    %1273 = vmatprep.mubr.bf16.mxu0 %v682
    %1274 = vmatmul.mubr.bf16.gmra.mrb[0].mxu0 %v681
    %v1275 = vpop.f32.mrb[0].mxu0
    %v1276 = vadd.f32 %v970, %v1275
    %v1277 = vpop.f32.mrb[0].mxu0
    %v1278 = vadd.f32 %v974, %v1277
    %v1279 = vpop.f32.mrb[0].mxu0
    %v1280 = vadd.f32 %v970, %v1279
    %v1281 = vpop.f32.mrb[0].mxu0
    %v1282 = vadd.f32 %v974, %v1281
    %1283 = vdwg.mxu0
    %1284 = vmatprep.subr.bf16.mxu0 %v820
    %1285 = vmatpush1.bf16.msra.mxu0 %v819
    %1286 = vmatprep.subr.bf16.mxu0 %v828
    %1287 = vmatpush1.bf16.msra.mxu0 %v827
    %1288 = vmatprep.subr.bf16.mxu0 %v836
    %1289 = vmatpush1.bf16.msra.mxu0 %v835
    %1290 = vmatprep.subr.bf16.mxu0 %v844
    %1291 = vmatpush1.bf16.msra.mxu0 %v843
    %1292 = vmatprep.subr.bf16.mxu0 %v852
    %1293 = vmatpush1.bf16.msra.mxu0 %v851
    %1294 = vmatprep.subr.bf16.mxu0 %v860
    %1295 = vmatpush1.bf16.msra.mxu0 %v859
    %1296 = vmatprep.subr.bf16.mxu0 %v868
    %1297 = vmatpush1.bf16.msra.mxu0 %v867
    %1298 = vmatprep.subr.bf16.mxu0 %v876
    %1299 = vmatpush1.bf16.msra.mxu0 %v875
    %1300 = vmatprep.subr.bf16.mxu0 %v884
    %1301 = vmatpush1.bf16.msra.mxu0 %v883
    %1302 = vmatprep.subr.bf16.mxu0 %v892
    %1303 = vmatpush1.bf16.msra.mxu0 %v891
    %1304 = vmatprep.subr.bf16.mxu0 %v900
    %1305 = vmatpush1.bf16.msra.mxu0 %v899
    %1306 = vmatprep.subr.bf16.mxu0 %v908
    %1307 = vmatpush1.bf16.msra.mxu0 %v907
    %1308 = vmatprep.subr.bf16.mxu0 %v916
    %1309 = vmatpush1.bf16.msra.mxu0 %v915
    %1310 = vmatprep.subr.bf16.mxu0 %v924
    %1311 = vmatpush1.bf16.msra.mxu0 %v923
    %1312 = vmatprep.subr.bf16.mxu0 %v932
    %1313 = vmatpush1.bf16.msra.mxu0 %v931
    %1314 = vmatprep.subr.bf16.mxu0 %v940
    %1315 = vmatpush1.bf16.msra.mxu0 %v939
    %1316 = vmatprep.mubr.bf16.mxu0 %v684
    %1317 = vmatmul.mubr.bf16.gmra.mrb[0].mxu0 %v683
    %v1318 = vpop.f32.mrb[0].mxu0
    %v1319 = vadd.f32 %v1276, %v1318
    %v1320 = vpop.f32.mrb[0].mxu0
    %v1321 = vadd.f32 %v1278, %v1320
    %v1322 = vpop.f32.mrb[0].mxu0
    %v1323 = vadd.f32 %v1280, %v1322
    %v1324 = vpop.f32.mrb[0].mxu0
    %v1325 = vadd.f32 %v1282, %v1324
    %1326 = vdwg.mxu0
    %v1327 = vmul.f32 %v1061, 0.2
    %v1328 = vmul.f32 %v1063, 0.2
    %v1329 = vmul.f32 %v1147, 0.2
    %v1330 = vmul.f32 %v1149, 0.2
    %v1331 = vmul.f32 %v1233, 0.2
    %v1332 = vmul.f32 %v1235, 0.2
    %v1333 = vmul.f32 %v1319, 0.2
    %v1334 = vmul.f32 %v1321, 0.2
    %v1335 = vmul.f32 %v1065, 0.2
    %v1336 = vmul.f32 %v1067, 0.2
    %v1337 = vmul.f32 %v1151, 0.2
    %v1338 = vmul.f32 %v1153, 0.2
    %v1339 = vmul.f32 %v1237, 0.2
    %v1340 = vmul.f32 %v1239, 0.2
    %v1341 = vmul.f32 %v1323, 0.2
    %v1342 = vmul.f32 %v1325, 0.2
    %v1343 = vmax.f32 %v1061, %v1327
    %v1344 = vmax.f32 %v1063, %v1328
    %v1345 = vmax.f32 %v1147, %v1329
    %v1346 = vmax.f32 %v1149, %v1330
    %v1347 = vmax.f32 %v1233, %v1331
    %v1348 = vmax.f32 %v1235, %v1332
    %v1349 = vmax.f32 %v1319, %v1333
    %v1350 = vmax.f32 %v1321, %v1334
    %v1351 = vmax.f32 %v1065, %v1335
    %v1352 = vmax.f32 %v1067, %v1336
    %v1353 = vmax.f32 %v1151, %v1337
    %v1354 = vmax.f32 %v1153, %v1338
    %v1355 = vmax.f32 %v1237, %v1339
    %v1356 = vmax.f32 %v1239, %v1340
    %v1357 = vmax.f32 %v1323, %v1341
    %v1358 = vmax.f32 %v1325, %v1342
    // Predicated region
    $region62: #{generator_forward.1} parent=1 // pred_check
      %p1359 = pneg %p92
    $region63: #{generator_forward.1} parent=1 // pred_check_branch
      %1361 = sbr.rel (%p1359) target = $region65
    $region64: #{generator_forward.1} parent=1 // pred_region
      %s1362 = scalar_lea.sflag [#allocation5], 2
      %s1363 = smul.u32 4, 128
      %s1364 = smul.u32 %s1363, 7
      %s1365 = sshll.u32 %s1364, 4
      %1366 = dma.done %s1362, %s1365
    $region65: #{generator_forward.1} parent=1 // pred_fallthru
      _
    %v1367 = vpack.c.bf16 %v1351, %v1343
    %v1368 = vpack.c.bf16 %v1352, %v1344
    %v1369 = vpack.c.bf16 %v1353, %v1345
    %v1370 = vpack.c.bf16 %v1354, %v1346
    %v1371 = vpack.c.bf16 %v1355, %v1347
    %v1372 = vpack.c.bf16 %v1356, %v1348
    %v1373 = vpack.c.bf16 %v1357, %v1349
    %v1374 = vpack.c.bf16 %v1358, %v1350
    %v1375 = vld [vmem:[#allocation4] sm:$0xff]
    %v1376 = vld [vmem:[#allocation4 + $0x8] sm:$0xff]
    %v1377 = vld [vmem:[#allocation4 + $0x10] sm:$0xff]
    %v1378 = vld [vmem:[#allocation4 + $0x18] sm:$0xff]
    %v1379 = vld [vmem:[#allocation4 + $0x20] sm:$0xff]
    %v1380 = vld [vmem:[#allocation4 + $0x28] sm:$0xff]
    %v1381 = vld [vmem:[#allocation4 + $0x30] sm:$0xff]
    %v1382 = vld [vmem:[#allocation4 + $0x38] sm:$0xff]
    %v1383 = vld [vmem:[#allocation4 + $0x40] sm:$0xff]
    %v1384 = vld [vmem:[#allocation4 + $0x48] sm:$0xff]
    %v1385 = vld [vmem:[#allocation4 + $0x50] sm:$0xff]
    %v1386 = vld [vmem:[#allocation4 + $0x58] sm:$0xff]
    %v1387 = vld [vmem:[#allocation4 + $0x60] sm:$0xff]
    %v1388 = vld [vmem:[#allocation4 + $0x68] sm:$0xff]
    %v1389 = vld [vmem:[#allocation4 + $0x70] sm:$0xff]
    %v1390 = vld [vmem:[#allocation4 + $0x78] sm:$0xff]
    %v1391 = vld [vmem:[#allocation4 + $0x80] sm:$0xff]
    %v1392 = vld [vmem:[#allocation4 + $0x88] sm:$0xff]
    %v1393 = vld [vmem:[#allocation4 + $0x90] sm:$0xff]
    %v1394 = vld [vmem:[#allocation4 + $0x98] sm:$0xff]
    %v1395 = vld [vmem:[#allocation4 + $0xa0] sm:$0xff]
    %v1396 = vld [vmem:[#allocation4 + $0xa8] sm:$0xff]
    %v1397 = vld [vmem:[#allocation4 + $0xb0] sm:$0xff]
    %v1398 = vld [vmem:[#allocation4 + $0xb8] sm:$0xff]
    %v1399 = vld [vmem:[#allocation4 + $0xc0] sm:$0xff]
    %v1400 = vld [vmem:[#allocation4 + $0xc8] sm:$0xff]
    %v1401 = vld [vmem:[#allocation4 + $0xd0] sm:$0xff]
    %v1402 = vld [vmem:[#allocation4 + $0xd8] sm:$0xff]
    %v1403 = vld [vmem:[#allocation4 + $0xe0] sm:$0xff]
    %v1404 = vld [vmem:[#allocation4 + $0xe8] sm:$0xff]
    %v1405 = vld [vmem:[#allocation4 + $0xf0] sm:$0xff]
    %v1406 = vld [vmem:[#allocation4 + $0xf8] sm:$0xff]
    %v1407 = vld [vmem:[#allocation4 + $0x100] sm:$0xff]
    %v1408 = vld [vmem:[#allocation4 + $0x108] sm:$0xff]
    %v1409 = vld [vmem:[#allocation4 + $0x110] sm:$0xff]
    %v1410 = vld [vmem:[#allocation4 + $0x118] sm:$0xff]
    %v1411 = vld [vmem:[#allocation4 + $0x120] sm:$0xff]
    %v1412 = vld [vmem:[#allocation4 + $0x128] sm:$0xff]
    %v1413 = vld [vmem:[#allocation4 + $0x130] sm:$0xff]
    %v1414 = vld [vmem:[#allocation4 + $0x138] sm:$0xff]
    %v1415 = vld [vmem:[#allocation4 + $0x140] sm:$0xff]
    %v1416 = vld [vmem:[#allocation4 + $0x148] sm:$0xff]
    %v1417 = vld [vmem:[#allocation4 + $0x150] sm:$0xff]
    %v1418 = vld [vmem:[#allocation4 + $0x158] sm:$0xff]
    %v1419 = vld [vmem:[#allocation4 + $0x160] sm:$0xff]
    %v1420 = vld [vmem:[#allocation4 + $0x168] sm:$0xff]
    %v1421 = vld [vmem:[#allocation4 + $0x170] sm:$0xff]
    %v1422 = vld [vmem:[#allocation4 + $0x178] sm:$0xff]
    %v1423 = vld [vmem:[#allocation4 + $0x180] sm:$0xff]
    %v1424 = vld [vmem:[#allocation4 + $0x188] sm:$0xff]
    %v1425 = vld [vmem:[#allocation4 + $0x190] sm:$0xff]
    %v1426 = vld [vmem:[#allocation4 + $0x198] sm:$0xff]
    %v1427 = vld [vmem:[#allocation4 + $0x1a0] sm:$0xff]
    %v1428 = vld [vmem:[#allocation4 + $0x1a8] sm:$0xff]
    %v1429 = vld [vmem:[#allocation4 + $0x1b0] sm:$0xff]
    %v1430 = vld [vmem:[#allocation4 + $0x1b8] sm:$0xff]
    %v1431 = vld [vmem:[#allocation4 + $0x1c0] sm:$0xff]
    %v1432 = vld [vmem:[#allocation4 + $0x1c8] sm:$0xff]
    %v1433 = vld [vmem:[#allocation4 + $0x1d0] sm:$0xff]
    %v1434 = vld [vmem:[#allocation4 + $0x1d8] sm:$0xff]
    %v1435 = vld [vmem:[#allocation4 + $0x1e0] sm:$0xff]
    %v1436 = vld [vmem:[#allocation4 + $0x1e8] sm:$0xff]
    %v1437 = vld [vmem:[#allocation4 + $0x1f0] sm:$0xff]
    %v1438 = vld [vmem:[#allocation4 + $0x1f8] sm:$0xff]
    %v1439 = vld [vmem:[#allocation4 + $0x200] sm:$0xff]
    %v1440 = vld [vmem:[#allocation4 + $0x208] sm:$0xff]
    %v1441 = vld [vmem:[#allocation4 + $0x210] sm:$0xff]
    %v1442 = vld [vmem:[#allocation4 + $0x218] sm:$0xff]
    %v1443 = vld [vmem:[#allocation4 + $0x220] sm:$0xff]
    %v1444 = vld [vmem:[#allocation4 + $0x228] sm:$0xff]
    %v1445 = vld [vmem:[#allocation4 + $0x230] sm:$0xff]
    %v1446 = vld [vmem:[#allocation4 + $0x238] sm:$0xff]
    %v1447 = vld [vmem:[#allocation4 + $0x240] sm:$0xff]
    %v1448 = vld [vmem:[#allocation4 + $0x248] sm:$0xff]
    %v1449 = vld [vmem:[#allocation4 + $0x250] sm:$0xff]
    %v1450 = vld [vmem:[#allocation4 + $0x258] sm:$0xff]
    %v1451 = vld [vmem:[#allocation4 + $0x260] sm:$0xff]
    %v1452 = vld [vmem:[#allocation4 + $0x268] sm:$0xff]
    %v1453 = vld [vmem:[#allocation4 + $0x270] sm:$0xff]
    %v1454 = vld [vmem:[#allocation4 + $0x278] sm:$0xff]
    %v1455 = vld [vmem:[#allocation4 + $0x280] sm:$0xff]
    %v1456 = vld [vmem:[#allocation4 + $0x288] sm:$0xff]
    %v1457 = vld [vmem:[#allocation4 + $0x290] sm:$0xff]
    %v1458 = vld [vmem:[#allocation4 + $0x298] sm:$0xff]
    %v1459 = vld [vmem:[#allocation4 + $0x2a0] sm:$0xff]
    %v1460 = vld [vmem:[#allocation4 + $0x2a8] sm:$0xff]
    %v1461 = vld [vmem:[#allocation4 + $0x2b0] sm:$0xff]
    %v1462 = vld [vmem:[#allocation4 + $0x2b8] sm:$0xff]
    %v1463 = vld [vmem:[#allocation4 + $0x2c0] sm:$0xff]
    %v1464 = vld [vmem:[#allocation4 + $0x2c8] sm:$0xff]
    %v1465 = vld [vmem:[#allocation4 + $0x2d0] sm:$0xff]
    %v1466 = vld [vmem:[#allocation4 + $0x2d8] sm:$0xff]
    %v1467 = vld [vmem:[#allocation4 + $0x2e0] sm:$0xff]
    %v1468 = vld [vmem:[#allocation4 + $0x2e8] sm:$0xff]
    %v1469 = vld [vmem:[#allocation4 + $0x2f0] sm:$0xff]
    %v1470 = vld [vmem:[#allocation4 + $0x2f8] sm:$0xff]
    %v1471 = vld [vmem:[#allocation4 + $0x300] sm:$0xff]
    %v1472 = vld [vmem:[#allocation4 + $0x308] sm:$0xff]
    %v1473 = vld [vmem:[#allocation4 + $0x310] sm:$0xff]
    %v1474 = vld [vmem:[#allocation4 + $0x318] sm:$0xff]
    %v1475 = vld [vmem:[#allocation4 + $0x320] sm:$0xff]
    %v1476 = vld [vmem:[#allocation4 + $0x328] sm:$0xff]
    %v1477 = vld [vmem:[#allocation4 + $0x330] sm:$0xff]
    %v1478 = vld [vmem:[#allocation4 + $0x338] sm:$0xff]
    %v1479 = vld [vmem:[#allocation4 + $0x340] sm:$0xff]
    %v1480 = vld [vmem:[#allocation4 + $0x348] sm:$0xff]
    %v1481 = vld [vmem:[#allocation4 + $0x350] sm:$0xff]
    %v1482 = vld [vmem:[#allocation4 + $0x358] sm:$0xff]
    %v1483 = vld [vmem:[#allocation4 + $0x360] sm:$0xff]
    %v1484 = vld [vmem:[#allocation4 + $0x368] sm:$0xff]
    %v1485 = vld [vmem:[#allocation4 + $0x370] sm:$0xff]
    %v1486 = vld [vmem:[#allocation4 + $0x378] sm:$0xff]
    %v1487 = vld [vmem:[#allocation4 + $0x380] sm:$0xff]
    %v1488 = vld [vmem:[#allocation4 + $0x388] sm:$0xff]
    %v1489 = vld [vmem:[#allocation4 + $0x390] sm:$0xff]
    %v1490 = vld [vmem:[#allocation4 + $0x398] sm:$0xff]
    %v1491 = vld [vmem:[#allocation4 + $0x3a0] sm:$0xff]
    %v1492 = vld [vmem:[#allocation4 + $0x3a8] sm:$0xff]
    %v1493 = vld [vmem:[#allocation4 + $0x3b0] sm:$0xff]
    %v1494 = vld [vmem:[#allocation4 + $0x3b8] sm:$0xff]
    %v1495 = vld [vmem:[#allocation4 + $0x3c0] sm:$0xff]
    %v1496 = vld [vmem:[#allocation4 + $0x3c8] sm:$0xff]
    %v1497 = vld [vmem:[#allocation4 + $0x3d0] sm:$0xff]
    %v1498 = vld [vmem:[#allocation4 + $0x3d8] sm:$0xff]
    %v1499 = vld [vmem:[#allocation4 + $0x3e0] sm:$0xff]
    %v1500 = vld [vmem:[#allocation4 + $0x3e8] sm:$0xff]
    %v1501 = vld [vmem:[#allocation4 + $0x3f0] sm:$0xff]
    %v1502 = vld [vmem:[#allocation4 + $0x3f8] sm:$0xff]
    %v1503 = vld [vmem:[#allocation4 + $0x400] sm:$0xff]
    %v1504 = vld [vmem:[#allocation4 + $0x408] sm:$0xff]
    %v1505 = vld [vmem:[#allocation4 + $0x410] sm:$0xff]
    %v1506 = vld [vmem:[#allocation4 + $0x418] sm:$0xff]
    %v1507 = vld [vmem:[#allocation4 + $0x420] sm:$0xff]
    %v1508 = vld [vmem:[#allocation4 + $0x428] sm:$0xff]
    %v1509 = vld [vmem:[#allocation4 + $0x430] sm:$0xff]
    %v1510 = vld [vmem:[#allocation4 + $0x438] sm:$0xff]
    %v1511 = vld [vmem:[#allocation4 + $0x440] sm:$0xff]
    %v1512 = vld [vmem:[#allocation4 + $0x448] sm:$0xff]
    %v1513 = vld [vmem:[#allocation4 + $0x450] sm:$0xff]
    %v1514 = vld [vmem:[#allocation4 + $0x458] sm:$0xff]
    %v1515 = vld [vmem:[#allocation4 + $0x460] sm:$0xff]
    %v1516 = vld [vmem:[#allocation4 + $0x468] sm:$0xff]
    %v1517 = vld [vmem:[#allocation4 + $0x470] sm:$0xff]
    %v1518 = vld [vmem:[#allocation4 + $0x478] sm:$0xff]
    %v1519 = vld [vmem:[#allocation4 + $0x480] sm:$0xff]
    %v1520 = vld [vmem:[#allocation4 + $0x488] sm:$0xff]
    %v1521 = vld [vmem:[#allocation4 + $0x490] sm:$0xff]
    %v1522 = vld [vmem:[#allocation4 + $0x498] sm:$0xff]
    %v1523 = vld [vmem:[#allocation4 + $0x4a0] sm:$0xff]
    %v1524 = vld [vmem:[#allocation4 + $0x4a8] sm:$0xff]
    %v1525 = vld [vmem:[#allocation4 + $0x4b0] sm:$0xff]
    %v1526 = vld [vmem:[#allocation4 + $0x4b8] sm:$0xff]
    %v1527 = vld [vmem:[#allocation4 + $0x4c0] sm:$0xff]
    %v1528 = vld [vmem:[#allocation4 + $0x4c8] sm:$0xff]
    %v1529 = vld [vmem:[#allocation4 + $0x4d0] sm:$0xff]
    %v1530 = vld [vmem:[#allocation4 + $0x4d8] sm:$0xff]
    %v1531 = vld [vmem:[#allocation4 + $0x4e0] sm:$0xff]
    %v1532 = vld [vmem:[#allocation4 + $0x4e8] sm:$0xff]
    %v1533 = vld [vmem:[#allocation4 + $0x4f0] sm:$0xff]
    %v1534 = vld [vmem:[#allocation4 + $0x4f8] sm:$0xff]
    %v1535 = vld [vmem:[#allocation4 + $0x500] sm:$0xff]
    %v1536 = vld [vmem:[#allocation4 + $0x508] sm:$0xff]
    %v1537 = vld [vmem:[#allocation4 + $0x510] sm:$0xff]
    %v1538 = vld [vmem:[#allocation4 + $0x518] sm:$0xff]
    %v1539 = vld [vmem:[#allocation4 + $0x520] sm:$0xff]
    %v1540 = vld [vmem:[#allocation4 + $0x528] sm:$0xff]
    %v1541 = vld [vmem:[#allocation4 + $0x530] sm:$0xff]
    %v1542 = vld [vmem:[#allocation4 + $0x538] sm:$0xff]
    %v1543 = vld [vmem:[#allocation4 + $0x540] sm:$0xff]
    %v1544 = vld [vmem:[#allocation4 + $0x548] sm:$0xff]
    %v1545 = vld [vmem:[#allocation4 + $0x550] sm:$0xff]
    %v1546 = vld [vmem:[#allocation4 + $0x558] sm:$0xff]
    %v1547 = vld [vmem:[#allocation4 + $0x560] sm:$0xff]
    %v1548 = vld [vmem:[#allocation4 + $0x568] sm:$0xff]
    %v1549 = vld [vmem:[#allocation4 + $0x570] sm:$0xff]
    %v1550 = vld [vmem:[#allocation4 + $0x578] sm:$0xff]
    %v1551 = vld [vmem:[#allocation4 + $0x580] sm:$0xff]
    %v1552 = vld [vmem:[#allocation4 + $0x588] sm:$0xff]
    %v1553 = vld [vmem:[#allocation4 + $0x590] sm:$0xff]
    %v1554 = vld [vmem:[#allocation4 + $0x598] sm:$0xff]
    %v1555 = vld [vmem:[#allocation4 + $0x5a0] sm:$0xff]
    %v1556 = vld [vmem:[#allocation4 + $0x5a8] sm:$0xff]
    %v1557 = vld [vmem:[#allocation4 + $0x5b0] sm:$0xff]
    %v1558 = vld [vmem:[#allocation4 + $0x5b8] sm:$0xff]
    %v1559 = vld [vmem:[#allocation4 + $0x5c0] sm:$0xff]
    %v1560 = vld [vmem:[#allocation4 + $0x5c8] sm:$0xff]
    %v1561 = vld [vmem:[#allocation4 + $0x5d0] sm:$0xff]
    %v1562 = vld [vmem:[#allocation4 + $0x5d8] sm:$0xff]
    %v1563 = vld [vmem:[#allocation4 + $0x5e0] sm:$0xff]
    %v1564 = vld [vmem:[#allocation4 + $0x5e8] sm:$0xff]
    %v1565 = vld [vmem:[#allocation4 + $0x5f0] sm:$0xff]
    %v1566 = vld [vmem:[#allocation4 + $0x5f8] sm:$0xff]
    %v1567 = vld [vmem:[#allocation4 + $0x600] sm:$0xff]
    %v1568 = vld [vmem:[#allocation4 + $0x608] sm:$0xff]
    %v1569 = vld [vmem:[#allocation4 + $0x610] sm:$0xff]
    %v1570 = vld [vmem:[#allocation4 + $0x618] sm:$0xff]
    %v1571 = vld [vmem:[#allocation4 + $0x620] sm:$0xff]
    %v1572 = vld [vmem:[#allocation4 + $0x628] sm:$0xff]
    %v1573 = vld [vmem:[#allocation4 + $0x630] sm:$0xff]
    %v1574 = vld [vmem:[#allocation4 + $0x638] sm:$0xff]
    %v1575 = vld [vmem:[#allocation4 + $0x640] sm:$0xff]
    %v1576 = vld [vmem:[#allocation4 + $0x648] sm:$0xff]
    %v1577 = vld [vmem:[#allocation4 + $0x650] sm:$0xff]
    %v1578 = vld [vmem:[#allocation4 + $0x658] sm:$0xff]
    %v1579 = vld [vmem:[#allocation4 + $0x660] sm:$0xff]
    %v1580 = vld [vmem:[#allocation4 + $0x668] sm:$0xff]
    %v1581 = vld [vmem:[#allocation4 + $0x670] sm:$0xff]
    %v1582 = vld [vmem:[#allocation4 + $0x678] sm:$0xff]
    %v1583 = vld [vmem:[#allocation4 + $0x680] sm:$0xff]
    %v1584 = vld [vmem:[#allocation4 + $0x688] sm:$0xff]
    %v1585 = vld [vmem:[#allocation4 + $0x690] sm:$0xff]
    %v1586 = vld [vmem:[#allocation4 + $0x698] sm:$0xff]
    %v1587 = vld [vmem:[#allocation4 + $0x6a0] sm:$0xff]
    %v1588 = vld [vmem:[#allocation4 + $0x6a8] sm:$0xff]
    %v1589 = vld [vmem:[#allocation4 + $0x6b0] sm:$0xff]
    %v1590 = vld [vmem:[#allocation4 + $0x6b8] sm:$0xff]
    %v1591 = vld [vmem:[#allocation4 + $0x6c0] sm:$0xff]
    %v1592 = vld [vmem:[#allocation4 + $0x6c8] sm:$0xff]
    %v1593 = vld [vmem:[#allocation4 + $0x6d0] sm:$0xff]
    %v1594 = vld [vmem:[#allocation4 + $0x6d8] sm:$0xff]
    %v1595 = vld [vmem:[#allocation4 + $0x6e0] sm:$0xff]
    %v1596 = vld [vmem:[#allocation4 + $0x6e8] sm:$0xff]
    %v1597 = vld [vmem:[#allocation4 + $0x6f0] sm:$0xff]
    %v1598 = vld [vmem:[#allocation4 + $0x6f8] sm:$0xff]
    %v1599 = vld [vmem:[#allocation4 + $0x700] sm:$0xff]
    %v1600 = vld [vmem:[#allocation4 + $0x708] sm:$0xff]
    %v1601 = vld [vmem:[#allocation4 + $0x710] sm:$0xff]
    %v1602 = vld [vmem:[#allocation4 + $0x718] sm:$0xff]
    %v1603 = vld [vmem:[#allocation4 + $0x720] sm:$0xff]
    %v1604 = vld [vmem:[#allocation4 + $0x728] sm:$0xff]
    %v1605 = vld [vmem:[#allocation4 + $0x730] sm:$0xff]
    %v1606 = vld [vmem:[#allocation4 + $0x738] sm:$0xff]
    %v1607 = vld [vmem:[#allocation4 + $0x740] sm:$0xff]
    %v1608 = vld [vmem:[#allocation4 + $0x748] sm:$0xff]
    %v1609 = vld [vmem:[#allocation4 + $0x750] sm:$0xff]
    %v1610 = vld [vmem:[#allocation4 + $0x758] sm:$0xff]
    %v1611 = vld [vmem:[#allocation4 + $0x760] sm:$0xff]
    %v1612 = vld [vmem:[#allocation4 + $0x768] sm:$0xff]
    %v1613 = vld [vmem:[#allocation4 + $0x770] sm:$0xff]
    %v1614 = vld [vmem:[#allocation4 + $0x778] sm:$0xff]
    %v1615 = vld [vmem:[#allocation4 + $0x780] sm:$0xff]
    %v1616 = vld [vmem:[#allocation4 + $0x788] sm:$0xff]
    %v1617 = vld [vmem:[#allocation4 + $0x790] sm:$0xff]
    %v1618 = vld [vmem:[#allocation4 + $0x798] sm:$0xff]
    %v1619 = vld [vmem:[#allocation4 + $0x7a0] sm:$0xff]
    %v1620 = vld [vmem:[#allocation4 + $0x7a8] sm:$0xff]
    %v1621 = vld [vmem:[#allocation4 + $0x7b0] sm:$0xff]
    %v1622 = vld [vmem:[#allocation4 + $0x7b8] sm:$0xff]
    %v1623 = vld [vmem:[#allocation4 + $0x7c0] sm:$0xff]
    %v1624 = vld [vmem:[#allocation4 + $0x7c8] sm:$0xff]
    %v1625 = vld [vmem:[#allocation4 + $0x7d0] sm:$0xff]
    %v1626 = vld [vmem:[#allocation4 + $0x7d8] sm:$0xff]
    %v1627 = vld [vmem:[#allocation4 + $0x7e0] sm:$0xff]
    %v1628 = vld [vmem:[#allocation4 + $0x7e8] sm:$0xff]
    %v1629 = vld [vmem:[#allocation4 + $0x7f0] sm:$0xff]
    %v1630 = vld [vmem:[#allocation4 + $0x7f8] sm:$0xff]
    %v1631 = vld [vmem:[#allocation4 + $0x800] sm:$0xff]
    %v1632 = vld [vmem:[#allocation4 + $0x808] sm:$0xff]
    %v1633 = vld [vmem:[#allocation4 + $0x810] sm:$0xff]
    %v1634 = vld [vmem:[#allocation4 + $0x818] sm:$0xff]
    %v1635 = vld [vmem:[#allocation4 + $0x820] sm:$0xff]
    %v1636 = vld [vmem:[#allocation4 + $0x828] sm:$0xff]
    %v1637 = vld [vmem:[#allocation4 + $0x830] sm:$0xff]
    %v1638 = vld [vmem:[#allocation4 + $0x838] sm:$0xff]
    %v1639 = vld [vmem:[#allocation4 + $0x840] sm:$0xff]
    %v1640 = vld [vmem:[#allocation4 + $0x848] sm:$0xff]
    %v1641 = vld [vmem:[#allocation4 + $0x850] sm:$0xff]
    %v1642 = vld [vmem:[#allocation4 + $0x858] sm:$0xff]
    %v1643 = vld [vmem:[#allocation4 + $0x860] sm:$0xff]
    %v1644 = vld [vmem:[#allocation4 + $0x868] sm:$0xff]
    %v1645 = vld [vmem:[#allocation4 + $0x870] sm:$0xff]
    %v1646 = vld [vmem:[#allocation4 + $0x878] sm:$0xff]
    %v1647 = vld [vmem:[#allocation4 + $0x880] sm:$0xff]
    %v1648 = vld [vmem:[#allocation4 + $0x888] sm:$0xff]
    %v1649 = vld [vmem:[#allocation4 + $0x890] sm:$0xff]
    %v1650 = vld [vmem:[#allocation4 + $0x898] sm:$0xff]
    %v1651 = vld [vmem:[#allocation4 + $0x8a0] sm:$0xff]
    %v1652 = vld [vmem:[#allocation4 + $0x8a8] sm:$0xff]
    %v1653 = vld [vmem:[#allocation4 + $0x8b0] sm:$0xff]
    %v1654 = vld [vmem:[#allocation4 + $0x8b8] sm:$0xff]
    %v1655 = vld [vmem:[#allocation4 + $0x8c0] sm:$0xff]
    %v1656 = vld [vmem:[#allocation4 + $0x8c8] sm:$0xff]
    %v1657 = vld [vmem:[#allocation4 + $0x8d0] sm:$0xff]
    %v1658 = vld [vmem:[#allocation4 + $0x8d8] sm:$0xff]
    %v1659 = vld [vmem:[#allocation4 + $0x8e0] sm:$0xff]
    %v1660 = vld [vmem:[#allocation4 + $0x8e8] sm:$0xff]
    %v1661 = vld [vmem:[#allocation4 + $0x8f0] sm:$0xff]
    %v1662 = vld [vmem:[#allocation4 + $0x8f8] sm:$0xff]
    %v1663 = vld [vmem:[#allocation4 + $0x900] sm:$0xff]
    %v1664 = vld [vmem:[#allocation4 + $0x908] sm:$0xff]
    %v1665 = vld [vmem:[#allocation4 + $0x910] sm:$0xff]
    %v1666 = vld [vmem:[#allocation4 + $0x918] sm:$0xff]
    %v1667 = vld [vmem:[#allocation4 + $0x920] sm:$0xff]
    %v1668 = vld [vmem:[#allocation4 + $0x928] sm:$0xff]
    %v1669 = vld [vmem:[#allocation4 + $0x930] sm:$0xff]
    %v1670 = vld [vmem:[#allocation4 + $0x938] sm:$0xff]
    %v1671 = vld [vmem:[#allocation4 + $0x940] sm:$0xff]
    %v1672 = vld [vmem:[#allocation4 + $0x948] sm:$0xff]
    %v1673 = vld [vmem:[#allocation4 + $0x950] sm:$0xff]
    %v1674 = vld [vmem:[#allocation4 + $0x958] sm:$0xff]
    %v1675 = vld [vmem:[#allocation4 + $0x960] sm:$0xff]
    %v1676 = vld [vmem:[#allocation4 + $0x968] sm:$0xff]
    %v1677 = vld [vmem:[#allocation4 + $0x970] sm:$0xff]
    %v1678 = vld [vmem:[#allocation4 + $0x978] sm:$0xff]
    %v1679 = vld [vmem:[#allocation4 + $0x980] sm:$0xff]
    %v1680 = vld [vmem:[#allocation4 + $0x988] sm:$0xff]
    %v1681 = vld [vmem:[#allocation4 + $0x990] sm:$0xff]
    %v1682 = vld [vmem:[#allocation4 + $0x998] sm:$0xff]
    %v1683 = vld [vmem:[#allocation4 + $0x9a0] sm:$0xff]
    %v1684 = vld [vmem:[#allocation4 + $0x9a8] sm:$0xff]
    %v1685 = vld [vmem:[#allocation4 + $0x9b0] sm:$0xff]
    %v1686 = vld [vmem:[#allocation4 + $0x9b8] sm:$0xff]
    %v1687 = vld [vmem:[#allocation4 + $0x9c0] sm:$0xff]
    %v1688 = vld [vmem:[#allocation4 + $0x9c8] sm:$0xff]
    %v1689 = vld [vmem:[#allocation4 + $0x9d0] sm:$0xff]
    %v1690 = vld [vmem:[#allocation4 + $0x9d8] sm:$0xff]
    %v1691 = vld [vmem:[#allocation4 + $0x9e0] sm:$0xff]
    %v1692 = vld [vmem:[#allocation4 + $0x9e8] sm:$0xff]
    %v1693 = vld [vmem:[#allocation4 + $0x9f0] sm:$0xff]
    %v1694 = vld [vmem:[#allocation4 + $0x9f8] sm:$0xff]
    %v1695 = vld [vmem:[#allocation4 + $0xa00] sm:$0xff]
    %v1696 = vld [vmem:[#allocation4 + $0xa08] sm:$0xff]
    %v1697 = vld [vmem:[#allocation4 + $0xa10] sm:$0xff]
    %v1698 = vld [vmem:[#allocation4 + $0xa18] sm:$0xff]
    %v1699 = vld [vmem:[#allocation4 + $0xa20] sm:$0xff]
    %v1700 = vld [vmem:[#allocation4 + $0xa28] sm:$0xff]
    %v1701 = vld [vmem:[#allocation4 + $0xa30] sm:$0xff]
    %v1702 = vld [vmem:[#allocation4 + $0xa38] sm:$0xff]
    %v1703 = vld [vmem:[#allocation4 + $0xa40] sm:$0xff]
    %v1704 = vld [vmem:[#allocation4 + $0xa48] sm:$0xff]
    %v1705 = vld [vmem:[#allocation4 + $0xa50] sm:$0xff]
    %v1706 = vld [vmem:[#allocation4 + $0xa58] sm:$0xff]
    %v1707 = vld [vmem:[#allocation4 + $0xa60] sm:$0xff]
    %v1708 = vld [vmem:[#allocation4 + $0xa68] sm:$0xff]
    %v1709 = vld [vmem:[#allocation4 + $0xa70] sm:$0xff]
    %v1710 = vld [vmem:[#allocation4 + $0xa78] sm:$0xff]
    %v1711 = vld [vmem:[#allocation4 + $0xa80] sm:$0xff]
    %v1712 = vld [vmem:[#allocation4 + $0xa88] sm:$0xff]
    %v1713 = vld [vmem:[#allocation4 + $0xa90] sm:$0xff]
    %v1714 = vld [vmem:[#allocation4 + $0xa98] sm:$0xff]
    %v1715 = vld [vmem:[#allocation4 + $0xaa0] sm:$0xff]
    %v1716 = vld [vmem:[#allocation4 + $0xaa8] sm:$0xff]
    %v1717 = vld [vmem:[#allocation4 + $0xab0] sm:$0xff]
    %v1718 = vld [vmem:[#allocation4 + $0xab8] sm:$0xff]
    %v1719 = vld [vmem:[#allocation4 + $0xac0] sm:$0xff]
    %v1720 = vld [vmem:[#allocation4 + $0xac8] sm:$0xff]
    %v1721 = vld [vmem:[#allocation4 + $0xad0] sm:$0xff]
    %v1722 = vld [vmem:[#allocation4 + $0xad8] sm:$0xff]
    %v1723 = vld [vmem:[#allocation4 + $0xae0] sm:$0xff]
    %v1724 = vld [vmem:[#allocation4 + $0xae8] sm:$0xff]
    %v1725 = vld [vmem:[#allocation4 + $0xaf0] sm:$0xff]
    %v1726 = vld [vmem:[#allocation4 + $0xaf8] sm:$0xff]
    %v1727 = vld [vmem:[#allocation4 + $0xb00] sm:$0xff]
    %v1728 = vld [vmem:[#allocation4 + $0xb08] sm:$0xff]
    %v1729 = vld [vmem:[#allocation4 + $0xb10] sm:$0xff]
    %v1730 = vld [vmem:[#allocation4 + $0xb18] sm:$0xff]
    %v1731 = vld [vmem:[#allocation4 + $0xb20] sm:$0xff]
    %v1732 = vld [vmem:[#allocation4 + $0xb28] sm:$0xff]
    %v1733 = vld [vmem:[#allocation4 + $0xb30] sm:$0xff]
    %v1734 = vld [vmem:[#allocation4 + $0xb38] sm:$0xff]
    %v1735 = vld [vmem:[#allocation4 + $0xb40] sm:$0xff]
    %v1736 = vld [vmem:[#allocation4 + $0xb48] sm:$0xff]
    %v1737 = vld [vmem:[#allocation4 + $0xb50] sm:$0xff]
    %v1738 = vld [vmem:[#allocation4 + $0xb58] sm:$0xff]
    %v1739 = vld [vmem:[#allocation4 + $0xb60] sm:$0xff]
    %v1740 = vld [vmem:[#allocation4 + $0xb68] sm:$0xff]
    %v1741 = vld [vmem:[#allocation4 + $0xb70] sm:$0xff]
    %v1742 = vld [vmem:[#allocation4 + $0xb78] sm:$0xff]
    %v1743 = vld [vmem:[#allocation4 + $0xb80] sm:$0xff]
    %v1744 = vld [vmem:[#allocation4 + $0xb88] sm:$0xff]
    %v1745 = vld [vmem:[#allocation4 + $0xb90] sm:$0xff]
    %v1746 = vld [vmem:[#allocation4 + $0xb98] sm:$0xff]
    %v1747 = vld [vmem:[#allocation4 + $0xba0] sm:$0xff]
    %v1748 = vld [vmem:[#allocation4 + $0xba8] sm:$0xff]
    %v1749 = vld [vmem:[#allocation4 + $0xbb0] sm:$0xff]
    %v1750 = vld [vmem:[#allocation4 + $0xbb8] sm:$0xff]
    %v1751 = vld [vmem:[#allocation4 + $0xbc0] sm:$0xff]
    %v1752 = vld [vmem:[#allocation4 + $0xbc8] sm:$0xff]
    %v1753 = vld [vmem:[#allocation4 + $0xbd0] sm:$0xff]
    %v1754 = vld [vmem:[#allocation4 + $0xbd8] sm:$0xff]
    %v1755 = vld [vmem:[#allocation4 + $0xbe0] sm:$0xff]
    %v1756 = vld [vmem:[#allocation4 + $0xbe8] sm:$0xff]
    %v1757 = vld [vmem:[#allocation4 + $0xbf0] sm:$0xff]
    %v1758 = vld [vmem:[#allocation4 + $0xbf8] sm:$0xff]
    %v1759 = vld [vmem:[#allocation4 + $0xc00] sm:$0xff]
    %v1760 = vld [vmem:[#allocation4 + $0xc08] sm:$0xff]
    %v1761 = vld [vmem:[#allocation4 + $0xc10] sm:$0xff]
    %v1762 = vld [vmem:[#allocation4 + $0xc18] sm:$0xff]
    %v1763 = vld [vmem:[#allocation4 + $0xc20] sm:$0xff]
    %v1764 = vld [vmem:[#allocation4 + $0xc28] sm:$0xff]
    %v1765 = vld [vmem:[#allocation4 + $0xc30] sm:$0xff]
    %v1766 = vld [vmem:[#allocation4 + $0xc38] sm:$0xff]
    %v1767 = vld [vmem:[#allocation4 + $0xc40] sm:$0xff]
    %v1768 = vld [vmem:[#allocation4 + $0xc48] sm:$0xff]
    %v1769 = vld [vmem:[#allocation4 + $0xc50] sm:$0xff]
    %v1770 = vld [vmem:[#allocation4 + $0xc58] sm:$0xff]
    %v1771 = vld [vmem:[#allocation4 + $0xc60] sm:$0xff]
    %v1772 = vld [vmem:[#allocation4 + $0xc68] sm:$0xff]
    %v1773 = vld [vmem:[#allocation4 + $0xc70] sm:$0xff]
    %v1774 = vld [vmem:[#allocation4 + $0xc78] sm:$0xff]
    %v1775 = vld [vmem:[#allocation4 + $0xc80] sm:$0xff]
    %v1776 = vld [vmem:[#allocation4 + $0xc88] sm:$0xff]
    %v1777 = vld [vmem:[#allocation4 + $0xc90] sm:$0xff]
    %v1778 = vld [vmem:[#allocation4 + $0xc98] sm:$0xff]
    %v1779 = vld [vmem:[#allocation4 + $0xca0] sm:$0xff]
    %v1780 = vld [vmem:[#allocation4 + $0xca8] sm:$0xff]
    %v1781 = vld [vmem:[#allocation4 + $0xcb0] sm:$0xff]
    %v1782 = vld [vmem:[#allocation4 + $0xcb8] sm:$0xff]
    %v1783 = vld [vmem:[#allocation4 + $0xcc0] sm:$0xff]
    %v1784 = vld [vmem:[#allocation4 + $0xcc8] sm:$0xff]
    %v1785 = vld [vmem:[#allocation4 + $0xcd0] sm:$0xff]
    %v1786 = vld [vmem:[#allocation4 + $0xcd8] sm:$0xff]
    %v1787 = vld [vmem:[#allocation4 + $0xce0] sm:$0xff]
    %v1788 = vld [vmem:[#allocation4 + $0xce8] sm:$0xff]
    %v1789 = vld [vmem:[#allocation4 + $0xcf0] sm:$0xff]
    %v1790 = vld [vmem:[#allocation4 + $0xcf8] sm:$0xff]
    %v1791 = vld [vmem:[#allocation4 + $0xd00] sm:$0xff]
    %v1792 = vld [vmem:[#allocation4 + $0xd08] sm:$0xff]
    %v1793 = vld [vmem:[#allocation4 + $0xd10] sm:$0xff]
    %v1794 = vld [vmem:[#allocation4 + $0xd18] sm:$0xff]
    %v1795 = vld [vmem:[#allocation4 + $0xd20] sm:$0xff]
    %v1796 = vld [vmem:[#allocation4 + $0xd28] sm:$0xff]
    %v1797 = vld [vmem:[#allocation4 + $0xd30] sm:$0xff]
    %v1798 = vld [vmem:[#allocation4 + $0xd38] sm:$0xff]
    %v1799 = vld [vmem:[#allocation4 + $0xd40] sm:$0xff]
    %v1800 = vld [vmem:[#allocation4 + $0xd48] sm:$0xff]
    %v1801 = vld [vmem:[#allocation4 + $0xd50] sm:$0xff]
    %v1802 = vld [vmem:[#allocation4 + $0xd58] sm:$0xff]
    %v1803 = vld [vmem:[#allocation4 + $0xd60] sm:$0xff]
    %v1804 = vld [vmem:[#allocation4 + $0xd68] sm:$0xff]
    %v1805 = vld [vmem:[#allocation4 + $0xd70] sm:$0xff]
    %v1806 = vld [vmem:[#allocation4 + $0xd78] sm:$0xff]
    %v1807 = vld [vmem:[#allocation4 + $0xd80] sm:$0xff]
    %v1808 = vld [vmem:[#allocation4 + $0xd88] sm:$0xff]
    %v1809 = vld [vmem:[#allocation4 + $0xd90] sm:$0xff]
    %v1810 = vld [vmem:[#allocation4 + $0xd98] sm:$0xff]
    %v1811 = vld [vmem:[#allocation4 + $0xda0] sm:$0xff]
    %v1812 = vld [vmem:[#allocation4 + $0xda8] sm:$0xff]
    %v1813 = vld [vmem:[#allocation4 + $0xdb0] sm:$0xff]
    %v1814 = vld [vmem:[#allocation4 + $0xdb8] sm:$0xff]
    %v1815 = vld [vmem:[#allocation4 + $0xdc0] sm:$0xff]
    %v1816 = vld [vmem:[#allocation4 + $0xdc8] sm:$0xff]
    %v1817 = vld [vmem:[#allocation4 + $0xdd0] sm:$0xff]
    %v1818 = vld [vmem:[#allocation4 + $0xdd8] sm:$0xff]
    %v1819 = vld [vmem:[#allocation4 + $0xde0] sm:$0xff]
    %v1820 = vld [vmem:[#allocation4 + $0xde8] sm:$0xff]
    %v1821 = vld [vmem:[#allocation4 + $0xdf0] sm:$0xff]
    %v1822 = vld [vmem:[#allocation4 + $0xdf8] sm:$0xff]
    %v1823 = vld [vmem:[#allocation13] sm:$0xff]
    %v1825 = vlaneseq
    %v1826 = vshrl.u32 %v1825, 7
    %v1827 = vsub.s32 0, %v1826
    %v1828 = vrot.slane %v1823, %v1827
    %v1829 = vlaneseq
    %v1830 = vshrl.u32 %v1829, 7
    %v1831 = vsub.s32 1, %v1830
    %v1832 = vrot.slane %v1823, %v1831
    %v1833 = vlaneseq
    %v1834 = vshrl.u32 %v1833, 7
    %v1835 = vsub.s32 2, %v1834
    %v1836 = vrot.slane %v1823, %v1835
    %v1837 = vlaneseq
    %v1838 = vshrl.u32 %v1837, 7
    %v1839 = vsub.s32 3, %v1838
    %v1840 = vrot.slane %v1823, %v1839
    %v1841 = vlaneseq
    %v1842 = vshrl.u32 %v1841, 7
    %v1843 = vsub.s32 4, %v1842
    %v1844 = vrot.slane %v1823, %v1843
    %v1845 = vlaneseq
    %v1846 = vshrl.u32 %v1845, 7
    %v1847 = vsub.s32 5, %v1846
    %v1848 = vrot.slane %v1823, %v1847
    %v1849 = vlaneseq
    %v1850 = vshrl.u32 %v1849, 7
    %v1851 = vsub.s32 6, %v1850
    %v1852 = vrot.slane %v1823, %v1851
    %1860 = vmatprep.subr.bf16.mxu0 %v1376
    %1861 = vmatpush1.bf16.msra.mxu0 %v1375
    %1862 = vmatprep.subr.bf16.mxu0 %v1383
    %1863 = vmatpush1.bf16.msra.mxu0 %v1382
    %1864 = vmatprep.subr.bf16.mxu0 %v1390
    %1865 = vmatpush1.bf16.msra.mxu0 %v1389
    %1866 = vmatprep.subr.bf16.mxu0 %v1397
    %1867 = vmatpush1.bf16.msra.mxu0 %v1396
    %1868 = vmatprep.subr.bf16.mxu0 %v1404
    %1869 = vmatpush1.bf16.msra.mxu0 %v1403
    %1870 = vmatprep.subr.bf16.mxu0 %v1411
    %1871 = vmatpush1.bf16.msra.mxu0 %v1410
    %1872 = vmatprep.subr.bf16.mxu0 %v1418
    %1873 = vmatpush1.bf16.msra.mxu0 %v1417
    %1874 = vmatprep.subr.bf16.mxu0 %v1425
    %1875 = vmatpush1.bf16.msra.mxu0 %v1424
    %1876 = vmatprep.subr.bf16.mxu0 %v1432
    %1877 = vmatpush1.bf16.msra.mxu0 %v1431
    %1878 = vmatprep.subr.bf16.mxu0 %v1439
    %1879 = vmatpush1.bf16.msra.mxu0 %v1438
    %1880 = vmatprep.subr.bf16.mxu0 %v1446
    %1881 = vmatpush1.bf16.msra.mxu0 %v1445
    %1882 = vmatprep.subr.bf16.mxu0 %v1453
    %1883 = vmatpush1.bf16.msra.mxu0 %v1452
    %1884 = vmatprep.subr.bf16.mxu0 %v1460
    %1885 = vmatpush1.bf16.msra.mxu0 %v1459
    %1886 = vmatprep.subr.bf16.mxu0 %v1467
    %1887 = vmatpush1.bf16.msra.mxu0 %v1466
    %1888 = vmatprep.subr.bf16.mxu0 %v1474
    %1889 = vmatpush1.bf16.msra.mxu0 %v1473
    %1890 = vmatprep.subr.bf16.mxu0 %v1481
    %1891 = vmatpush1.bf16.msra.mxu0 %v1480
    %1892 = vmatprep.mubr.bf16.mxu0 %v1368
    %1893 = vmatmul.mubr.bf16.gmra.mrb[0].mxu0 %v1367
    %v1894 = vpop.f32.mrb[0].mxu0
    %v1895 = vadd.f32 %v1828, %v1894
    %v1896 = vpop.f32.mrb[0].mxu0
    %v1897 = vadd.f32 %v1832, %v1896
    %v1898 = vpop.f32.mrb[0].mxu0
    %v1899 = vadd.f32 %v1828, %v1898
    %v1900 = vpop.f32.mrb[0].mxu0
    %v1901 = vadd.f32 %v1832, %v1900
    %1902 = vdwg.mxu0
    %1903 = vmatprep.subr.bf16.mxu0 %v1488
    %1904 = vmatpush1.bf16.msra.mxu0 %v1487
    %1905 = vmatprep.subr.bf16.mxu0 %v1495
    %1906 = vmatpush1.bf16.msra.mxu0 %v1494
    %1907 = vmatprep.subr.bf16.mxu0 %v1502
    %1908 = vmatpush1.bf16.msra.mxu0 %v1501
    %1909 = vmatprep.subr.bf16.mxu0 %v1509
    %1910 = vmatpush1.bf16.msra.mxu0 %v1508
    %1911 = vmatprep.subr.bf16.mxu0 %v1516
    %1912 = vmatpush1.bf16.msra.mxu0 %v1515
    %1913 = vmatprep.subr.bf16.mxu0 %v1523
    %1914 = vmatpush1.bf16.msra.mxu0 %v1522
    %1915 = vmatprep.subr.bf16.mxu0 %v1530
    %1916 = vmatpush1.bf16.msra.mxu0 %v1529
    %1917 = vmatprep.subr.bf16.mxu0 %v1537
    %1918 = vmatpush1.bf16.msra.mxu0 %v1536
    %1919 = vmatprep.subr.bf16.mxu0 %v1544
    %1920 = vmatpush1.bf16.msra.mxu0 %v1543
    %1921 = vmatprep.subr.bf16.mxu0 %v1551
    %1922 = vmatpush1.bf16.msra.mxu0 %v1550
    %1923 = vmatprep.subr.bf16.mxu0 %v1558
    %1924 = vmatpush1.bf16.msra.mxu0 %v1557
    %1925 = vmatprep.subr.bf16.mxu0 %v1565
    %1926 = vmatpush1.bf16.msra.mxu0 %v1564
    %1927 = vmatprep.subr.bf16.mxu0 %v1572
    %1928 = vmatpush1.bf16.msra.mxu0 %v1571
    %1929 = vmatprep.subr.bf16.mxu0 %v1579
    %1930 = vmatpush1.bf16.msra.mxu0 %v1578
    %1931 = vmatprep.subr.bf16.mxu0 %v1586
    %1932 = vmatpush1.bf16.msra.mxu0 %v1585
    %1933 = vmatprep.subr.bf16.mxu0 %v1593
    %1934 = vmatpush1.bf16.msra.mxu0 %v1592
    %1935 = vmatprep.mubr.bf16.mxu0 %v1370
    %1936 = vmatmul.mubr.bf16.gmra.mrb[0].mxu0 %v1369
    %v1937 = vpop.f32.mrb[0].mxu0
    %v1938 = vadd.f32 %v1895, %v1937
    %v1939 = vpop.f32.mrb[0].mxu0
    %v1940 = vadd.f32 %v1897, %v1939
    %v1941 = vpop.f32.mrb[0].mxu0
    %v1942 = vadd.f32 %v1899, %v1941
    %v1943 = vpop.f32.mrb[0].mxu0
    %v1944 = vadd.f32 %v1901, %v1943
    %1945 = vdwg.mxu0
    %1946 = vmatprep.subr.bf16.mxu0 %v1600
    %1947 = vmatpush1.bf16.msra.mxu0 %v1599
    %1948 = vmatprep.subr.bf16.mxu0 %v1607
    %1949 = vmatpush1.bf16.msra.mxu0 %v1606
    %1950 = vmatprep.subr.bf16.mxu0 %v1614
    %1951 = vmatpush1.bf16.msra.mxu0 %v1613
    %1952 = vmatprep.subr.bf16.mxu0 %v1621
    %1953 = vmatpush1.bf16.msra.mxu0 %v1620
    %1954 = vmatprep.subr.bf16.mxu0 %v1628
    %1955 = vmatpush1.bf16.msra.mxu0 %v1627
    %1956 = vmatprep.subr.bf16.mxu0 %v1635
    %1957 = vmatpush1.bf16.msra.mxu0 %v1634
    %1958 = vmatprep.subr.bf16.mxu0 %v1642
    %1959 = vmatpush1.bf16.msra.mxu0 %v1641
    %1960 = vmatprep.subr.bf16.mxu0 %v1649
    %1961 = vmatpush1.bf16.msra.mxu0 %v1648
    %1962 = vmatprep.subr.bf16.mxu0 %v1656
    %1963 = vmatpush1.bf16.msra.mxu0 %v1655
    %1964 = vmatprep.subr.bf16.mxu0 %v1663
    %1965 = vmatpush1.bf16.msra.mxu0 %v1662
    %1966 = vmatprep.subr.bf16.mxu0 %v1670
    %1967 = vmatpush1.bf16.msra.mxu0 %v1669
    %1968 = vmatprep.subr.bf16.mxu0 %v1677
    %1969 = vmatpush1.bf16.msra.mxu0 %v1676
    %1970 = vmatprep.subr.bf16.mxu0 %v1684
    %1971 = vmatpush1.bf16.msra.mxu0 %v1683
    %1972 = vmatprep.subr.bf16.mxu0 %v1691
    %1973 = vmatpush1.bf16.msra.mxu0 %v1690
    %1974 = vmatprep.subr.bf16.mxu0 %v1698
    %1975 = vmatpush1.bf16.msra.mxu0 %v1697
    %1976 = vmatprep.subr.bf16.mxu0 %v1705
    %1977 = vmatpush1.bf16.msra.mxu0 %v1704
    %1978 = vmatprep.mubr.bf16.mxu0 %v1372
    %1979 = vmatmul.mubr.bf16.gmra.mrb[0].mxu0 %v1371
    %v1980 = vpop.f32.mrb[0].mxu0
    %v1981 = vadd.f32 %v1938, %v1980
    %v1982 = vpop.f32.mrb[0].mxu0
    %v1983 = vadd.f32 %v1940, %v1982
    %v1984 = vpop.f32.mrb[0].mxu0
    %v1985 = vadd.f32 %v1942, %v1984
    %v1986 = vpop.f32.mrb[0].mxu0
    %v1987 = vadd.f32 %v1944, %v1986
    %1988 = vdwg.mxu0
    %1989 = vmatprep.subr.bf16.mxu0 %v1712
    %1990 = vmatpush1.bf16.msra.mxu0 %v1711
    %1991 = vmatprep.subr.bf16.mxu0 %v1719
    %1992 = vmatpush1.bf16.msra.mxu0 %v1718
    %1993 = vmatprep.subr.bf16.mxu0 %v1726
    %1994 = vmatpush1.bf16.msra.mxu0 %v1725
    %1995 = vmatprep.subr.bf16.mxu0 %v1733
    %1996 = vmatpush1.bf16.msra.mxu0 %v1732
    %1997 = vmatprep.subr.bf16.mxu0 %v1740
    %1998 = vmatpush1.bf16.msra.mxu0 %v1739
    %1999 = vmatprep.subr.bf16.mxu0 %v1747
    %2000 = vmatpush1.bf16.msra.mxu0 %v1746
    %2001 = vmatprep.subr.bf16.mxu0 %v1754
    %2002 = vmatpush1.bf16.msra.mxu0 %v1753
    %2003 = vmatprep.subr.bf16.mxu0 %v1761
    %2004 = vmatpush1.bf16.msra.mxu0 %v1760
    %2005 = vmatprep.subr.bf16.mxu0 %v1768
    %2006 = vmatpush1.bf16.msra.mxu0 %v1767
    %2007 = vmatprep.subr.bf16.mxu0 %v1775
    %2008 = vmatpush1.bf16.msra.mxu0 %v1774
    %2009 = vmatprep.subr.bf16.mxu0 %v1782
    %2010 = vmatpush1.bf16.msra.mxu0 %v1781
    %2011 = vmatprep.subr.bf16.mxu0 %v1789
    %2012 = vmatpush1.bf16.msra.mxu0 %v1788
    %2013 = vmatprep.subr.bf16.mxu0 %v1796
    %2014 = vmatpush1.bf16.msra.mxu0 %v1795
    %2015 = vmatprep.subr.bf16.mxu0 %v1803
    %2016 = vmatpush1.bf16.msra.mxu0 %v1802
    %2017 = vmatprep.subr.bf16.mxu0 %v1810
    %2018 = vmatpush1.bf16.msra.mxu0 %v1809
    %2019 = vmatprep.subr.bf16.mxu0 %v1817
    %2020 = vmatpush1.bf16.msra.mxu0 %v1816
    %2021 = vmatprep.mubr.bf16.mxu0 %v1374
    %2022 = vmatmul.mubr.bf16.gmra.mrb[0].mxu0 %v1373
    %v2023 = vpop.f32.mrb[0].mxu0
    %v2024 = vadd.f32 %v1981, %v2023
    %v2025 = vpop.f32.mrb[0].mxu0
    %v2026 = vadd.f32 %v1983, %v2025
    %v2027 = vpop.f32.mrb[0].mxu0
    %v2028 = vadd.f32 %v1985, %v2027
    %v2029 = vpop.f32.mrb[0].mxu0
    %v2030 = vadd.f32 %v1987, %v2029
    %2031 = vdwg.mxu0
    %2032 = vmatprep.subr.bf16.mxu0 %v1378
    %2033 = vmatpush1.bf16.msra.mxu0 %v1377
    %2034 = vmatprep.subr.bf16.mxu0 %v1385
    %2035 = vmatpush1.bf16.msra.mxu0 %v1384
    %2036 = vmatprep.subr.bf16.mxu0 %v1392
    %2037 = vmatpush1.bf16.msra.mxu0 %v1391
    %2038 = vmatprep.subr.bf16.mxu0 %v1399
    %2039 = vmatpush1.bf16.msra.mxu0 %v1398
    %2040 = vmatprep.subr.bf16.mxu0 %v1406
    %2041 = vmatpush1.bf16.msra.mxu0 %v1405
    %2042 = vmatprep.subr.bf16.mxu0 %v1413
    %2043 = vmatpush1.bf16.msra.mxu0 %v1412
    %2044 = vmatprep.subr.bf16.mxu0 %v1420
    %2045 = vmatpush1.bf16.msra.mxu0 %v1419
    %2046 = vmatprep.subr.bf16.mxu0 %v1427
    %2047 = vmatpush1.bf16.msra.mxu0 %v1426
    %2048 = vmatprep.subr.bf16.mxu0 %v1434
    %2049 = vmatpush1.bf16.msra.mxu0 %v1433
    %2050 = vmatprep.subr.bf16.mxu0 %v1441
    %2051 = vmatpush1.bf16.msra.mxu0 %v1440
    %2052 = vmatprep.subr.bf16.mxu0 %v1448
    %2053 = vmatpush1.bf16.msra.mxu0 %v1447
    %2054 = vmatprep.subr.bf16.mxu0 %v1455
    %2055 = vmatpush1.bf16.msra.mxu0 %v1454
    %2056 = vmatprep.subr.bf16.mxu0 %v1462
    %2057 = vmatpush1.bf16.msra.mxu0 %v1461
    %2058 = vmatprep.subr.bf16.mxu0 %v1469
    %2059 = vmatpush1.bf16.msra.mxu0 %v1468
    %2060 = vmatprep.subr.bf16.mxu0 %v1476
    %2061 = vmatpush1.bf16.msra.mxu0 %v1475
    %2062 = vmatprep.subr.bf16.mxu0 %v1483
    %2063 = vmatpush1.bf16.msra.mxu0 %v1482
    %2064 = vmatprep.mubr.bf16.mxu0 %v1368
    %2065 = vmatmul.mubr.bf16.gmra.mrb[0].mxu0 %v1367
    %v2066 = vpop.f32.mrb[0].mxu0
    %v2067 = vadd.f32 %v1836, %v2066
    %v2068 = vpop.f32.mrb[0].mxu0
    %v2069 = vadd.f32 %v1840, %v2068
    %v2070 = vpop.f32.mrb[0].mxu0
    %v2071 = vadd.f32 %v1836, %v2070
    %v2072 = vpop.f32.mrb[0].mxu0
    %v2073 = vadd.f32 %v1840, %v2072
    %2074 = vdwg.mxu0
    %2075 = vmatprep.subr.bf16.mxu0 %v1490
    %2076 = vmatpush1.bf16.msra.mxu0 %v1489
    %2077 = vmatprep.subr.bf16.mxu0 %v1497
    %2078 = vmatpush1.bf16.msra.mxu0 %v1496
    %2079 = vmatprep.subr.bf16.mxu0 %v1504
    %2080 = vmatpush1.bf16.msra.mxu0 %v1503
    %2081 = vmatprep.subr.bf16.mxu0 %v1511
    %2082 = vmatpush1.bf16.msra.mxu0 %v1510
    %2083 = vmatprep.subr.bf16.mxu0 %v1518
    %2084 = vmatpush1.bf16.msra.mxu0 %v1517
    %2085 = vmatprep.subr.bf16.mxu0 %v1525
    %2086 = vmatpush1.bf16.msra.mxu0 %v1524
    %2087 = vmatprep.subr.bf16.mxu0 %v1532
    %2088 = vmatpush1.bf16.msra.mxu0 %v1531
    %2089 = vmatprep.subr.bf16.mxu0 %v1539
    %2090 = vmatpush1.bf16.msra.mxu0 %v1538
    %2091 = vmatprep.subr.bf16.mxu0 %v1546
    %2092 = vmatpush1.bf16.msra.mxu0 %v1545
    %2093 = vmatprep.subr.bf16.mxu0 %v1553
    %2094 = vmatpush1.bf16.msra.mxu0 %v1552
    %2095 = vmatprep.subr.bf16.mxu0 %v1560
    %2096 = vmatpush1.bf16.msra.mxu0 %v1559
    %2097 = vmatprep.subr.bf16.mxu0 %v1567
    %2098 = vmatpush1.bf16.msra.mxu0 %v1566
    %2099 = vmatprep.subr.bf16.mxu0 %v1574
    %2100 = vmatpush1.bf16.msra.mxu0 %v1573
    %2101 = vmatprep.subr.bf16.mxu0 %v1581
    %2102 = vmatpush1.bf16.msra.mxu0 %v1580
    %2103 = vmatprep.subr.bf16.mxu0 %v1588
    %2104 = vmatpush1.bf16.msra.mxu0 %v1587
    %2105 = vmatprep.subr.bf16.mxu0 %v1595
    %2106 = vmatpush1.bf16.msra.mxu0 %v1594
    %2107 = vmatprep.mubr.bf16.mxu0 %v1370
    %2108 = vmatmul.mubr.bf16.gmra.mrb[0].mxu0 %v1369
    %v2109 = vpop.f32.mrb[0].mxu0
    %v2110 = vadd.f32 %v2067, %v2109
    %v2111 = vpop.f32.mrb[0].mxu0
    %v2112 = vadd.f32 %v2069, %v2111
    %v2113 = vpop.f32.mrb[0].mxu0
    %v2114 = vadd.f32 %v2071, %v2113
    %v2115 = vpop.f32.mrb[0].mxu0
    %v2116 = vadd.f32 %v2073, %v2115
    %2117 = vdwg.mxu0
    %2118 = vmatprep.subr.bf16.mxu0 %v1602
    %2119 = vmatpush1.bf16.msra.mxu0 %v1601
    %2120 = vmatprep.subr.bf16.mxu0 %v1609
    %2121 = vmatpush1.bf16.msra.mxu0 %v1608
    %2122 = vmatprep.subr.bf16.mxu0 %v1616
    %2123 = vmatpush1.bf16.msra.mxu0 %v1615
    %2124 = vmatprep.subr.bf16.mxu0 %v1623
    %2125 = vmatpush1.bf16.msra.mxu0 %v1622
    %2126 = vmatprep.subr.bf16.mxu0 %v1630
    %2127 = vmatpush1.bf16.msra.mxu0 %v1629
    %2128 = vmatprep.subr.bf16.mxu0 %v1637
    %2129 = vmatpush1.bf16.msra.mxu0 %v1636
    %2130 = vmatprep.subr.bf16.mxu0 %v1644
    %2131 = vmatpush1.bf16.msra.mxu0 %v1643
    %2132 = vmatprep.subr.bf16.mxu0 %v1651
    %2133 = vmatpush1.bf16.msra.mxu0 %v1650
    %2134 = vmatprep.subr.bf16.mxu0 %v1658
    %2135 = vmatpush1.bf16.msra.mxu0 %v1657
    %2136 = vmatprep.subr.bf16.mxu0 %v1665
    %2137 = vmatpush1.bf16.msra.mxu0 %v1664
    %2138 = vmatprep.subr.bf16.mxu0 %v1672
    %2139 = vmatpush1.bf16.msra.mxu0 %v1671
    %2140 = vmatprep.subr.bf16.mxu0 %v1679
    %2141 = vmatpush1.bf16.msra.mxu0 %v1678
    %2142 = vmatprep.subr.bf16.mxu0 %v1686
    %2143 = vmatpush1.bf16.msra.mxu0 %v1685
    %2144 = vmatprep.subr.bf16.mxu0 %v1693
    %2145 = vmatpush1.bf16.msra.mxu0 %v1692
    %2146 = vmatprep.subr.bf16.mxu0 %v1700
    %2147 = vmatpush1.bf16.msra.mxu0 %v1699
    %2148 = vmatprep.subr.bf16.mxu0 %v1707
    %2149 = vmatpush1.bf16.msra.mxu0 %v1706
    %2150 = vmatprep.mubr.bf16.mxu0 %v1372
    %2151 = vmatmul.mubr.bf16.gmra.mrb[0].mxu0 %v1371
    %v2152 = vpop.f32.mrb[0].mxu0
    %v2153 = vadd.f32 %v2110, %v2152
    %v2154 = vpop.f32.mrb[0].mxu0
    %v2155 = vadd.f32 %v2112, %v2154
    %v2156 = vpop.f32.mrb[0].mxu0
    %v2157 = vadd.f32 %v2114, %v2156
    %v2158 = vpop.f32.mrb[0].mxu0
    %v2159 = vadd.f32 %v2116, %v2158
    %2160 = vdwg.mxu0
    %2161 = vmatprep.subr.bf16.mxu0 %v1714
    %2162 = vmatpush1.bf16.msra.mxu0 %v1713
    %2163 = vmatprep.subr.bf16.mxu0 %v1721
    %2164 = vmatpush1.bf16.msra.mxu0 %v1720
    %2165 = vmatprep.subr.bf16.mxu0 %v1728
    %2166 = vmatpush1.bf16.msra.mxu0 %v1727
    %2167 = vmatprep.subr.bf16.mxu0 %v1735
    %2168 = vmatpush1.bf16.msra.mxu0 %v1734
    %2169 = vmatprep.subr.bf16.mxu0 %v1742
    %2170 = vmatpush1.bf16.msra.mxu0 %v1741
    %2171 = vmatprep.subr.bf16.mxu0 %v1749
    %2172 = vmatpush1.bf16.msra.mxu0 %v1748
    %2173 = vmatprep.subr.bf16.mxu0 %v1756
    %2174 = vmatpush1.bf16.msra.mxu0 %v1755
    %2175 = vmatprep.subr.bf16.mxu0 %v1763
    %2176 = vmatpush1.bf16.msra.mxu0 %v1762
    %2177 = vmatprep.subr.bf16.mxu0 %v1770
    %2178 = vmatpush1.bf16.msra.mxu0 %v1769
    %2179 = vmatprep.subr.bf16.mxu0 %v1777
    %2180 = vmatpush1.bf16.msra.mxu0 %v1776
    %2181 = vmatprep.subr.bf16.mxu0 %v1784
    %2182 = vmatpush1.bf16.msra.mxu0 %v1783
    %2183 = vmatprep.subr.bf16.mxu0 %v1791
    %2184 = vmatpush1.bf16.msra.mxu0 %v1790
    %2185 = vmatprep.subr.bf16.mxu0 %v1798
    %2186 = vmatpush1.bf16.msra.mxu0 %v1797
    %2187 = vmatprep.subr.bf16.mxu0 %v1805
    %2188 = vmatpush1.bf16.msra.mxu0 %v1804
    %2189 = vmatprep.subr.bf16.mxu0 %v1812
    %2190 = vmatpush1.bf16.msra.mxu0 %v1811
    %2191 = vmatprep.subr.bf16.mxu0 %v1819
    %2192 = vmatpush1.bf16.msra.mxu0 %v1818
    %2193 = vmatprep.mubr.bf16.mxu0 %v1374
    %2194 = vmatmul.mubr.bf16.gmra.mrb[0].mxu0 %v1373
    %v2195 = vpop.f32.mrb[0].mxu0
    %v2196 = vadd.f32 %v2153, %v2195
    %v2197 = vpop.f32.mrb[0].mxu0
    %v2198 = vadd.f32 %v2155, %v2197
    %v2199 = vpop.f32.mrb[0].mxu0
    %v2200 = vadd.f32 %v2157, %v2199
    %v2201 = vpop.f32.mrb[0].mxu0
    %v2202 = vadd.f32 %v2159, %v2201
    %2203 = vdwg.mxu0
    %2204 = vmatprep.subr.bf16.mxu0 %v1380
    %2205 = vmatpush1.bf16.msra.mxu0 %v1379
    %2206 = vmatprep.subr.bf16.mxu0 %v1387
    %2207 = vmatpush1.bf16.msra.mxu0 %v1386
    %2208 = vmatprep.subr.bf16.mxu0 %v1394
    %2209 = vmatpush1.bf16.msra.mxu0 %v1393
    %2210 = vmatprep.subr.bf16.mxu0 %v1401
    %2211 = vmatpush1.bf16.msra.mxu0 %v1400
    %2212 = vmatprep.subr.bf16.mxu0 %v1408
    %2213 = vmatpush1.bf16.msra.mxu0 %v1407
    %2214 = vmatprep.subr.bf16.mxu0 %v1415
    %2215 = vmatpush1.bf16.msra.mxu0 %v1414
    %2216 = vmatprep.subr.bf16.mxu0 %v1422
    %2217 = vmatpush1.bf16.msra.mxu0 %v1421
    %2218 = vmatprep.subr.bf16.mxu0 %v1429
    %2219 = vmatpush1.bf16.msra.mxu0 %v1428
    %2220 = vmatprep.subr.bf16.mxu0 %v1436
    %2221 = vmatpush1.bf16.msra.mxu0 %v1435
    %2222 = vmatprep.subr.bf16.mxu0 %v1443
    %2223 = vmatpush1.bf16.msra.mxu0 %v1442
    %2224 = vmatprep.subr.bf16.mxu0 %v1450
    %2225 = vmatpush1.bf16.msra.mxu0 %v1449
    %2226 = vmatprep.subr.bf16.mxu0 %v1457
    %2227 = vmatpush1.bf16.msra.mxu0 %v1456
    %2228 = vmatprep.subr.bf16.mxu0 %v1464
    %2229 = vmatpush1.bf16.msra.mxu0 %v1463
    %2230 = vmatprep.subr.bf16.mxu0 %v1471
    %2231 = vmatpush1.bf16.msra.mxu0 %v1470
    %2232 = vmatprep.subr.bf16.mxu0 %v1478
    %2233 = vmatpush1.bf16.msra.mxu0 %v1477
    %2234 = vmatprep.subr.bf16.mxu0 %v1485
    %2235 = vmatpush1.bf16.msra.mxu0 %v1484
    %2236 = vmatprep.mubr.bf16.mxu0 %v1368
    %2237 = vmatmul.mubr.bf16.gmra.mrb[0].mxu0 %v1367
    %v2238 = vpop.f32.mrb[0].mxu0
    %v2239 = vadd.f32 %v1844, %v2238
    %v2240 = vpop.f32.mrb[0].mxu0
    %v2241 = vadd.f32 %v1848, %v2240
    %v2242 = vpop.f32.mrb[0].mxu0
    %v2243 = vadd.f32 %v1844, %v2242
    %v2244 = vpop.f32.mrb[0].mxu0
    %v2245 = vadd.f32 %v1848, %v2244
    %2246 = vdwg.mxu0
    %2247 = vmatprep.subr.bf16.mxu0 %v1492
    %2248 = vmatpush1.bf16.msra.mxu0 %v1491
    %2249 = vmatprep.subr.bf16.mxu0 %v1499
    %2250 = vmatpush1.bf16.msra.mxu0 %v1498
    %2251 = vmatprep.subr.bf16.mxu0 %v1506
    %2252 = vmatpush1.bf16.msra.mxu0 %v1505
    %2253 = vmatprep.subr.bf16.mxu0 %v1513
    %2254 = vmatpush1.bf16.msra.mxu0 %v1512
    %2255 = vmatprep.subr.bf16.mxu0 %v1520
    %2256 = vmatpush1.bf16.msra.mxu0 %v1519
    %2257 = vmatprep.subr.bf16.mxu0 %v1527
    %2258 = vmatpush1.bf16.msra.mxu0 %v1526
    %2259 = vmatprep.subr.bf16.mxu0 %v1534
    %2260 = vmatpush1.bf16.msra.mxu0 %v1533
    %2261 = vmatprep.subr.bf16.mxu0 %v1541
    %2262 = vmatpush1.bf16.msra.mxu0 %v1540
    %2263 = vmatprep.subr.bf16.mxu0 %v1548
    %2264 = vmatpush1.bf16.msra.mxu0 %v1547
    %2265 = vmatprep.subr.bf16.mxu0 %v1555
    %2266 = vmatpush1.bf16.msra.mxu0 %v1554
    %2267 = vmatprep.subr.bf16.mxu0 %v1562
    %2268 = vmatpush1.bf16.msra.mxu0 %v1561
    %2269 = vmatprep.subr.bf16.mxu0 %v1569
    %2270 = vmatpush1.bf16.msra.mxu0 %v1568
    %2271 = vmatprep.subr.bf16.mxu0 %v1576
    %2272 = vmatpush1.bf16.msra.mxu0 %v1575
    %2273 = vmatprep.subr.bf16.mxu0 %v1583
    %2274 = vmatpush1.bf16.msra.mxu0 %v1582
    %2275 = vmatprep.subr.bf16.mxu0 %v1590
    %2276 = vmatpush1.bf16.msra.mxu0 %v1589
    %2277 = vmatprep.subr.bf16.mxu0 %v1597
    %2278 = vmatpush1.bf16.msra.mxu0 %v1596
    %2279 = vmatprep.mubr.bf16.mxu0 %v1370
    %2280 = vmatmul.mubr.bf16.gmra.mrb[0].mxu0 %v1369
    %v2281 = vpop.f32.mrb[0].mxu0
    %v2282 = vadd.f32 %v2239, %v2281
    %v2283 = vpop.f32.mrb[0].mxu0
    %v2284 = vadd.f32 %v2241, %v2283
    %v2285 = vpop.f32.mrb[0].mxu0
    %v2286 = vadd.f32 %v2243, %v2285
    %v2287 = vpop.f32.mrb[0].mxu0
    %v2288 = vadd.f32 %v2245, %v2287
    %2289 = vdwg.mxu0
    %2290 = vmatprep.subr.bf16.mxu0 %v1604
    %2291 = vmatpush1.bf16.msra.mxu0 %v1603
    %2292 = vmatprep.subr.bf16.mxu0 %v1611
    %2293 = vmatpush1.bf16.msra.mxu0 %v1610
    %2294 = vmatprep.subr.bf16.mxu0 %v1618
    %2295 = vmatpush1.bf16.msra.mxu0 %v1617
    %2296 = vmatprep.subr.bf16.mxu0 %v1625
    %2297 = vmatpush1.bf16.msra.mxu0 %v1624
    %2298 = vmatprep.subr.bf16.mxu0 %v1632
    %2299 = vmatpush1.bf16.msra.mxu0 %v1631
    %2300 = vmatprep.subr.bf16.mxu0 %v1639
    %2301 = vmatpush1.bf16.msra.mxu0 %v1638
    %2302 = vmatprep.subr.bf16.mxu0 %v1646
    %2303 = vmatpush1.bf16.msra.mxu0 %v1645
    %2304 = vmatprep.subr.bf16.mxu0 %v1653
    %2305 = vmatpush1.bf16.msra.mxu0 %v1652
    %2306 = vmatprep.subr.bf16.mxu0 %v1660
    %2307 = vmatpush1.bf16.msra.mxu0 %v1659
    %2308 = vmatprep.subr.bf16.mxu0 %v1667
    %2309 = vmatpush1.bf16.msra.mxu0 %v1666
    %2310 = vmatprep.subr.bf16.mxu0 %v1674
    %2311 = vmatpush1.bf16.msra.mxu0 %v1673
    %2312 = vmatprep.subr.bf16.mxu0 %v1681
    %2313 = vmatpush1.bf16.msra.mxu0 %v1680
    %2314 = vmatprep.subr.bf16.mxu0 %v1688
    %2315 = vmatpush1.bf16.msra.mxu0 %v1687
    %2316 = vmatprep.subr.bf16.mxu0 %v1695
    %2317 = vmatpush1.bf16.msra.mxu0 %v1694
    %2318 = vmatprep.subr.bf16.mxu0 %v1702
    %2319 = vmatpush1.bf16.msra.mxu0 %v1701
    %2320 = vmatprep.subr.bf16.mxu0 %v1709
    %2321 = vmatpush1.bf16.msra.mxu0 %v1708
    %2322 = vmatprep.mubr.bf16.mxu0 %v1372
    %2323 = vmatmul.mubr.bf16.gmra.mrb[0].mxu0 %v1371
    %v2324 = vpop.f32.mrb[0].mxu0
    %v2325 = vadd.f32 %v2282, %v2324
    %v2326 = vpop.f32.mrb[0].mxu0
    %v2327 = vadd.f32 %v2284, %v2326
    %v2328 = vpop.f32.mrb[0].mxu0
    %v2329 = vadd.f32 %v2286, %v2328
    %v2330 = vpop.f32.mrb[0].mxu0
    %v2331 = vadd.f32 %v2288, %v2330
    %2332 = vdwg.mxu0
    %2333 = vmatprep.subr.bf16.mxu0 %v1716
    %2334 = vmatpush1.bf16.msra.mxu0 %v1715
    %2335 = vmatprep.subr.bf16.mxu0 %v1723
    %2336 = vmatpush1.bf16.msra.mxu0 %v1722
    %2337 = vmatprep.subr.bf16.mxu0 %v1730
    %2338 = vmatpush1.bf16.msra.mxu0 %v1729
    %2339 = vmatprep.subr.bf16.mxu0 %v1737
    %2340 = vmatpush1.bf16.msra.mxu0 %v1736
    %2341 = vmatprep.subr.bf16.mxu0 %v1744
    %2342 = vmatpush1.bf16.msra.mxu0 %v1743
    %2343 = vmatprep.subr.bf16.mxu0 %v1751
    %2344 = vmatpush1.bf16.msra.mxu0 %v1750
    %2345 = vmatprep.subr.bf16.mxu0 %v1758
    %2346 = vmatpush1.bf16.msra.mxu0 %v1757
    %2347 = vmatprep.subr.bf16.mxu0 %v1765
    %2348 = vmatpush1.bf16.msra.mxu0 %v1764
    %2349 = vmatprep.subr.bf16.mxu0 %v1772
    %2350 = vmatpush1.bf16.msra.mxu0 %v1771
    %2351 = vmatprep.subr.bf16.mxu0 %v1779
    %2352 = vmatpush1.bf16.msra.mxu0 %v1778
    %2353 = vmatprep.subr.bf16.mxu0 %v1786
    %2354 = vmatpush1.bf16.msra.mxu0 %v1785
    %2355 = vmatprep.subr.bf16.mxu0 %v1793
    %2356 = vmatpush1.bf16.msra.mxu0 %v1792
    %2357 = vmatprep.subr.bf16.mxu0 %v1800
    %2358 = vmatpush1.bf16.msra.mxu0 %v1799
    %2359 = vmatprep.subr.bf16.mxu0 %v1807
    %2360 = vmatpush1.bf16.msra.mxu0 %v1806
    %2361 = vmatprep.subr.bf16.mxu0 %v1814
    %2362 = vmatpush1.bf16.msra.mxu0 %v1813
    %2363 = vmatprep.subr.bf16.mxu0 %v1821
    %2364 = vmatpush1.bf16.msra.mxu0 %v1820
    %2365 = vmatprep.mubr.bf16.mxu0 %v1374
    %2366 = vmatmul.mubr.bf16.gmra.mrb[0].mxu0 %v1373
    %v2367 = vpop.f32.mrb[0].mxu0
    %v2368 = vadd.f32 %v2325, %v2367
    %v2369 = vpop.f32.mrb[0].mxu0
    %v2370 = vadd.f32 %v2327, %v2369
    %v2371 = vpop.f32.mrb[0].mxu0
    %v2372 = vadd.f32 %v2329, %v2371
    %v2373 = vpop.f32.mrb[0].mxu0
    %v2374 = vadd.f32 %v2331, %v2373
    %2375 = vdwg.mxu0
    %2376 = vmatprep.subr.bf16.mxu0 0
    %2377 = vmatpush1.bf16.msra.mxu0 %v1381
    %2378 = vmatprep.subr.bf16.mxu0 0
    %2379 = vmatpush1.bf16.msra.mxu0 %v1388
    %2380 = vmatprep.subr.bf16.mxu0 0
    %2381 = vmatpush1.bf16.msra.mxu0 %v1395
    %2382 = vmatprep.subr.bf16.mxu0 0
    %2383 = vmatpush1.bf16.msra.mxu0 %v1402
    %2384 = vmatprep.subr.bf16.mxu0 0
    %2385 = vmatpush1.bf16.msra.mxu0 %v1409
    %2386 = vmatprep.subr.bf16.mxu0 0
    %2387 = vmatpush1.bf16.msra.mxu0 %v1416
    %2388 = vmatprep.subr.bf16.mxu0 0
    %2389 = vmatpush1.bf16.msra.mxu0 %v1423
    %2390 = vmatprep.subr.bf16.mxu0 0
    %2391 = vmatpush1.bf16.msra.mxu0 %v1430
    %2392 = vmatprep.subr.bf16.mxu0 0
    %2393 = vmatpush1.bf16.msra.mxu0 %v1437
    %2394 = vmatprep.subr.bf16.mxu0 0
    %2395 = vmatpush1.bf16.msra.mxu0 %v1444
    %2396 = vmatprep.subr.bf16.mxu0 0
    %2397 = vmatpush1.bf16.msra.mxu0 %v1451
    %2398 = vmatprep.subr.bf16.mxu0 0
    %2399 = vmatpush1.bf16.msra.mxu0 %v1458
    %2400 = vmatprep.subr.bf16.mxu0 0
    %2401 = vmatpush1.bf16.msra.mxu0 %v1465
    %2402 = vmatprep.subr.bf16.mxu0 0
    %2403 = vmatpush1.bf16.msra.mxu0 %v1472
    %2404 = vmatprep.subr.bf16.mxu0 0
    %2405 = vmatpush1.bf16.msra.mxu0 %v1479
    %2406 = vmatprep.subr.bf16.mxu0 0
    %2407 = vmatpush1.bf16.msra.mxu0 %v1486
    %2408 = vmatprep.mubr.bf16.mxu0 %v1368
    %2409 = vmatmul.mubr.bf16.gmra.mrb[0].mxu0 %v1367
    %v2410 = vpop.f32.mrb[0].mxu0
    %v2411 = vadd.f32 %v1852, %v2410
    %v2412 = vpop.f32.mrb[0].mxu0
    %v2413 = vpop.f32.mrb[0].mxu0
    %v2414 = vadd.f32 %v1852, %v2413
    %v2415 = vpop.f32.mrb[0].mxu0
    %2416 = vdwg.mxu0
    %2417 = vmatprep.subr.bf16.mxu0 0
    %2418 = vmatpush1.bf16.msra.mxu0 %v1493
    %2419 = vmatprep.subr.bf16.mxu0 0
    %2420 = vmatpush1.bf16.msra.mxu0 %v1500
    %2421 = vmatprep.subr.bf16.mxu0 0
    %2422 = vmatpush1.bf16.msra.mxu0 %v1507
    %2423 = vmatprep.subr.bf16.mxu0 0
    %2424 = vmatpush1.bf16.msra.mxu0 %v1514
    %2425 = vmatprep.subr.bf16.mxu0 0
    %2426 = vmatpush1.bf16.msra.mxu0 %v1521
    %2427 = vmatprep.subr.bf16.mxu0 0
    %2428 = vmatpush1.bf16.msra.mxu0 %v1528
    %2429 = vmatprep.subr.bf16.mxu0 0
    %2430 = vmatpush1.bf16.msra.mxu0 %v1535
    %2431 = vmatprep.subr.bf16.mxu0 0
    %2432 = vmatpush1.bf16.msra.mxu0 %v1542
    %2433 = vmatprep.subr.bf16.mxu0 0
    %2434 = vmatpush1.bf16.msra.mxu0 %v1549
    %2435 = vmatprep.subr.bf16.mxu0 0
    %2436 = vmatpush1.bf16.msra.mxu0 %v1556
    %2437 = vmatprep.subr.bf16.mxu0 0
    %2438 = vmatpush1.bf16.msra.mxu0 %v1563
    %2439 = vmatprep.subr.bf16.mxu0 0
    %2440 = vmatpush1.bf16.msra.mxu0 %v1570
    %2441 = vmatprep.subr.bf16.mxu0 0
    %2442 = vmatpush1.bf16.msra.mxu0 %v1577
    %2443 = vmatprep.subr.bf16.mxu0 0
    %2444 = vmatpush1.bf16.msra.mxu0 %v1584
    %2445 = vmatprep.subr.bf16.mxu0 0
    %2446 = vmatpush1.bf16.msra.mxu0 %v1591
    %2447 = vmatprep.subr.bf16.mxu0 0
    %2448 = vmatpush1.bf16.msra.mxu0 %v1598
    %2449 = vmatprep.mubr.bf16.mxu0 %v1370
    %2450 = vmatmul.mubr.bf16.gmra.mrb[0].mxu0 %v1369
    %v2451 = vpop.f32.mrb[0].mxu0
    %v2452 = vadd.f32 %v2411, %v2451
    %v2453 = vpop.f32.mrb[0].mxu0
    %v2454 = vpop.f32.mrb[0].mxu0
    %v2455 = vadd.f32 %v2414, %v2454
    %v2456 = vpop.f32.mrb[0].mxu0
    %2457 = vdwg.mxu0
    %2458 = vmatprep.subr.bf16.mxu0 0
    %2459 = vmatpush1.bf16.msra.mxu0 %v1605
    %2460 = vmatprep.subr.bf16.mxu0 0
    %2461 = vmatpush1.bf16.msra.mxu0 %v1612
    %2462 = vmatprep.subr.bf16.mxu0 0
    %2463 = vmatpush1.bf16.msra.mxu0 %v1619
    %2464 = vmatprep.subr.bf16.mxu0 0
    %2465 = vmatpush1.bf16.msra.mxu0 %v1626
    %2466 = vmatprep.subr.bf16.mxu0 0
    %2467 = vmatpush1.bf16.msra.mxu0 %v1633
    %2468 = vmatprep.subr.bf16.mxu0 0
    %2469 = vmatpush1.bf16.msra.mxu0 %v1640
    %2470 = vmatprep.subr.bf16.mxu0 0
    %2471 = vmatpush1.bf16.msra.mxu0 %v1647
    %2472 = vmatprep.subr.bf16.mxu0 0
    %2473 = vmatpush1.bf16.msra.mxu0 %v1654
    %2474 = vmatprep.subr.bf16.mxu0 0
    %2475 = vmatpush1.bf16.msra.mxu0 %v1661
    %2476 = vmatprep.subr.bf16.mxu0 0
    %2477 = vmatpush1.bf16.msra.mxu0 %v1668
    %2478 = vmatprep.subr.bf16.mxu0 0
    %2479 = vmatpush1.bf16.msra.mxu0 %v1675
    %2480 = vmatprep.subr.bf16.mxu0 0
    %2481 = vmatpush1.bf16.msra.mxu0 %v1682
    %2482 = vmatprep.subr.bf16.mxu0 0
    %2483 = vmatpush1.bf16.msra.mxu0 %v1689
    %2484 = vmatprep.subr.bf16.mxu0 0
    %2485 = vmatpush1.bf16.msra.mxu0 %v1696
    %2486 = vmatprep.subr.bf16.mxu0 0
    %2487 = vmatpush1.bf16.msra.mxu0 %v1703
    %2488 = vmatprep.subr.bf16.mxu0 0
    %2489 = vmatpush1.bf16.msra.mxu0 %v1710
    %2490 = vmatprep.mubr.bf16.mxu0 %v1372
    %2491 = vmatmul.mubr.bf16.gmra.mrb[0].mxu0 %v1371
    %v2492 = vpop.f32.mrb[0].mxu0
    %v2493 = vadd.f32 %v2452, %v2492
    %v2494 = vpop.f32.mrb[0].mxu0
    %v2495 = vpop.f32.mrb[0].mxu0
    %v2496 = vadd.f32 %v2455, %v2495
    %v2497 = vpop.f32.mrb[0].mxu0
    %2498 = vdwg.mxu0
    %2499 = vmatprep.subr.bf16.mxu0 0
    %2500 = vmatpush1.bf16.msra.mxu0 %v1717
    %2501 = vmatprep.subr.bf16.mxu0 0
    %2502 = vmatpush1.bf16.msra.mxu0 %v1724
    %2503 = vmatprep.subr.bf16.mxu0 0
    %2504 = vmatpush1.bf16.msra.mxu0 %v1731
    %2505 = vmatprep.subr.bf16.mxu0 0
    %2506 = vmatpush1.bf16.msra.mxu0 %v1738
    %2507 = vmatprep.subr.bf16.mxu0 0
    %2508 = vmatpush1.bf16.msra.mxu0 %v1745
    %2509 = vmatprep.subr.bf16.mxu0 0
    %2510 = vmatpush1.bf16.msra.mxu0 %v1752
    %2511 = vmatprep.subr.bf16.mxu0 0
    %2512 = vmatpush1.bf16.msra.mxu0 %v1759
    %2513 = vmatprep.subr.bf16.mxu0 0
    %2514 = vmatpush1.bf16.msra.mxu0 %v1766
    %2515 = vmatprep.subr.bf16.mxu0 0
    %2516 = vmatpush1.bf16.msra.mxu0 %v1773
    %2517 = vmatprep.subr.bf16.mxu0 0
    %2518 = vmatpush1.bf16.msra.mxu0 %v1780
    %2519 = vmatprep.subr.bf16.mxu0 0
    %2520 = vmatpush1.bf16.msra.mxu0 %v1787
    %2521 = vmatprep.subr.bf16.mxu0 0
    %2522 = vmatpush1.bf16.msra.mxu0 %v1794
    %2523 = vmatprep.subr.bf16.mxu0 0
    %2524 = vmatpush1.bf16.msra.mxu0 %v1801
    %2525 = vmatprep.subr.bf16.mxu0 0
    %2526 = vmatpush1.bf16.msra.mxu0 %v1808
    %2527 = vmatprep.subr.bf16.mxu0 0
    %2528 = vmatpush1.bf16.msra.mxu0 %v1815
    %2529 = vmatprep.subr.bf16.mxu0 0
    %2530 = vmatpush1.bf16.msra.mxu0 %v1822
    %2531 = vmatprep.mubr.bf16.mxu0 %v1374
    %2532 = vmatmul.mubr.bf16.gmra.mrb[0].mxu0 %v1373
    %v2533 = vpop.f32.mrb[0].mxu0
    %v2534 = vadd.f32 %v2493, %v2533
    %v2535 = vpop.f32.mrb[0].mxu0
    %v2536 = vpop.f32.mrb[0].mxu0
    %v2537 = vadd.f32 %v2496, %v2536
    %v2538 = vpop.f32.mrb[0].mxu0
    %2539 = vdwg.mxu0
    %v2540 = vtanh.pop %v2024
    %v2541 = vtanh.pop %v2026
    %v2542 = vtanh.pop %v2196
    %v2543 = vtanh.pop %v2198
    %v2544 = vtanh.pop %v2368
    %v2545 = vtanh.pop %v2370
    %v2546 = vtanh.pop %v2534
    %v2547 = vtanh.pop %v2028
    %v2548 = vtanh.pop %v2030
    %v2549 = vtanh.pop %v2200
    %v2550 = vtanh.pop %v2202
    %v2551 = vtanh.pop %v2372
    %v2552 = vtanh.pop %v2374
    %v2553 = vtanh.pop %v2537
    %2554 = vst [vmem:[%s10] sm:$0xff] %v2540
    %2555 = vst [vmem:[%s10 + $0x8] sm:$0xff] %v2541
    %2556 = vst [vmem:[%s10 + $0x10] sm:$0xff] %v2542
    %2557 = vst [vmem:[%s10 + $0x18] sm:$0xff] %v2543
    %2558 = vst [vmem:[%s10 + $0x20] sm:$0xff] %v2544
    %2559 = vst [vmem:[%s10 + $0x28] sm:$0xff] %v2545
    %2560 = vst [vmem:[%s10 + $0x30] sm:$0xff] %v2546
    %2561 = vst [vmem:[%s10 + $0x38] sm:$0xff] %v2547
    %2562 = vst [vmem:[%s10 + $0x40] sm:$0xff] %v2548
    %2563 = vst [vmem:[%s10 + $0x48] sm:$0xff] %v2549
    %2564 = vst [vmem:[%s10 + $0x50] sm:$0xff] %v2550
    %2565 = vst [vmem:[%s10 + $0x58] sm:$0xff] %v2551
    %2566 = vst [vmem:[%s10 + $0x60] sm:$0xff] %v2552
    %2567 = vst [vmem:[%s10 + $0x68] sm:$0xff] %v2553
    // Predicated region
    $region66: #{generator_forward.1} parent=1 // pred_check
      _
    $region67: #{generator_forward.1} parent=1 // pred_check_branch
      %2569 = sbr.rel (0) target = $region69
    $region68: #{generator_forward.1} parent=1 // pred_region
      _
    $region69: #{generator_forward.1} parent=1 // pred_fallthru
      _
    // Predicated region
    $region70: #{generator_forward.1} parent=1 // pred_check
      _
    $region71: #{generator_forward.1} parent=1 // pred_check_branch
      %2571 = sbr.rel (0) target = $region73
    $region72: #{generator_forward.1} parent=1 // pred_region
      _
    $region73: #{generator_forward.1} parent=1 // pred_fallthru
      _
    %2572 = vsyncpa [#allocation7], 1
    %2573 = vsyncpa [#allocation9], 1
    %2574 = vsyncpa [#allocation12], 1
  %2575 = vsyncmov [#allocation5]
  %s2576 = vpop.sfrf %2575
  %p2577 = scmp.eq.s32.totalorder %s2576, 0
  %p2578 = pneg %p2577
  %2580 = shalt.err (%p2578)
  %s2581 = scalar_lea.sflag [#allocation5], 1
  %2582 = vsyncmov %s2581
  %s2583 = vpop.sfrf %2582
  %p2584 = scmp.eq.s32.totalorder %s2583, 0
  %p2585 = pneg %p2584
  %2587 = shalt.err (%p2585)
  %s2588 = scalar_lea.sflag [#allocation5], 2
  %2589 = vsyncmov %s2588
  %s2590 = vpop.sfrf %2589
  %p2591 = scmp.eq.s32.totalorder %s2590, 0
  %p2592 = pneg %p2591
  %2594 = shalt.err (%p2592)

</llo_original>
